<compile_context>
chip_gen: v5e
topology: v5e:2x2
jax: 0.10.0
libtpu: 0.0.40
codegen_flags: <defaults>
</compile_context>

<pallas_src>
import functools

import jax
import jax.numpy as jnp
from jax.experimental import pallas as pl
from jax.experimental.pallas import tpu as pltpu


def _round_up(n: int, m: int) -> int:
    return ((n + m - 1) // m) * m


def _embed_fc_kernel(x_ref, w1_ref, b1_ref, w2_ref, b2_ref, o_ref):
    # x_ref:  (tb, D_p)   w1_ref: (D_p, E_p)   b1_ref: (1, E_p)  [f32]
    # w2_ref: (E_p, E_p)  b2_ref: (1, E_p)     o_ref:  (tb, E_p)
    # Matmul operands may be bf16 (compute dtype); accumulation is always f32.
    prec = (
        jax.lax.Precision.HIGHEST
        if x_ref.dtype == jnp.float32
        else jax.lax.Precision.DEFAULT
    )

    x = x_ref[...]

    # Linear 1 (MXU, f32 accumulate) + bias in f32
    h = jnp.dot(x, w1_ref[...], preferred_element_type=jnp.float32, precision=prec)
    h = h + b1_ref[...]

    # Exact (erf-based) GELU in f32 — matches nn.GELU() default (approximate='none').
    # TODO(synk): if the model tolerates it, the tanh-approx GELU halves EUP pushes.
    h = 0.5 * h * (1.0 + jax.lax.erf(h * 0.7071067811865476))

    # Linear 2 (cast activations to the MXU operand dtype; accumulate in f32)
    h = h.astype(w2_ref.dtype)
    out = jnp.dot(h, w2_ref[...], preferred_element_type=jnp.float32, precision=prec)
    out = out + b2_ref[...]

    o_ref[...] = out.astype(o_ref.dtype)


@functools.partial(
    jax.jit, static_argnames=("input_dim", "emb_dim", "block_b", "compute_dtype")
)
def embed_fc_forward(
    x, w1, b1, w2, b2, *, input_dim, emb_dim, block_b=256, compute_dtype=jnp.float32
):
    """Forward pass of EmbedFC: x.view(-1, input_dim) -> Linear -> GELU -> Linear."""
    # Flatten like x.view(-1, input_dim)
    x2d = x.reshape(-1, input_dim)
    B = x2d.shape[0]
    out_dtype = x2d.dtype

    # ---- Lane-dense padding of the feature dims (multiples of 128). ----------
    dp = _round_up(input_dim, 128)
    ep = _round_up(emb_dim, 128)

    # ---- Batch tiling: big tiles, no divisibility requirement. ---------------
    bb = min(int(block_b), _round_up(B, 8))
    bb = max(8, (bb // 8) * 8)
    bp = _round_up(B, bb)
    grid = (bp // bb,)

    # ---- Zero-pad operands (padded rows/cols contribute exactly zero). -------
    xp = jnp.pad(x2d, ((0, bp - B), (0, dp - input_dim)))
    w1p = jnp.pad(w1, ((0, dp - input_dim), (0, ep - emb_dim)))
    w2p = jnp.pad(w2, ((0, ep - emb_dim), (0, ep - emb_dim)))
    b1p = jnp.pad(b1, ((0, 0), (0, ep - emb_dim))).astype(jnp.float32)
    b2p = jnp.pad(b2, ((0, 0), (0, ep - emb_dim))).astype(jnp.float32)

    # MXU operands in compute_dtype (bf16 halves weight/x DMA bytes on v6e/v7x).
    xp = xp.astype(compute_dtype)
    w1p = w1p.astype(compute_dtype)
    w2p = w2p.astype(compute_dtype)

    # ---- VMEM budget: size against v7x (64 MiB/TC), leave headroom. ----------
    in_sz = jnp.dtype(compute_dtype).itemsize
    out_sz = jnp.dtype(out_dtype).itemsize
    vmem_need = (
        2 * bb * dp * in_sz                      # double-buffered x tiles
        + 2 * bb * ep * out_sz                   # double-buffered out tiles
        + 2 * (dp * ep + ep * ep + 2 * ep) * 4   # weights/biases (double-buffered)
        + 4 * bb * ep * 4                        # f32 intermediates headroom
    )
    vmem_limit = int(min(48 * 1024 * 1024, max(2 * vmem_need, 16 * 1024 * 1024)))

    cost = pl.CostEstimate(
        flops=2 * bp * (dp * ep + ep * ep),
        transcendentals=bp * ep,
        bytes_accessed=(
            bp * dp * in_sz + (dp * ep + ep * ep) * in_sz + 2 * ep * 4 + bp * ep * out_sz
        ),
    )

    out_padded = pl.pallas_call(
        _embed_fc_kernel,
        out_shape=jax.ShapeDtypeStruct((bp, ep), out_dtype),
        grid_spec=pltpu.PrefetchScalarGridSpec(
            num_scalar_prefetch=0,
            grid=grid,
            in_specs=[
                pl.BlockSpec((bb, dp), lambda i: (i, 0)),   # x tile
                pl.BlockSpec((dp, ep), lambda i: (0, 0)),   # w1 (replicated)
                pl.BlockSpec((1, ep), lambda i: (0, 0)),    # b1
                pl.BlockSpec((ep, ep), lambda i: (0, 0)),   # w2 (replicated)
                pl.BlockSpec((1, ep), lambda i: (0, 0)),    # b2
            ],
            out_specs=pl.BlockSpec((bb, ep), lambda i: (i, 0)),
        ),
        compiler_params=pltpu.CompilerParams(
            dimension_semantics=("parallel",),   # batch axis shards across TCs (v7x)
            vmem_limit_bytes=vmem_limit,
        ),
        cost_estimate=cost,
    )(xp, w1p, b1p, w2p, b2p)

    # Slice away batch / feature padding.
    return out_padded[:B, :emb_dim]


def init_embed_fc_params(key, input_dim, emb_dim, dtype=jnp.float32):
    """Deterministic init mirroring torch.nn.Linear default (uniform +/- 1/sqrt(fan_in))."""
    k1, k2, k3, k4 = jax.random.split(key, 4)
    bound1 = 1.0 / jnp.sqrt(jnp.float32(input_dim))
    bound2 = 1.0 / jnp.sqrt(jnp.float32(emb_dim))
    # Stored as (in_features, out_features) so the kernel does x @ W.
    w1 = jax.random.uniform(k1, (input_dim, emb_dim), dtype, -bound1, bound1)
    b1 = jax.random.uniform(k2, (1, emb_dim), dtype, -bound1, bound1)
    w2 = jax.random.uniform(k3, (emb_dim, emb_dim), dtype, -bound2, bound2)
    b2 = jax.random.uniform(k4, (1, emb_dim), dtype, -bound2, bound2)
    return w1, b1, w2, b2


if __name__ == "__main__":
    input_dim = 32
    emb_dim = 64
    batch = 512          # with block_b=256 -> grid length 2 (both TCs on v7x)
    block_b = 256

    key = jax.random.PRNGKey(0)
    kx, kp = jax.random.split(key)

    # Example input: anything with trailing size == input_dim; forward flattens it.
    x = jax.random.normal(kx, (batch, input_dim), dtype=jnp.float32)
    w1, b1, w2, b2 = init_embed_fc_params(kp, input_dim, emb_dim)

    # Pure-JAX reference (exact erf GELU).
    ref_h = x.reshape(-1, input_dim) @ w1 + b1
    ref_h = 0.5 * ref_h * (1.0 + jax.lax.erf(ref_h / jnp.sqrt(2.0)))
    ref = ref_h @ w2 + b2

    # f32 path (bit-accurate check).
    out_f32 = embed_fc_forward(
        x, w1, b1, w2, b2,
        input_dim=input_dim, emb_dim=emb_dim,
        block_b=block_b, compute_dtype=jnp.float32,
    )
    out_f32 = jax.block_until_ready(out_f32)
    assert out_f32.shape == (batch, emb_dim)
    assert jnp.allclose(out_f32, ref, atol=1e-5, rtol=1e-5)

    # bf16 MXU-operand path (perf path on v6e/v7x); looser tolerance.
    out_bf16 = embed_fc_forward(
        x, w1, b1, w2, b2,
        input_dim=input_dim, emb_dim=emb_dim,
        block_b=block_b, compute_dtype=jnp.bfloat16,
    )
    out_bf16 = jax.block_until_ready(out_bf16)
    assert out_bf16.shape == (batch, emb_dim)
    assert jnp.allclose(out_bf16, ref, atol=5e-2, rtol=5e-2)

    print("KERNEL_OK")
</pallas_src>

<mosaic_0001>
module attributes {stable_mosaic.version = 11 : i64} {
  func.func @_embed_fc_kernel(%arg0: i32, %arg1: memref<256x128xf32, #tpu.memory_space<vmem>>, %arg2: memref<128x128xf32, #tpu.memory_space<vmem>>, %arg3: memref<1x128xf32, #tpu.memory_space<vmem>>, %arg4: memref<128x128xf32, #tpu.memory_space<vmem>>, %arg5: memref<1x128xf32, #tpu.memory_space<vmem>>, %arg6: memref<256x128xf32, #tpu.memory_space<vmem>>) attributes {dimension_semantics = [#tpu.dimension_semantics<parallel>], iteration_bounds = array<i64: 2>, scalar_prefetch = 0 : i64, scratch_operands = 0 : i64, tpu.core_type = #tpu.core_type<tc>, window_params = [{transform_indices = @transform_0, window_bounds = array<i64: 256, 128>}, {pipeline_mode = #tpu.pipeline_mode<synchronous>, transform_indices = @transform_1, window_bounds = array<i64: 128, 128>}, {pipeline_mode = #tpu.pipeline_mode<synchronous>, transform_indices = @transform_2, window_bounds = array<i64: 1, 128>}, {pipeline_mode = #tpu.pipeline_mode<synchronous>, transform_indices = @transform_3, window_bounds = array<i64: 128, 128>}, {pipeline_mode = #tpu.pipeline_mode<synchronous>, transform_indices = @transform_4, window_bounds = array<i64: 1, 128>}, {transform_indices = @transform_5, window_bounds = array<i64: 256, 128>}]} {
    %c0 = arith.constant 0 : index
    %c0_0 = arith.constant 0 : index
    %0 = vector.load %arg1[%c0, %c0_0] : memref<256x128xf32, #tpu.memory_space<vmem>>, vector<256x128xf32>
    %c0_1 = arith.constant 0 : index
    %c0_2 = arith.constant 0 : index
    %1 = vector.load %arg2[%c0_1, %c0_2] : memref<128x128xf32, #tpu.memory_space<vmem>>, vector<128x128xf32>
    %cst = arith.constant dense<0.000000e+00> : vector<256x128xf32>
    %2 = tpu.matmul %0, %1, %cst {dimension_numbers = #tpu.dot_dimension_numbers<[1], [0], [0], [1], [0, 0, 1, 1], [], []>, precision = #tpu.contract_precision<fp32>} : vector<256x128xf32>, vector<128x128xf32>, vector<256x128xf32> -> vector<256x128xf32>
    %c0_3 = arith.constant 0 : index
    %c0_4 = arith.constant 0 : index
    %3 = vector.load %arg3[%c0_3, %c0_4] : memref<1x128xf32, #tpu.memory_space<vmem>>, vector<1x128xf32>
    %4 = vector.broadcast %3 : vector<1x128xf32> to vector<256x128xf32>
    %5 = arith.addf %2, %4 : vector<256x128xf32>
    %cst_5 = arith.constant 5.000000e-01 : f32
    %6 = vector.broadcast %cst_5 : f32 to vector<256x128xf32>
    %7 = arith.mulf %6, %5 : vector<256x128xf32>
    %cst_6 = arith.constant 0.707106769 : f32
    %8 = vector.broadcast %cst_6 : f32 to vector<256x128xf32>
    %9 = arith.mulf %5, %8 : vector<256x128xf32>
    %10 = math.erf %9 : vector<256x128xf32>
    %cst_7 = arith.constant 1.000000e+00 : f32
    %11 = vector.broadcast %cst_7 : f32 to vector<256x128xf32>
    %12 = arith.addf %11, %10 : vector<256x128xf32>
    %13 = arith.mulf %7, %12 : vector<256x128xf32>
    %c0_8 = arith.constant 0 : index
    %c0_9 = arith.constant 0 : index
    %14 = vector.load %arg4[%c0_8, %c0_9] : memref<128x128xf32, #tpu.memory_space<vmem>>, vector<128x128xf32>
    %cst_10 = arith.constant dense<0.000000e+00> : vector<256x128xf32>
    %15 = tpu.matmul %13, %14, %cst_10 {dimension_numbers = #tpu.dot_dimension_numbers<[1], [0], [0], [1], [0, 0, 1, 1], [], []>, precision = #tpu.contract_precision<fp32>} : vector<256x128xf32>, vector<128x128xf32>, vector<256x128xf32> -> vector<256x128xf32>
    %c0_11 = arith.constant 0 : index
    %c0_12 = arith.constant 0 : index
    %16 = vector.load %arg5[%c0_11, %c0_12] : memref<1x128xf32, #tpu.memory_space<vmem>>, vector<1x128xf32>
    %17 = vector.broadcast %16 : vector<1x128xf32> to vector<256x128xf32>
    %18 = arith.addf %15, %17 : vector<256x128xf32>
    %c0_13 = arith.constant 0 : index
    %c0_14 = arith.constant 0 : index
    %19 = vector.load %arg6[%c0_13, %c0_14] : memref<256x128xf32, #tpu.memory_space<vmem>>, vector<256x128xf32>
    tpu.vector_store %arg6[%c0_13, %c0_14], %18 {strides = array<i32>} : memref<256x128xf32, #tpu.memory_space<vmem>>, vector<256x128xf32>,
    return
  }
  func.func @transform_0(%arg0: i32) -> (i32, i32) {
    %c0_i32 = arith.constant 0 : i32
    %c0_i32_0 = arith.constant 0 : i32
    return %arg0, %c0_i32 : i32, i32
  }
  func.func @transform_1(%arg0: i32) -> (i32, i32) {
    %c0_i32 = arith.constant 0 : i32
    %c0_i32_0 = arith.constant 0 : i32
    %c0_i32_1 = arith.constant 0 : i32
    return %c0_i32, %c0_i32_0 : i32, i32
  }
  func.func @transform_2(%arg0: i32) -> (i32, i32) {
    %c0_i32 = arith.constant 0 : i32
    %c0_i32_0 = arith.constant 0 : i32
    %c0_i32_1 = arith.constant 0 : i32
    return %c0_i32, %c0_i32_0 : i32, i32
  }
  func.func @transform_3(%arg0: i32) -> (i32, i32) {
    %c0_i32 = arith.constant 0 : i32
    %c0_i32_0 = arith.constant 0 : i32
    %c0_i32_1 = arith.constant 0 : i32
    return %c0_i32, %c0_i32_0 : i32, i32
  }
  func.func @transform_4(%arg0: i32) -> (i32, i32) {
    %c0_i32 = arith.constant 0 : i32
    %c0_i32_0 = arith.constant 0 : i32
    %c0_i32_1 = arith.constant 0 : i32
    return %c0_i32, %c0_i32_0 : i32, i32
  }
  func.func @transform_5(%arg0: i32) -> (i32, i32) {
    %c0_i32 = arith.constant 0 : i32
    %c0_i32_0 = arith.constant 0 : i32
    return %arg0, %c0_i32 : i32, i32
  }
}

</mosaic_0001>

<llo_original>
// kernel: embed_fc_forward.1
$region0: #{embed_fc_forward.1}
  #allocation0 [shape = 'u32[]', space=smem, size = 0x4, offset = 0x4, fixed_abs, tag = 'smem constant byte address 0x4 - core index']
  #allocation1 [shape = 'u32[72,128]{1,0:T(1,128)}', space=vmem, size = 0x9000, scoped, tag = 'internal scratch']
  %s0 = inlined_call_operand.vmem [shape: f32[512,128], index: 0, kind: input, shape index: {}]
  %s1 = inlined_call_operand.vmem [shape: f32[128,128], index: 1, kind: input, shape index: {}]
  %s2 = inlined_call_operand.vmem [shape: f32[1,128], index: 2, kind: input, shape index: {}]
  %s3 = inlined_call_operand.vmem [shape: f32[128,128], index: 3, kind: input, shape index: {}]
  %s4 = inlined_call_operand.vmem [shape: f32[1,128], index: 4, kind: input, shape index: {}]
  %s5 = inlined_call_operand.vmem [shape: f32[512,128], index: 5, kind: output, shape index: {}]
  %s6 = sld [smem:[#allocation0]]
  $region53: #{embed_fc_forward.1} parent=0
    _
  %s8 = ssub.s32 1, %s6
  %s9 = scalar_select 0, %s8, %s6
  loop: start=0, step=1, limit=4
  $region2: #{embed_fc_forward.1} parent=0 // loop_pre_header
    _
  $region3: #{embed_fc_forward.1} parent=0 // loop_header
    %s11 = sphi 0, %s15
    %p12 = scmp.ge.s32.totalorder %s11, 4
    %s21 = sphi 0, %s23
    %s24 = sphi 0, %s21
    %s25 = sphi 0, %s24
    %s41 = sphi 0, %s25
    %s45 = sphi 0, %s45
    %s47 = sphi 0, %s45
    %s48 = sphi 0, %s47
    %s62 = sphi 0, %s48
    %s66 = sphi 0, %s66
    %s68 = sphi 0, %s66
    %s69 = sphi 0, %s68
    %s83 = sphi 0, %s69
    %s87 = sphi 0, %s87
    %s89 = sphi 0, %s87
    %s90 = sphi 0, %s89
    %s104 = sphi 0, %s90
    %s108 = sphi 0, %s108
    %s110 = sphi 0, %s108
    %s111 = sphi 0, %s110
    %s125 = sphi 0, %s111
    %s131 = sphi 0, %s133
    %s134 = sphi 0, %s131
    %s135 = sphi 0, %s134
    %s151 = sphi 0, %s135
  $region4: #{embed_fc_forward.1} parent=0 // loop_header_branch
    %14 = sbr.rel (%p12) target = $region8
  $region5: #{embed_fc_forward.1} parent=0 // loop_body
    %s16 = ssub.s32 %s11, 1
    %s17 = ssub.s32 %s11, 2
    %s18 = sadd.s32 %s11, 1
    %s19 = ssub.s32 %s11, %s18
    %p20 = scmp.eq.s32.totalorder %s19, 0
    %s22 = sadd.s32 %s21, 1
    %s23 = scalar_select %p20, %s21, %s22
    %p26 = pneg %p20
    %p27 = scmp.eq.s32.totalorder %s11, 1
    %p28 = por %p26, %p27
    %p29 = scmp.ne.s32.totalorder %s21, %s24
    %p30 = scmp.eq.s32.totalorder %s11, 0
    %p31 = por %p29, %p30
    %p32 = scmp.ne.s32.totalorder %s21, %s24
    %p33 = scmp.eq.s32.totalorder %s16, 1
    %p34 = por %p32, %p33
    %p35 = scmp.ne.s32.totalorder %s24, %s25
    %p36 = scmp.eq.s32.totalorder %s16, 0
    %p37 = por %p35, %p36
    %p38 = scmp.ne.s32.totalorder %s24, %s25
    %p39 = scmp.eq.s32.totalorder %s17, 1
    %p40 = por %p38, %p39
    %p42 = scmp.ne.s32.totalorder %s25, %s41
    %p43 = scmp.eq.s32.totalorder %s17, 0
    %p44 = por %p42, %p43
    %s46 = sadd.s32 %s45, 1
    %p49 = scmp.eq.s32.totalorder %s11, 1
    %p50 = scmp.ne.s32.totalorder %s45, %s47
    %p51 = scmp.eq.s32.totalorder %s11, 0
    %p52 = por %p50, %p51
    %p53 = scmp.ne.s32.totalorder %s45, %s47
    %p54 = scmp.eq.s32.totalorder %s16, 1
    %p55 = por %p53, %p54
    %p56 = scmp.ne.s32.totalorder %s47, %s48
    %p57 = scmp.eq.s32.totalorder %s16, 0
    %p58 = por %p56, %p57
    %p59 = scmp.ne.s32.totalorder %s47, %s48
    %p60 = scmp.eq.s32.totalorder %s17, 1
    %p61 = por %p59, %p60
    %p63 = scmp.ne.s32.totalorder %s48, %s62
    %p64 = scmp.eq.s32.totalorder %s17, 0
    %p65 = por %p63, %p64
    %s67 = sadd.s32 %s66, 1
    %p70 = scmp.eq.s32.totalorder %s11, 1
    %p71 = scmp.ne.s32.totalorder %s66, %s68
    %p72 = scmp.eq.s32.totalorder %s11, 0
    %p73 = por %p71, %p72
    %p74 = scmp.ne.s32.totalorder %s66, %s68
    %p75 = scmp.eq.s32.totalorder %s16, 1
    %p76 = por %p74, %p75
    %p77 = scmp.ne.s32.totalorder %s68, %s69
    %p78 = scmp.eq.s32.totalorder %s16, 0
    %p79 = por %p77, %p78
    %p80 = scmp.ne.s32.totalorder %s68, %s69
    %p81 = scmp.eq.s32.totalorder %s17, 1
    %p82 = por %p80, %p81
    %p84 = scmp.ne.s32.totalorder %s69, %s83
    %p85 = scmp.eq.s32.totalorder %s17, 0
    %p86 = por %p84, %p85
    %s88 = sadd.s32 %s87, 1
    %p91 = scmp.eq.s32.totalorder %s11, 1
    %p92 = scmp.ne.s32.totalorder %s87, %s89
    %p93 = scmp.eq.s32.totalorder %s11, 0
    %p94 = por %p92, %p93
    %p95 = scmp.ne.s32.totalorder %s87, %s89
    %p96 = scmp.eq.s32.totalorder %s16, 1
    %p97 = por %p95, %p96
    %p98 = scmp.ne.s32.totalorder %s89, %s90
    %p99 = scmp.eq.s32.totalorder %s16, 0
    %p100 = por %p98, %p99
    %p101 = scmp.ne.s32.totalorder %s89, %s90
    %p102 = scmp.eq.s32.totalorder %s17, 1
    %p103 = por %p101, %p102
    %p105 = scmp.ne.s32.totalorder %s90, %s104
    %p106 = scmp.eq.s32.totalorder %s17, 0
    %p107 = por %p105, %p106
    %s109 = sadd.s32 %s108, 1
    %p112 = scmp.eq.s32.totalorder %s11, 1
    %p113 = scmp.ne.s32.totalorder %s108, %s110
    %p114 = scmp.eq.s32.totalorder %s11, 0
    %p115 = por %p113, %p114
    %p116 = scmp.ne.s32.totalorder %s108, %s110
    %p117 = scmp.eq.s32.totalorder %s16, 1
    %p118 = por %p116, %p117
    %p119 = scmp.ne.s32.totalorder %s110, %s111
    %p120 = scmp.eq.s32.totalorder %s16, 0
    %p121 = por %p119, %p120
    %p122 = scmp.ne.s32.totalorder %s110, %s111
    %p123 = scmp.eq.s32.totalorder %s17, 1
    %p124 = por %p122, %p123
    %p126 = scmp.ne.s32.totalorder %s111, %s125
    %p127 = scmp.eq.s32.totalorder %s17, 0
    %p128 = por %p126, %p127
    %s129 = ssub.s32 %s11, %s18
    %p130 = scmp.eq.s32.totalorder %s129, 0
    %s132 = sadd.s32 %s131, 1
    %s133 = scalar_select %p130, %s131, %s132
    %p136 = pneg %p130
    %p137 = scmp.eq.s32.totalorder %s11, 1
    %p138 = por %p136, %p137
    %p139 = scmp.ne.s32.totalorder %s131, %s134
    %p140 = scmp.eq.s32.totalorder %s11, 0
    %p141 = por %p139, %p140
    %p142 = scmp.ne.s32.totalorder %s131, %s134
    %p143 = scmp.eq.s32.totalorder %s16, 1
    %p144 = por %p142, %p143
    %p145 = scmp.ne.s32.totalorder %s134, %s135
    %p146 = scmp.eq.s32.totalorder %s16, 0
    %p147 = por %p145, %p146
    %p148 = scmp.ne.s32.totalorder %s134, %s135
    %p149 = scmp.eq.s32.totalorder %s17, 1
    %p150 = por %p148, %p149
    %p152 = scmp.ne.s32.totalorder %s135, %s151
    %p153 = scmp.eq.s32.totalorder %s17, 0
    %p154 = por %p152, %p153
    %p155 = scmp.le.s32.totalorder 1, %s11
    %p156 = scmp.lt.s32.totalorder %s11, 3
    %p157 = pnand %p155, %p156
    %p158 = pneg %p157
    // Predicated region
    $region9: #{embed_fc_forward.1} parent=5 // pred_check
      _
    $region10: #{embed_fc_forward.1} parent=5 // pred_check_branch
      %160 = sbr.rel (%p157) target = $region12
    $region11: #{embed_fc_forward.1} parent=5 // pred_region
      %s161 = ssub.s32 %s11, 1
      // Predicated region
      $region13: #{embed_fc_forward.1} parent=11 // pred_check
        %p162 = pneg %p58
      $region14: #{embed_fc_forward.1} parent=11 // pred_check_branch
        %164 = sbr.rel (%p162) target = $region16
      $region15: #{embed_fc_forward.1} parent=11 // pred_region
        _
      $region16: #{embed_fc_forward.1} parent=11 // pred_fallthru
        _
      // Predicated region
      $region17: #{embed_fc_forward.1} parent=11 // pred_check
        %p165 = pneg %p79
      $region18: #{embed_fc_forward.1} parent=11 // pred_check_branch
        %167 = sbr.rel (%p165) target = $region20
      $region19: #{embed_fc_forward.1} parent=11 // pred_region
        _
      $region20: #{embed_fc_forward.1} parent=11 // pred_fallthru
        _
      // Predicated region
      $region21: #{embed_fc_forward.1} parent=11 // pred_check
        %p168 = pneg %p100
      $region22: #{embed_fc_forward.1} parent=11 // pred_check_branch
        %170 = sbr.rel (%p168) target = $region24
      $region23: #{embed_fc_forward.1} parent=11 // pred_region
        _
      $region24: #{embed_fc_forward.1} parent=11 // pred_fallthru
        _
      // Predicated region
      $region25: #{embed_fc_forward.1} parent=11 // pred_check
        %p171 = pneg %p121
      $region26: #{embed_fc_forward.1} parent=11 // pred_check_branch
        %173 = sbr.rel (%p171) target = $region28
      $region27: #{embed_fc_forward.1} parent=11 // pred_region
        _
      $region28: #{embed_fc_forward.1} parent=11 // pred_fallthru
        _
    $region12: #{embed_fc_forward.1} parent=5 // pred_fallthru
      _
    %p174 = scmp.lt.s32.totalorder %s11, 2
    // Predicated region
    $region29: #{embed_fc_forward.1} parent=5 // pred_check
      %p175 = pneg %p174
    $region30: #{embed_fc_forward.1} parent=5 // pred_check_branch
      %177 = sbr.rel (%p175) target = $region32
    $region31: #{embed_fc_forward.1} parent=5 // pred_region
      // Predicated region
      $region33: #{embed_fc_forward.1} parent=31 // pred_check
        %p178 = pneg %p31
      $region34: #{embed_fc_forward.1} parent=31 // pred_check_branch
        %180 = sbr.rel (%p178) target = $region36
      $region35: #{embed_fc_forward.1} parent=31 // pred_region
        %s181 = smul.u32 32, %s11
        %p182 = scmp.lt.s32.totalorder %s181, 63
        %s183 = scalar_select %p182, %s181, 63
        %s184 = smul.addr %s183, 8
        %s185 = scalar_lea.vmem %s0, %s184
        %s186 = smul.u32 32, %s11
      $region36: #{embed_fc_forward.1} parent=31 // pred_fallthru
        _
    $region32: #{embed_fc_forward.1} parent=5 // pred_fallthru
      _
    %p187 = scmp.le.s32.totalorder 1, %s11
    %p188 = scmp.lt.s32.totalorder %s11, 3
    %p189 = pnand %p187, %p188
    %p190 = pneg %p189
    // Predicated region
    $region37: #{embed_fc_forward.1} parent=5 // pred_check
      _
    $region38: #{embed_fc_forward.1} parent=5 // pred_check_branch
      %192 = sbr.rel (%p189) target = $region40
    $region39: #{embed_fc_forward.1} parent=5 // pred_region
      %s193 = ssub.s32 %s11, 1
      %s194 = smul.u32 32, %s16
      %p195 = scmp.lt.s32.totalorder %s194, 63
      %s196 = scalar_select %p195, %s194, 63
      %s197 = smul.addr %s196, 8
      %s198 = scalar_lea.vmem %s0, %s197
      %p199 = pneg %p37
      %p200 = pneg %p34
      %p201 = pneg %p58
      %p202 = pneg %p55
      %p203 = pneg %p79
      %p204 = pneg %p76
      %p205 = pneg %p100
      %p206 = pneg %p97
      %p207 = pneg %p121
      %p208 = pneg %p118
      %p209 = pneg %p147
      %p210 = pneg %p144
      %s211 = smul.u32 32, %s16
      %p212 = scmp.lt.s32.totalorder %s211, 63
      %s213 = scalar_select %p212, %s211, 63
      %s214 = smul.addr %s213, 8
      %s215 = scalar_lea.vmem %s5, %s214
      %s216 = smul.u32 32, %s16
      %p217 = scmp.lt.s32.totalorder %s216, 63
      %s218 = scalar_select %p217, %s216, 63
      %s219 = smul.addr %s218, 8
      %s220 = scalar_lea.vmem %s0, %s219
      %s221 = smul.u32 32, %s16
      %s222 = smul.u32 32, %s16
      %p223 = scmp.lt.s32.totalorder %s222, 63
      %s224 = scalar_select %p223, %s222, 63
      %s225 = smul.addr %s224, 8
      %s226 = scalar_lea.vmem %s5, %s225
      %s227 = smul.u32 32, %s16
      %v228 = vld [vmem:[%s220] sm:$0xff]
      %v229 = vld [vmem:[%s220 + $0x8] sm:$0xff]
      %v230 = vld [vmem:[%s220 + $0x10] sm:$0xff]
      %v231 = vld [vmem:[%s220 + $0x18] sm:$0xff]
      %v232 = vld [vmem:[%s220 + $0x20] sm:$0xff]
      %v233 = vld [vmem:[%s220 + $0x28] sm:$0xff]
      %v234 = vld [vmem:[%s220 + $0x30] sm:$0xff]
      %v235 = vld [vmem:[%s220 + $0x38] sm:$0xff]
      %v236 = vld [vmem:[%s220 + $0x40] sm:$0xff]
      %v237 = vld [vmem:[%s220 + $0x48] sm:$0xff]
      %v238 = vld [vmem:[%s220 + $0x50] sm:$0xff]
      %v239 = vld [vmem:[%s220 + $0x58] sm:$0xff]
      %v240 = vld [vmem:[%s220 + $0x60] sm:$0xff]
      %v241 = vld [vmem:[%s220 + $0x68] sm:$0xff]
      %v242 = vld [vmem:[%s220 + $0x70] sm:$0xff]
      %v243 = vld [vmem:[%s220 + $0x78] sm:$0xff]
      %v244 = vld [vmem:[%s220 + $0x80] sm:$0xff]
      %v245 = vld [vmem:[%s220 + $0x88] sm:$0xff]
      %v246 = vld [vmem:[%s220 + $0x90] sm:$0xff]
      %v247 = vld [vmem:[%s220 + $0x98] sm:$0xff]
      %v248 = vld [vmem:[%s220 + $0xa0] sm:$0xff]
      %v249 = vld [vmem:[%s220 + $0xa8] sm:$0xff]
      %v250 = vld [vmem:[%s220 + $0xb0] sm:$0xff]
      %v251 = vld [vmem:[%s220 + $0xb8] sm:$0xff]
      %v252 = vld [vmem:[%s220 + $0xc0] sm:$0xff]
      %v253 = vld [vmem:[%s220 + $0xc8] sm:$0xff]
      %v254 = vld [vmem:[%s220 + $0xd0] sm:$0xff]
      %v255 = vld [vmem:[%s220 + $0xd8] sm:$0xff]
      %v256 = vld [vmem:[%s220 + $0xe0] sm:$0xff]
      %v257 = vld [vmem:[%s220 + $0xe8] sm:$0xff]
      %v258 = vld [vmem:[%s220 + $0xf0] sm:$0xff]
      %v259 = vld [vmem:[%s220 + $0xf8] sm:$0xff]
      %v260 = vld [vmem:[%s1] sm:$0xff]
      %v261 = vld [vmem:[%s1 + $0x8] sm:$0xff]
      %v262 = vld [vmem:[%s1 + $0x10] sm:$0xff]
      %v263 = vld [vmem:[%s1 + $0x18] sm:$0xff]
      %v264 = vld [vmem:[%s1 + $0x20] sm:$0xff]
      %v265 = vld [vmem:[%s1 + $0x28] sm:$0xff]
      %v266 = vld [vmem:[%s1 + $0x30] sm:$0xff]
      %v267 = vld [vmem:[%s1 + $0x38] sm:$0xff]
      %v268 = vld [vmem:[%s1 + $0x40] sm:$0xff]
      %v269 = vld [vmem:[%s1 + $0x48] sm:$0xff]
      %v270 = vld [vmem:[%s1 + $0x50] sm:$0xff]
      %v271 = vld [vmem:[%s1 + $0x58] sm:$0xff]
      %v272 = vld [vmem:[%s1 + $0x60] sm:$0xff]
      %v273 = vld [vmem:[%s1 + $0x68] sm:$0xff]
      %v274 = vld [vmem:[%s1 + $0x70] sm:$0xff]
      %v275 = vld [vmem:[%s1 + $0x78] sm:$0xff]
      %v276 = vld [vmem:[%s2] sm:$0x1]
      %v278 = vperm.slane %v276, 0
      %v280 = vand.u32 %v275, 4294901760
      %281 = vmatpush.msra.mxu0 %v280
      %v282 = vand.u32 %v274, 4294901760
      %283 = vmatpush.msra.mxu0 %v282
      %v284 = vand.u32 %v273, 4294901760
      %285 = vmatpush.msra.mxu0 %v284
      %v286 = vand.u32 %v272, 4294901760
      %287 = vmatpush.msra.mxu0 %v286
      %v288 = vand.u32 %v271, 4294901760
      %289 = vmatpush.msra.mxu0 %v288
      %v290 = vand.u32 %v270, 4294901760
      %291 = vmatpush.msra.mxu0 %v290
      %v292 = vand.u32 %v269, 4294901760
      %293 = vmatpush.msra.mxu0 %v292
      %v294 = vand.u32 %v268, 4294901760
      %295 = vmatpush.msra.mxu0 %v294
      %v296 = vand.u32 %v267, 4294901760
      %297 = vmatpush.msra.mxu0 %v296
      %v298 = vand.u32 %v266, 4294901760
      %299 = vmatpush.msra.mxu0 %v298
      %v300 = vand.u32 %v265, 4294901760
      %301 = vmatpush.msra.mxu0 %v300
      %v302 = vand.u32 %v264, 4294901760
      %303 = vmatpush.msra.mxu0 %v302
      %v304 = vand.u32 %v263, 4294901760
      %305 = vmatpush.msra.mxu0 %v304
      %v306 = vand.u32 %v262, 4294901760
      %307 = vmatpush.msra.mxu0 %v306
      %v308 = vand.u32 %v261, 4294901760
      %309 = vmatpush.msra.mxu0 %v308
      %v310 = vand.u32 %v260, 4294901760
      %311 = vmatpush.msra.mxu0 %v310
      %v312 = vand.u32 %v228, 4294901760
      %v313 = vsub.f32 %v228, %v312
      %v314 = vand.u32 %v313, 4294901760
      %v315 = vsub.f32 %v313, %v314
      %v316 = vand.u32 %v315, 4294901760
      %317 = vmatmul.f32.gmra.mxu0 %v316
      %v318 = vpop.f32.mrf.mxu0
      %v319 = vadd.f32 %v278, %v318
      %v320 = vand.u32 %v229, 4294901760
      %v321 = vsub.f32 %v229, %v320
      %v322 = vand.u32 %v321, 4294901760
      %v323 = vsub.f32 %v321, %v322
      %v324 = vand.u32 %v323, 4294901760
      %325 = vmatmul.f32.gmra.mxu0 %v324
      %v326 = vpop.f32.mrf.mxu0
      %v327 = vadd.f32 %v278, %v326
      %v328 = vand.u32 %v230, 4294901760
      %v329 = vsub.f32 %v230, %v328
      %v330 = vand.u32 %v329, 4294901760
      %v331 = vsub.f32 %v329, %v330
      %v332 = vand.u32 %v331, 4294901760
      %333 = vmatmul.f32.gmra.mxu0 %v332
      %v334 = vpop.f32.mrf.mxu0
      %v335 = vadd.f32 %v278, %v334
      %v336 = vand.u32 %v231, 4294901760
      %v337 = vsub.f32 %v231, %v336
      %v338 = vand.u32 %v337, 4294901760
      %v339 = vsub.f32 %v337, %v338
      %v340 = vand.u32 %v339, 4294901760
      %341 = vmatmul.f32.gmra.mxu0 %v340
      %v342 = vpop.f32.mrf.mxu0
      %v343 = vadd.f32 %v278, %v342
      %v344 = vand.u32 %v232, 4294901760
      %v345 = vsub.f32 %v232, %v344
      %v346 = vand.u32 %v345, 4294901760
      %v347 = vsub.f32 %v345, %v346
      %v348 = vand.u32 %v347, 4294901760
      %349 = vmatmul.f32.gmra.mxu0 %v348
      %v350 = vpop.f32.mrf.mxu0
      %v351 = vadd.f32 %v278, %v350
      %v352 = vand.u32 %v233, 4294901760
      %v353 = vsub.f32 %v233, %v352
      %v354 = vand.u32 %v353, 4294901760
      %v355 = vsub.f32 %v353, %v354
      %v356 = vand.u32 %v355, 4294901760
      %357 = vmatmul.f32.gmra.mxu0 %v356
      %v358 = vpop.f32.mrf.mxu0
      %v359 = vadd.f32 %v278, %v358
      %v360 = vand.u32 %v234, 4294901760
      %v361 = vsub.f32 %v234, %v360
      %v362 = vand.u32 %v361, 4294901760
      %v363 = vsub.f32 %v361, %v362
      %v364 = vand.u32 %v363, 4294901760
      %365 = vmatmul.f32.gmra.mxu0 %v364
      %v366 = vpop.f32.mrf.mxu0
      %v367 = vadd.f32 %v278, %v366
      %v368 = vand.u32 %v235, 4294901760
      %v369 = vsub.f32 %v235, %v368
      %v370 = vand.u32 %v369, 4294901760
      %v371 = vsub.f32 %v369, %v370
      %v372 = vand.u32 %v371, 4294901760
      %373 = vmatmul.f32.gmra.mxu0 %v372
      %v374 = vpop.f32.mrf.mxu0
      %v375 = vadd.f32 %v278, %v374
      %v376 = vand.u32 %v236, 4294901760
      %v377 = vsub.f32 %v236, %v376
      %v378 = vand.u32 %v377, 4294901760
      %v379 = vsub.f32 %v377, %v378
      %v380 = vand.u32 %v379, 4294901760
      %381 = vmatmul.f32.gmra.mxu0 %v380
      %v382 = vpop.f32.mrf.mxu0
      %v383 = vadd.f32 %v278, %v382
      %v384 = vand.u32 %v237, 4294901760
      %v385 = vsub.f32 %v237, %v384
      %v386 = vand.u32 %v385, 4294901760
      %v387 = vsub.f32 %v385, %v386
      %v388 = vand.u32 %v387, 4294901760
      %389 = vmatmul.f32.gmra.mxu0 %v388
      %v390 = vpop.f32.mrf.mxu0
      %v391 = vadd.f32 %v278, %v390
      %v392 = vand.u32 %v238, 4294901760
      %v393 = vsub.f32 %v238, %v392
      %v394 = vand.u32 %v393, 4294901760
      %v395 = vsub.f32 %v393, %v394
      %v396 = vand.u32 %v395, 4294901760
      %397 = vmatmul.f32.gmra.mxu0 %v396
      %v398 = vpop.f32.mrf.mxu0
      %v399 = vadd.f32 %v278, %v398
      %v400 = vand.u32 %v239, 4294901760
      %v401 = vsub.f32 %v239, %v400
      %v402 = vand.u32 %v401, 4294901760
      %v403 = vsub.f32 %v401, %v402
      %v404 = vand.u32 %v403, 4294901760
      %405 = vmatmul.f32.gmra.mxu0 %v404
      %v406 = vpop.f32.mrf.mxu0
      %v407 = vadd.f32 %v278, %v406
      %v408 = vand.u32 %v240, 4294901760
      %v409 = vsub.f32 %v240, %v408
      %v410 = vand.u32 %v409, 4294901760
      %v411 = vsub.f32 %v409, %v410
      %v412 = vand.u32 %v411, 4294901760
      %413 = vmatmul.f32.gmra.mxu0 %v412
      %v414 = vpop.f32.mrf.mxu0
      %v415 = vadd.f32 %v278, %v414
      %v416 = vand.u32 %v241, 4294901760
      %v417 = vsub.f32 %v241, %v416
      %v418 = vand.u32 %v417, 4294901760
      %v419 = vsub.f32 %v417, %v418
      %v420 = vand.u32 %v419, 4294901760
      %421 = vmatmul.f32.gmra.mxu0 %v420
      %v422 = vpop.f32.mrf.mxu0
      %v423 = vadd.f32 %v278, %v422
      %v424 = vand.u32 %v242, 4294901760
      %v425 = vsub.f32 %v242, %v424
      %v426 = vand.u32 %v425, 4294901760
      %v427 = vsub.f32 %v425, %v426
      %v428 = vand.u32 %v427, 4294901760
      %429 = vmatmul.f32.gmra.mxu0 %v428
      %v430 = vpop.f32.mrf.mxu0
      %v431 = vadd.f32 %v278, %v430
      %v432 = vand.u32 %v243, 4294901760
      %v433 = vsub.f32 %v243, %v432
      %v434 = vand.u32 %v433, 4294901760
      %v435 = vsub.f32 %v433, %v434
      %v436 = vand.u32 %v435, 4294901760
      %437 = vmatmul.f32.gmra.mxu0 %v436
      %v438 = vpop.f32.mrf.mxu0
      %v439 = vadd.f32 %v278, %v438
      %v440 = vand.u32 %v244, 4294901760
      %v441 = vsub.f32 %v244, %v440
      %v442 = vand.u32 %v441, 4294901760
      %v443 = vsub.f32 %v441, %v442
      %v444 = vand.u32 %v443, 4294901760
      %445 = vmatmul.f32.gmra.mxu0 %v444
      %v446 = vpop.f32.mrf.mxu0
      %v447 = vadd.f32 %v278, %v446
      %v448 = vand.u32 %v245, 4294901760
      %v449 = vsub.f32 %v245, %v448
      %v450 = vand.u32 %v449, 4294901760
      %v451 = vsub.f32 %v449, %v450
      %v452 = vand.u32 %v451, 4294901760
      %453 = vmatmul.f32.gmra.mxu0 %v452
      %v454 = vpop.f32.mrf.mxu0
      %v455 = vadd.f32 %v278, %v454
      %v456 = vand.u32 %v246, 4294901760
      %v457 = vsub.f32 %v246, %v456
      %v458 = vand.u32 %v457, 4294901760
      %v459 = vsub.f32 %v457, %v458
      %v460 = vand.u32 %v459, 4294901760
      %461 = vmatmul.f32.gmra.mxu0 %v460
      %v462 = vpop.f32.mrf.mxu0
      %v463 = vadd.f32 %v278, %v462
      %v464 = vand.u32 %v247, 4294901760
      %v465 = vsub.f32 %v247, %v464
      %v466 = vand.u32 %v465, 4294901760
      %v467 = vsub.f32 %v465, %v466
      %v468 = vand.u32 %v467, 4294901760
      %469 = vmatmul.f32.gmra.mxu0 %v468
      %v470 = vpop.f32.mrf.mxu0
      %v471 = vadd.f32 %v278, %v470
      %v472 = vand.u32 %v248, 4294901760
      %v473 = vsub.f32 %v248, %v472
      %v474 = vand.u32 %v473, 4294901760
      %v475 = vsub.f32 %v473, %v474
      %v476 = vand.u32 %v475, 4294901760
      %477 = vmatmul.f32.gmra.mxu0 %v476
      %v478 = vpop.f32.mrf.mxu0
      %v479 = vadd.f32 %v278, %v478
      %v480 = vand.u32 %v249, 4294901760
      %v481 = vsub.f32 %v249, %v480
      %v482 = vand.u32 %v481, 4294901760
      %v483 = vsub.f32 %v481, %v482
      %v484 = vand.u32 %v483, 4294901760
      %485 = vmatmul.f32.gmra.mxu0 %v484
      %v486 = vpop.f32.mrf.mxu0
      %v487 = vadd.f32 %v278, %v486
      %v488 = vand.u32 %v250, 4294901760
      %v489 = vsub.f32 %v250, %v488
      %v490 = vand.u32 %v489, 4294901760
      %v491 = vsub.f32 %v489, %v490
      %v492 = vand.u32 %v491, 4294901760
      %493 = vmatmul.f32.gmra.mxu0 %v492
      %v494 = vpop.f32.mrf.mxu0
      %v495 = vadd.f32 %v278, %v494
      %v496 = vand.u32 %v251, 4294901760
      %v497 = vsub.f32 %v251, %v496
      %v498 = vand.u32 %v497, 4294901760
      %v499 = vsub.f32 %v497, %v498
      %v500 = vand.u32 %v499, 4294901760
      %501 = vmatmul.f32.gmra.mxu0 %v500
      %v502 = vpop.f32.mrf.mxu0
      %v503 = vadd.f32 %v278, %v502
      %v504 = vand.u32 %v252, 4294901760
      %v505 = vsub.f32 %v252, %v504
      %v506 = vand.u32 %v505, 4294901760
      %v507 = vsub.f32 %v505, %v506
      %v508 = vand.u32 %v507, 4294901760
      %509 = vmatmul.f32.gmra.mxu0 %v508
      %v510 = vpop.f32.mrf.mxu0
      %v511 = vadd.f32 %v278, %v510
      %v512 = vand.u32 %v253, 4294901760
      %v513 = vsub.f32 %v253, %v512
      %v514 = vand.u32 %v513, 4294901760
      %v515 = vsub.f32 %v513, %v514
      %v516 = vand.u32 %v515, 4294901760
      %517 = vmatmul.f32.gmra.mxu0 %v516
      %v518 = vpop.f32.mrf.mxu0
      %v519 = vadd.f32 %v278, %v518
      %v520 = vand.u32 %v254, 4294901760
      %v521 = vsub.f32 %v254, %v520
      %v522 = vand.u32 %v521, 4294901760
      %v523 = vsub.f32 %v521, %v522
      %v524 = vand.u32 %v523, 4294901760
      %525 = vmatmul.f32.gmra.mxu0 %v524
      %v526 = vpop.f32.mrf.mxu0
      %v527 = vadd.f32 %v278, %v526
      %v528 = vand.u32 %v255, 4294901760
      %v529 = vsub.f32 %v255, %v528
      %v530 = vand.u32 %v529, 4294901760
      %v531 = vsub.f32 %v529, %v530
      %v532 = vand.u32 %v531, 4294901760
      %533 = vmatmul.f32.gmra.mxu0 %v532
      %v534 = vpop.f32.mrf.mxu0
      %v535 = vadd.f32 %v278, %v534
      %v536 = vand.u32 %v256, 4294901760
      %v537 = vsub.f32 %v256, %v536
      %v538 = vand.u32 %v537, 4294901760
      %v539 = vsub.f32 %v537, %v538
      %v540 = vand.u32 %v539, 4294901760
      %541 = vmatmul.f32.gmra.mxu0 %v540
      %v542 = vpop.f32.mrf.mxu0
      %v543 = vadd.f32 %v278, %v542
      %v544 = vand.u32 %v257, 4294901760
      %v545 = vsub.f32 %v257, %v544
      %v546 = vand.u32 %v545, 4294901760
      %v547 = vsub.f32 %v545, %v546
      %v548 = vand.u32 %v547, 4294901760
      %549 = vmatmul.f32.gmra.mxu0 %v548
      %v550 = vpop.f32.mrf.mxu0
      %v551 = vadd.f32 %v278, %v550
      %v552 = vand.u32 %v258, 4294901760
      %v553 = vsub.f32 %v258, %v552
      %v554 = vand.u32 %v553, 4294901760
      %v555 = vsub.f32 %v553, %v554
      %v556 = vand.u32 %v555, 4294901760
      %557 = vmatmul.f32.gmra.mxu0 %v556
      %v558 = vpop.f32.mrf.mxu0
      %v559 = vadd.f32 %v278, %v558
      %v560 = vand.u32 %v259, 4294901760
      %v561 = vsub.f32 %v259, %v560
      %v562 = vand.u32 %v561, 4294901760
      %v563 = vsub.f32 %v561, %v562
      %v564 = vand.u32 %v563, 4294901760
      %565 = vmatmul.f32.gmra.mxu0 %v564
      %v566 = vpop.f32.mrf.mxu0
      %v567 = vadd.f32 %v278, %v566
      %568 = vdwg.mxu0
      %v569 = vand.u32 %v275, 4294901760
      %v570 = vsub.f32 %v275, %v569
      %v571 = vand.u32 %v570, 4294901760
      %v572 = vsub.f32 %v570, %v571
      %v573 = vand.u32 %v572, 4294901760
      %574 = vmatpush.msra.mxu0 %v573
      %v575 = vand.u32 %v274, 4294901760
      %v576 = vsub.f32 %v274, %v575
      %v577 = vand.u32 %v576, 4294901760
      %v578 = vsub.f32 %v576, %v577
      %v579 = vand.u32 %v578, 4294901760
      %580 = vmatpush.msra.mxu0 %v579
      %v581 = vand.u32 %v273, 4294901760
      %v582 = vsub.f32 %v273, %v581
      %v583 = vand.u32 %v582, 4294901760
      %v584 = vsub.f32 %v582, %v583
      %v585 = vand.u32 %v584, 4294901760
      %586 = vmatpush.msra.mxu0 %v585
      %v587 = vand.u32 %v272, 4294901760
      %v588 = vsub.f32 %v272, %v587
      %v589 = vand.u32 %v588, 4294901760
      %v590 = vsub.f32 %v588, %v589
      %v591 = vand.u32 %v590, 4294901760
      %592 = vmatpush.msra.mxu0 %v591
      %v593 = vand.u32 %v271, 4294901760
      %v594 = vsub.f32 %v271, %v593
      %v595 = vand.u32 %v594, 4294901760
      %v596 = vsub.f32 %v594, %v595
      %v597 = vand.u32 %v596, 4294901760
      %598 = vmatpush.msra.mxu0 %v597
      %v599 = vand.u32 %v270, 4294901760
      %v600 = vsub.f32 %v270, %v599
      %v601 = vand.u32 %v600, 4294901760
      %v602 = vsub.f32 %v600, %v601
      %v603 = vand.u32 %v602, 4294901760
      %604 = vmatpush.msra.mxu0 %v603
      %v605 = vand.u32 %v269, 4294901760
      %v606 = vsub.f32 %v269, %v605
      %v607 = vand.u32 %v606, 4294901760
      %v608 = vsub.f32 %v606, %v607
      %v609 = vand.u32 %v608, 4294901760
      %610 = vmatpush.msra.mxu0 %v609
      %v611 = vand.u32 %v268, 4294901760
      %v612 = vsub.f32 %v268, %v611
      %v613 = vand.u32 %v612, 4294901760
      %v614 = vsub.f32 %v612, %v613
      %v615 = vand.u32 %v614, 4294901760
      %616 = vmatpush.msra.mxu0 %v615
      %v617 = vand.u32 %v267, 4294901760
      %v618 = vsub.f32 %v267, %v617
      %v619 = vand.u32 %v618, 4294901760
      %v620 = vsub.f32 %v618, %v619
      %v621 = vand.u32 %v620, 4294901760
      %622 = vmatpush.msra.mxu0 %v621
      %v623 = vand.u32 %v266, 4294901760
      %v624 = vsub.f32 %v266, %v623
      %v625 = vand.u32 %v624, 4294901760
      %v626 = vsub.f32 %v624, %v625
      %v627 = vand.u32 %v626, 4294901760
      %628 = vmatpush.msra.mxu0 %v627
      %v629 = vand.u32 %v265, 4294901760
      %v630 = vsub.f32 %v265, %v629
      %v631 = vand.u32 %v630, 4294901760
      %v632 = vsub.f32 %v630, %v631
      %v633 = vand.u32 %v632, 4294901760
      %634 = vmatpush.msra.mxu0 %v633
      %v635 = vand.u32 %v264, 4294901760
      %v636 = vsub.f32 %v264, %v635
      %v637 = vand.u32 %v636, 4294901760
      %v638 = vsub.f32 %v636, %v637
      %v639 = vand.u32 %v638, 4294901760
      %640 = vmatpush.msra.mxu0 %v639
      %v641 = vand.u32 %v263, 4294901760
      %v642 = vsub.f32 %v263, %v641
      %v643 = vand.u32 %v642, 4294901760
      %v644 = vsub.f32 %v642, %v643
      %v645 = vand.u32 %v644, 4294901760
      %646 = vmatpush.msra.mxu0 %v645
      %v647 = vand.u32 %v262, 4294901760
      %v648 = vsub.f32 %v262, %v647
      %v649 = vand.u32 %v648, 4294901760
      %v650 = vsub.f32 %v648, %v649
      %v651 = vand.u32 %v650, 4294901760
      %652 = vmatpush.msra.mxu0 %v651
      %v653 = vand.u32 %v261, 4294901760
      %v654 = vsub.f32 %v261, %v653
      %v655 = vand.u32 %v654, 4294901760
      %v656 = vsub.f32 %v654, %v655
      %v657 = vand.u32 %v656, 4294901760
      %658 = vmatpush.msra.mxu0 %v657
      %v659 = vand.u32 %v260, 4294901760
      %v660 = vsub.f32 %v260, %v659
      %v661 = vand.u32 %v660, 4294901760
      %v662 = vsub.f32 %v660, %v661
      %v663 = vand.u32 %v662, 4294901760
      %664 = vmatpush.msra.mxu0 %v663
      %v665 = vand.u32 %v228, 4294901760
      %666 = vmatmul.f32.gmra.mxu0 %v665
      %v667 = vpop.f32.mrf.mxu0
      %v668 = vadd.f32 %v319, %v667
      %v669 = vand.u32 %v229, 4294901760
      %670 = vmatmul.f32.gmra.mxu0 %v669
      %v671 = vpop.f32.mrf.mxu0
      %v672 = vadd.f32 %v327, %v671
      %v673 = vand.u32 %v230, 4294901760
      %674 = vmatmul.f32.gmra.mxu0 %v673
      %v675 = vpop.f32.mrf.mxu0
      %v676 = vadd.f32 %v335, %v675
      %v677 = vand.u32 %v231, 4294901760
      %678 = vmatmul.f32.gmra.mxu0 %v677
      %v679 = vpop.f32.mrf.mxu0
      %v680 = vadd.f32 %v343, %v679
      %v681 = vand.u32 %v232, 4294901760
      %682 = vmatmul.f32.gmra.mxu0 %v681
      %v683 = vpop.f32.mrf.mxu0
      %v684 = vadd.f32 %v351, %v683
      %v685 = vand.u32 %v233, 4294901760
      %686 = vmatmul.f32.gmra.mxu0 %v685
      %v687 = vpop.f32.mrf.mxu0
      %v688 = vadd.f32 %v359, %v687
      %v689 = vand.u32 %v234, 4294901760
      %690 = vmatmul.f32.gmra.mxu0 %v689
      %v691 = vpop.f32.mrf.mxu0
      %v692 = vadd.f32 %v367, %v691
      %v693 = vand.u32 %v235, 4294901760
      %694 = vmatmul.f32.gmra.mxu0 %v693
      %v695 = vpop.f32.mrf.mxu0
      %v696 = vadd.f32 %v375, %v695
      %v697 = vand.u32 %v236, 4294901760
      %698 = vmatmul.f32.gmra.mxu0 %v697
      %v699 = vpop.f32.mrf.mxu0
      %v700 = vadd.f32 %v383, %v699
      %v701 = vand.u32 %v237, 4294901760
      %702 = vmatmul.f32.gmra.mxu0 %v701
      %v703 = vpop.f32.mrf.mxu0
      %v704 = vadd.f32 %v391, %v703
      %v705 = vand.u32 %v238, 4294901760
      %706 = vmatmul.f32.gmra.mxu0 %v705
      %v707 = vpop.f32.mrf.mxu0
      %v708 = vadd.f32 %v399, %v707
      %v709 = vand.u32 %v239, 4294901760
      %710 = vmatmul.f32.gmra.mxu0 %v709
      %v711 = vpop.f32.mrf.mxu0
      %v712 = vadd.f32 %v407, %v711
      %v713 = vand.u32 %v240, 4294901760
      %714 = vmatmul.f32.gmra.mxu0 %v713
      %v715 = vpop.f32.mrf.mxu0
      %v716 = vadd.f32 %v415, %v715
      %v717 = vand.u32 %v241, 4294901760
      %718 = vmatmul.f32.gmra.mxu0 %v717
      %v719 = vpop.f32.mrf.mxu0
      %v720 = vadd.f32 %v423, %v719
      %v721 = vand.u32 %v242, 4294901760
      %722 = vmatmul.f32.gmra.mxu0 %v721
      %v723 = vpop.f32.mrf.mxu0
      %v724 = vadd.f32 %v431, %v723
      %v725 = vand.u32 %v243, 4294901760
      %726 = vmatmul.f32.gmra.mxu0 %v725
      %v727 = vpop.f32.mrf.mxu0
      %v728 = vadd.f32 %v439, %v727
      %v729 = vand.u32 %v244, 4294901760
      %730 = vmatmul.f32.gmra.mxu0 %v729
      %v731 = vpop.f32.mrf.mxu0
      %v732 = vadd.f32 %v447, %v731
      %v733 = vand.u32 %v245, 4294901760
      %734 = vmatmul.f32.gmra.mxu0 %v733
      %v735 = vpop.f32.mrf.mxu0
      %v736 = vadd.f32 %v455, %v735
      %v737 = vand.u32 %v246, 4294901760
      %738 = vmatmul.f32.gmra.mxu0 %v737
      %v739 = vpop.f32.mrf.mxu0
      %v740 = vadd.f32 %v463, %v739
      %v741 = vand.u32 %v247, 4294901760
      %742 = vmatmul.f32.gmra.mxu0 %v741
      %v743 = vpop.f32.mrf.mxu0
      %v744 = vadd.f32 %v471, %v743
      %v745 = vand.u32 %v248, 4294901760
      %746 = vmatmul.f32.gmra.mxu0 %v745
      %v747 = vpop.f32.mrf.mxu0
      %v748 = vadd.f32 %v479, %v747
      %v749 = vand.u32 %v249, 4294901760
      %750 = vmatmul.f32.gmra.mxu0 %v749
      %v751 = vpop.f32.mrf.mxu0
      %v752 = vadd.f32 %v487, %v751
      %v753 = vand.u32 %v250, 4294901760
      %754 = vmatmul.f32.gmra.mxu0 %v753
      %v755 = vpop.f32.mrf.mxu0
      %v756 = vadd.f32 %v495, %v755
      %v757 = vand.u32 %v251, 4294901760
      %758 = vmatmul.f32.gmra.mxu0 %v757
      %v759 = vpop.f32.mrf.mxu0
      %v760 = vadd.f32 %v503, %v759
      %v761 = vand.u32 %v252, 4294901760
      %762 = vmatmul.f32.gmra.mxu0 %v761
      %v763 = vpop.f32.mrf.mxu0
      %v764 = vadd.f32 %v511, %v763
      %v765 = vand.u32 %v253, 4294901760
      %766 = vmatmul.f32.gmra.mxu0 %v765
      %v767 = vpop.f32.mrf.mxu0
      %v768 = vadd.f32 %v519, %v767
      %v769 = vand.u32 %v254, 4294901760
      %770 = vmatmul.f32.gmra.mxu0 %v769
      %v771 = vpop.f32.mrf.mxu0
      %v772 = vadd.f32 %v527, %v771
      %v773 = vand.u32 %v255, 4294901760
      %774 = vmatmul.f32.gmra.mxu0 %v773
      %v775 = vpop.f32.mrf.mxu0
      %v776 = vadd.f32 %v535, %v775
      %v777 = vand.u32 %v256, 4294901760
      %778 = vmatmul.f32.gmra.mxu0 %v777
      %v779 = vpop.f32.mrf.mxu0
      %v780 = vadd.f32 %v543, %v779
      %v781 = vand.u32 %v257, 4294901760
      %782 = vmatmul.f32.gmra.mxu0 %v781
      %v783 = vpop.f32.mrf.mxu0
      %v784 = vadd.f32 %v551, %v783
      %v785 = vand.u32 %v258, 4294901760
      %786 = vmatmul.f32.gmra.mxu0 %v785
      %v787 = vpop.f32.mrf.mxu0
      %v788 = vadd.f32 %v559, %v787
      %v789 = vand.u32 %v259, 4294901760
      %790 = vmatmul.f32.gmra.mxu0 %v789
      %v791 = vpop.f32.mrf.mxu0
      %v792 = vadd.f32 %v567, %v791
      %793 = vdwg.mxu0
      %v794 = vand.u32 %v275, 4294901760
      %v795 = vsub.f32 %v275, %v794
      %796 = vmatpush.msra.mxu0 %v795
      %v797 = vand.u32 %v274, 4294901760
      %v798 = vsub.f32 %v274, %v797
      %799 = vmatpush.msra.mxu0 %v798
      %v800 = vand.u32 %v273, 4294901760
      %v801 = vsub.f32 %v273, %v800
      %802 = vmatpush.msra.mxu0 %v801
      %v803 = vand.u32 %v272, 4294901760
      %v804 = vsub.f32 %v272, %v803
      %805 = vmatpush.msra.mxu0 %v804
      %v806 = vand.u32 %v271, 4294901760
      %v807 = vsub.f32 %v271, %v806
      %808 = vmatpush.msra.mxu0 %v807
      %v809 = vand.u32 %v270, 4294901760
      %v810 = vsub.f32 %v270, %v809
      %811 = vmatpush.msra.mxu0 %v810
      %v812 = vand.u32 %v269, 4294901760
      %v813 = vsub.f32 %v269, %v812
      %814 = vmatpush.msra.mxu0 %v813
      %v815 = vand.u32 %v268, 4294901760
      %v816 = vsub.f32 %v268, %v815
      %817 = vmatpush.msra.mxu0 %v816
      %v818 = vand.u32 %v267, 4294901760
      %v819 = vsub.f32 %v267, %v818
      %820 = vmatpush.msra.mxu0 %v819
      %v821 = vand.u32 %v266, 4294901760
      %v822 = vsub.f32 %v266, %v821
      %823 = vmatpush.msra.mxu0 %v822
      %v824 = vand.u32 %v265, 4294901760
      %v825 = vsub.f32 %v265, %v824
      %826 = vmatpush.msra.mxu0 %v825
      %v827 = vand.u32 %v264, 4294901760
      %v828 = vsub.f32 %v264, %v827
      %829 = vmatpush.msra.mxu0 %v828
      %v830 = vand.u32 %v263, 4294901760
      %v831 = vsub.f32 %v263, %v830
      %832 = vmatpush.msra.mxu0 %v831
      %v833 = vand.u32 %v262, 4294901760
      %v834 = vsub.f32 %v262, %v833
      %835 = vmatpush.msra.mxu0 %v834
      %v836 = vand.u32 %v261, 4294901760
      %v837 = vsub.f32 %v261, %v836
      %838 = vmatpush.msra.mxu0 %v837
      %v839 = vand.u32 %v260, 4294901760
      %v840 = vsub.f32 %v260, %v839
      %841 = vmatpush.msra.mxu0 %v840
      %v842 = vand.u32 %v228, 4294901760
      %v843 = vsub.f32 %v228, %v842
      %844 = vmatmul.f32.gmra.mxu0 %v843
      %v845 = vpop.f32.mrf.mxu0
      %v846 = vadd.f32 %v668, %v845
      %v847 = vand.u32 %v229, 4294901760
      %v848 = vsub.f32 %v229, %v847
      %849 = vmatmul.f32.gmra.mxu0 %v848
      %v850 = vpop.f32.mrf.mxu0
      %v851 = vadd.f32 %v672, %v850
      %v852 = vand.u32 %v230, 4294901760
      %v853 = vsub.f32 %v230, %v852
      %854 = vmatmul.f32.gmra.mxu0 %v853
      %v855 = vpop.f32.mrf.mxu0
      %v856 = vadd.f32 %v676, %v855
      %v857 = vand.u32 %v231, 4294901760
      %v858 = vsub.f32 %v231, %v857
      %859 = vmatmul.f32.gmra.mxu0 %v858
      %v860 = vpop.f32.mrf.mxu0
      %v861 = vadd.f32 %v680, %v860
      %v862 = vand.u32 %v232, 4294901760
      %v863 = vsub.f32 %v232, %v862
      %864 = vmatmul.f32.gmra.mxu0 %v863
      %v865 = vpop.f32.mrf.mxu0
      %v866 = vadd.f32 %v684, %v865
      %v867 = vand.u32 %v233, 4294901760
      %v868 = vsub.f32 %v233, %v867
      %869 = vmatmul.f32.gmra.mxu0 %v868
      %v870 = vpop.f32.mrf.mxu0
      %v871 = vadd.f32 %v688, %v870
      %v872 = vand.u32 %v234, 4294901760
      %v873 = vsub.f32 %v234, %v872
      %874 = vmatmul.f32.gmra.mxu0 %v873
      %v875 = vpop.f32.mrf.mxu0
      %v876 = vadd.f32 %v692, %v875
      %v877 = vand.u32 %v235, 4294901760
      %v878 = vsub.f32 %v235, %v877
      %879 = vmatmul.f32.gmra.mxu0 %v878
      %v880 = vpop.f32.mrf.mxu0
      %v881 = vadd.f32 %v696, %v880
      %v882 = vand.u32 %v236, 4294901760
      %v883 = vsub.f32 %v236, %v882
      %884 = vmatmul.f32.gmra.mxu0 %v883
      %v885 = vpop.f32.mrf.mxu0
      %v886 = vadd.f32 %v700, %v885
      %v887 = vand.u32 %v237, 4294901760
      %v888 = vsub.f32 %v237, %v887
      %889 = vmatmul.f32.gmra.mxu0 %v888
      %v890 = vpop.f32.mrf.mxu0
      %v891 = vadd.f32 %v704, %v890
      %v892 = vand.u32 %v238, 4294901760
      %v893 = vsub.f32 %v238, %v892
      %894 = vmatmul.f32.gmra.mxu0 %v893
      %v895 = vpop.f32.mrf.mxu0
      %v896 = vadd.f32 %v708, %v895
      %v897 = vand.u32 %v239, 4294901760
      %v898 = vsub.f32 %v239, %v897
      %899 = vmatmul.f32.gmra.mxu0 %v898
      %v900 = vpop.f32.mrf.mxu0
      %v901 = vadd.f32 %v712, %v900
      %v902 = vand.u32 %v240, 4294901760
      %v903 = vsub.f32 %v240, %v902
      %904 = vmatmul.f32.gmra.mxu0 %v903
      %v905 = vpop.f32.mrf.mxu0
      %v906 = vadd.f32 %v716, %v905
      %v907 = vand.u32 %v241, 4294901760
      %v908 = vsub.f32 %v241, %v907
      %909 = vmatmul.f32.gmra.mxu0 %v908
      %v910 = vpop.f32.mrf.mxu0
      %v911 = vadd.f32 %v720, %v910
      %v912 = vand.u32 %v242, 4294901760
      %v913 = vsub.f32 %v242, %v912
      %914 = vmatmul.f32.gmra.mxu0 %v913
      %v915 = vpop.f32.mrf.mxu0
      %v916 = vadd.f32 %v724, %v915
      %v917 = vand.u32 %v243, 4294901760
      %v918 = vsub.f32 %v243, %v917
      %919 = vmatmul.f32.gmra.mxu0 %v918
      %v920 = vpop.f32.mrf.mxu0
      %v921 = vadd.f32 %v728, %v920
      %v922 = vand.u32 %v244, 4294901760
      %v923 = vsub.f32 %v244, %v922
      %924 = vmatmul.f32.gmra.mxu0 %v923
      %v925 = vpop.f32.mrf.mxu0
      %v926 = vadd.f32 %v732, %v925
      %v927 = vand.u32 %v245, 4294901760
      %v928 = vsub.f32 %v245, %v927
      %929 = vmatmul.f32.gmra.mxu0 %v928
      %v930 = vpop.f32.mrf.mxu0
      %v931 = vadd.f32 %v736, %v930
      %v932 = vand.u32 %v246, 4294901760
      %v933 = vsub.f32 %v246, %v932
      %934 = vmatmul.f32.gmra.mxu0 %v933
      %v935 = vpop.f32.mrf.mxu0
      %v936 = vadd.f32 %v740, %v935
      %v937 = vand.u32 %v247, 4294901760
      %v938 = vsub.f32 %v247, %v937
      %939 = vmatmul.f32.gmra.mxu0 %v938
      %v940 = vpop.f32.mrf.mxu0
      %v941 = vadd.f32 %v744, %v940
      %v942 = vand.u32 %v248, 4294901760
      %v943 = vsub.f32 %v248, %v942
      %944 = vmatmul.f32.gmra.mxu0 %v943
      %v945 = vpop.f32.mrf.mxu0
      %v946 = vadd.f32 %v748, %v945
      %v947 = vand.u32 %v249, 4294901760
      %v948 = vsub.f32 %v249, %v947
      %949 = vmatmul.f32.gmra.mxu0 %v948
      %v950 = vpop.f32.mrf.mxu0
      %v951 = vadd.f32 %v752, %v950
      %v952 = vand.u32 %v250, 4294901760
      %v953 = vsub.f32 %v250, %v952
      %954 = vmatmul.f32.gmra.mxu0 %v953
      %v955 = vpop.f32.mrf.mxu0
      %v956 = vadd.f32 %v756, %v955
      %v957 = vand.u32 %v251, 4294901760
      %v958 = vsub.f32 %v251, %v957
      %959 = vmatmul.f32.gmra.mxu0 %v958
      %v960 = vpop.f32.mrf.mxu0
      %v961 = vadd.f32 %v760, %v960
      %v962 = vand.u32 %v252, 4294901760
      %v963 = vsub.f32 %v252, %v962
      %964 = vmatmul.f32.gmra.mxu0 %v963
      %v965 = vpop.f32.mrf.mxu0
      %v966 = vadd.f32 %v764, %v965
      %v967 = vand.u32 %v253, 4294901760
      %v968 = vsub.f32 %v253, %v967
      %969 = vmatmul.f32.gmra.mxu0 %v968
      %v970 = vpop.f32.mrf.mxu0
      %v971 = vadd.f32 %v768, %v970
      %v972 = vand.u32 %v254, 4294901760
      %v973 = vsub.f32 %v254, %v972
      %974 = vmatmul.f32.gmra.mxu0 %v973
      %v975 = vpop.f32.mrf.mxu0
      %v976 = vadd.f32 %v772, %v975
      %v977 = vand.u32 %v255, 4294901760
      %v978 = vsub.f32 %v255, %v977
      %979 = vmatmul.f32.gmra.mxu0 %v978
      %v980 = vpop.f32.mrf.mxu0
      %v981 = vadd.f32 %v776, %v980
      %v982 = vand.u32 %v256, 4294901760
      %v983 = vsub.f32 %v256, %v982
      %984 = vmatmul.f32.gmra.mxu0 %v983
      %v985 = vpop.f32.mrf.mxu0
      %v986 = vadd.f32 %v780, %v985
      %v987 = vand.u32 %v257, 4294901760
      %v988 = vsub.f32 %v257, %v987
      %989 = vmatmul.f32.gmra.mxu0 %v988
      %v990 = vpop.f32.mrf.mxu0
      %v991 = vadd.f32 %v784, %v990
      %v992 = vand.u32 %v258, 4294901760
      %v993 = vsub.f32 %v258, %v992
      %994 = vmatmul.f32.gmra.mxu0 %v993
      %v995 = vpop.f32.mrf.mxu0
      %v996 = vadd.f32 %v788, %v995
      %v997 = vand.u32 %v259, 4294901760
      %v998 = vsub.f32 %v259, %v997
      %999 = vmatmul.f32.gmra.mxu0 %v998
      %v1000 = vpop.f32.mrf.mxu0
      %v1001 = vadd.f32 %v792, %v1000
      %1002 = vdwg.mxu0
      %v1003 = vand.u32 %v275, 4294901760
      %1004 = vmatpush.msra.mxu0 %v1003
      %v1005 = vand.u32 %v274, 4294901760
      %1006 = vmatpush.msra.mxu0 %v1005
      %v1007 = vand.u32 %v273, 4294901760
      %1008 = vmatpush.msra.mxu0 %v1007
      %v1009 = vand.u32 %v272, 4294901760
      %1010 = vmatpush.msra.mxu0 %v1009
      %v1011 = vand.u32 %v271, 4294901760
      %1012 = vmatpush.msra.mxu0 %v1011
      %v1013 = vand.u32 %v270, 4294901760
      %1014 = vmatpush.msra.mxu0 %v1013
      %v1015 = vand.u32 %v269, 4294901760
      %1016 = vmatpush.msra.mxu0 %v1015
      %v1017 = vand.u32 %v268, 4294901760
      %1018 = vmatpush.msra.mxu0 %v1017
      %v1019 = vand.u32 %v267, 4294901760
      %1020 = vmatpush.msra.mxu0 %v1019
      %v1021 = vand.u32 %v266, 4294901760
      %1022 = vmatpush.msra.mxu0 %v1021
      %v1023 = vand.u32 %v265, 4294901760
      %1024 = vmatpush.msra.mxu0 %v1023
      %v1025 = vand.u32 %v264, 4294901760
      %1026 = vmatpush.msra.mxu0 %v1025
      %v1027 = vand.u32 %v263, 4294901760
      %1028 = vmatpush.msra.mxu0 %v1027
      %v1029 = vand.u32 %v262, 4294901760
      %1030 = vmatpush.msra.mxu0 %v1029
      %v1031 = vand.u32 %v261, 4294901760
      %1032 = vmatpush.msra.mxu0 %v1031
      %v1033 = vand.u32 %v260, 4294901760
      %1034 = vmatpush.msra.mxu0 %v1033
      %v1035 = vand.u32 %v228, 4294901760
      %v1036 = vsub.f32 %v228, %v1035
      %v1037 = vand.u32 %v1036, 4294901760
      %1038 = vmatmul.f32.gmra.mxu0 %v1037
      %v1039 = vpop.f32.mrf.mxu0
      %v1040 = vadd.f32 %v846, %v1039
      %v1041 = vand.u32 %v229, 4294901760
      %v1042 = vsub.f32 %v229, %v1041
      %v1043 = vand.u32 %v1042, 4294901760
      %1044 = vmatmul.f32.gmra.mxu0 %v1043
      %v1045 = vpop.f32.mrf.mxu0
      %v1046 = vadd.f32 %v851, %v1045
      %v1047 = vand.u32 %v230, 4294901760
      %v1048 = vsub.f32 %v230, %v1047
      %v1049 = vand.u32 %v1048, 4294901760
      %1050 = vmatmul.f32.gmra.mxu0 %v1049
      %v1051 = vpop.f32.mrf.mxu0
      %v1052 = vadd.f32 %v856, %v1051
      %v1053 = vand.u32 %v231, 4294901760
      %v1054 = vsub.f32 %v231, %v1053
      %v1055 = vand.u32 %v1054, 4294901760
      %1056 = vmatmul.f32.gmra.mxu0 %v1055
      %v1057 = vpop.f32.mrf.mxu0
      %v1058 = vadd.f32 %v861, %v1057
      %v1059 = vand.u32 %v232, 4294901760
      %v1060 = vsub.f32 %v232, %v1059
      %v1061 = vand.u32 %v1060, 4294901760
      %1062 = vmatmul.f32.gmra.mxu0 %v1061
      %v1063 = vpop.f32.mrf.mxu0
      %v1064 = vadd.f32 %v866, %v1063
      %v1065 = vand.u32 %v233, 4294901760
      %v1066 = vsub.f32 %v233, %v1065
      %v1067 = vand.u32 %v1066, 4294901760
      %1068 = vmatmul.f32.gmra.mxu0 %v1067
      %v1069 = vpop.f32.mrf.mxu0
      %v1070 = vadd.f32 %v871, %v1069
      %v1071 = vand.u32 %v234, 4294901760
      %v1072 = vsub.f32 %v234, %v1071
      %v1073 = vand.u32 %v1072, 4294901760
      %1074 = vmatmul.f32.gmra.mxu0 %v1073
      %v1075 = vpop.f32.mrf.mxu0
      %v1076 = vadd.f32 %v876, %v1075
      %v1077 = vand.u32 %v235, 4294901760
      %v1078 = vsub.f32 %v235, %v1077
      %v1079 = vand.u32 %v1078, 4294901760
      %1080 = vmatmul.f32.gmra.mxu0 %v1079
      %v1081 = vpop.f32.mrf.mxu0
      %v1082 = vadd.f32 %v881, %v1081
      %v1083 = vand.u32 %v236, 4294901760
      %v1084 = vsub.f32 %v236, %v1083
      %v1085 = vand.u32 %v1084, 4294901760
      %1086 = vmatmul.f32.gmra.mxu0 %v1085
      %v1087 = vpop.f32.mrf.mxu0
      %v1088 = vadd.f32 %v886, %v1087
      %v1089 = vand.u32 %v237, 4294901760
      %v1090 = vsub.f32 %v237, %v1089
      %v1091 = vand.u32 %v1090, 4294901760
      %1092 = vmatmul.f32.gmra.mxu0 %v1091
      %v1093 = vpop.f32.mrf.mxu0
      %v1094 = vadd.f32 %v891, %v1093
      %v1095 = vand.u32 %v238, 4294901760
      %v1096 = vsub.f32 %v238, %v1095
      %v1097 = vand.u32 %v1096, 4294901760
      %1098 = vmatmul.f32.gmra.mxu0 %v1097
      %v1099 = vpop.f32.mrf.mxu0
      %v1100 = vadd.f32 %v896, %v1099
      %v1101 = vand.u32 %v239, 4294901760
      %v1102 = vsub.f32 %v239, %v1101
      %v1103 = vand.u32 %v1102, 4294901760
      %1104 = vmatmul.f32.gmra.mxu0 %v1103
      %v1105 = vpop.f32.mrf.mxu0
      %v1106 = vadd.f32 %v901, %v1105
      %v1107 = vand.u32 %v240, 4294901760
      %v1108 = vsub.f32 %v240, %v1107
      %v1109 = vand.u32 %v1108, 4294901760
      %1110 = vmatmul.f32.gmra.mxu0 %v1109
      %v1111 = vpop.f32.mrf.mxu0
      %v1112 = vadd.f32 %v906, %v1111
      %v1113 = vand.u32 %v241, 4294901760
      %v1114 = vsub.f32 %v241, %v1113
      %v1115 = vand.u32 %v1114, 4294901760
      %1116 = vmatmul.f32.gmra.mxu0 %v1115
      %v1117 = vpop.f32.mrf.mxu0
      %v1118 = vadd.f32 %v911, %v1117
      %v1119 = vand.u32 %v242, 4294901760
      %v1120 = vsub.f32 %v242, %v1119
      %v1121 = vand.u32 %v1120, 4294901760
      %1122 = vmatmul.f32.gmra.mxu0 %v1121
      %v1123 = vpop.f32.mrf.mxu0
      %v1124 = vadd.f32 %v916, %v1123
      %v1125 = vand.u32 %v243, 4294901760
      %v1126 = vsub.f32 %v243, %v1125
      %v1127 = vand.u32 %v1126, 4294901760
      %1128 = vmatmul.f32.gmra.mxu0 %v1127
      %v1129 = vpop.f32.mrf.mxu0
      %v1130 = vadd.f32 %v921, %v1129
      %v1131 = vand.u32 %v244, 4294901760
      %v1132 = vsub.f32 %v244, %v1131
      %v1133 = vand.u32 %v1132, 4294901760
      %1134 = vmatmul.f32.gmra.mxu0 %v1133
      %v1135 = vpop.f32.mrf.mxu0
      %v1136 = vadd.f32 %v926, %v1135
      %v1137 = vand.u32 %v245, 4294901760
      %v1138 = vsub.f32 %v245, %v1137
      %v1139 = vand.u32 %v1138, 4294901760
      %1140 = vmatmul.f32.gmra.mxu0 %v1139
      %v1141 = vpop.f32.mrf.mxu0
      %v1142 = vadd.f32 %v931, %v1141
      %v1143 = vand.u32 %v246, 4294901760
      %v1144 = vsub.f32 %v246, %v1143
      %v1145 = vand.u32 %v1144, 4294901760
      %1146 = vmatmul.f32.gmra.mxu0 %v1145
      %v1147 = vpop.f32.mrf.mxu0
      %v1148 = vadd.f32 %v936, %v1147
      %v1149 = vand.u32 %v247, 4294901760
      %v1150 = vsub.f32 %v247, %v1149
      %v1151 = vand.u32 %v1150, 4294901760
      %1152 = vmatmul.f32.gmra.mxu0 %v1151
      %v1153 = vpop.f32.mrf.mxu0
      %v1154 = vadd.f32 %v941, %v1153
      %v1155 = vand.u32 %v248, 4294901760
      %v1156 = vsub.f32 %v248, %v1155
      %v1157 = vand.u32 %v1156, 4294901760
      %1158 = vmatmul.f32.gmra.mxu0 %v1157
      %v1159 = vpop.f32.mrf.mxu0
      %v1160 = vadd.f32 %v946, %v1159
      %v1161 = vand.u32 %v249, 4294901760
      %v1162 = vsub.f32 %v249, %v1161
      %v1163 = vand.u32 %v1162, 4294901760
      %1164 = vmatmul.f32.gmra.mxu0 %v1163
      %v1165 = vpop.f32.mrf.mxu0
      %v1166 = vadd.f32 %v951, %v1165
      %v1167 = vand.u32 %v250, 4294901760
      %v1168 = vsub.f32 %v250, %v1167
      %v1169 = vand.u32 %v1168, 4294901760
      %1170 = vmatmul.f32.gmra.mxu0 %v1169
      %v1171 = vpop.f32.mrf.mxu0
      %v1172 = vadd.f32 %v956, %v1171
      %v1173 = vand.u32 %v251, 4294901760
      %v1174 = vsub.f32 %v251, %v1173
      %v1175 = vand.u32 %v1174, 4294901760
      %1176 = vmatmul.f32.gmra.mxu0 %v1175
      %v1177 = vpop.f32.mrf.mxu0
      %v1178 = vadd.f32 %v961, %v1177
      %v1179 = vand.u32 %v252, 4294901760
      %v1180 = vsub.f32 %v252, %v1179
      %v1181 = vand.u32 %v1180, 4294901760
      %1182 = vmatmul.f32.gmra.mxu0 %v1181
      %v1183 = vpop.f32.mrf.mxu0
      %v1184 = vadd.f32 %v966, %v1183
      %v1185 = vand.u32 %v253, 4294901760
      %v1186 = vsub.f32 %v253, %v1185
      %v1187 = vand.u32 %v1186, 4294901760
      %1188 = vmatmul.f32.gmra.mxu0 %v1187
      %v1189 = vpop.f32.mrf.mxu0
      %v1190 = vadd.f32 %v971, %v1189
      %v1191 = vand.u32 %v254, 4294901760
      %v1192 = vsub.f32 %v254, %v1191
      %v1193 = vand.u32 %v1192, 4294901760
      %1194 = vmatmul.f32.gmra.mxu0 %v1193
      %v1195 = vpop.f32.mrf.mxu0
      %v1196 = vadd.f32 %v976, %v1195
      %v1197 = vand.u32 %v255, 4294901760
      %v1198 = vsub.f32 %v255, %v1197
      %v1199 = vand.u32 %v1198, 4294901760
      %1200 = vmatmul.f32.gmra.mxu0 %v1199
      %v1201 = vpop.f32.mrf.mxu0
      %v1202 = vadd.f32 %v981, %v1201
      %v1203 = vand.u32 %v256, 4294901760
      %v1204 = vsub.f32 %v256, %v1203
      %v1205 = vand.u32 %v1204, 4294901760
      %1206 = vmatmul.f32.gmra.mxu0 %v1205
      %v1207 = vpop.f32.mrf.mxu0
      %v1208 = vadd.f32 %v986, %v1207
      %v1209 = vand.u32 %v257, 4294901760
      %v1210 = vsub.f32 %v257, %v1209
      %v1211 = vand.u32 %v1210, 4294901760
      %1212 = vmatmul.f32.gmra.mxu0 %v1211
      %v1213 = vpop.f32.mrf.mxu0
      %v1214 = vadd.f32 %v991, %v1213
      %v1215 = vand.u32 %v258, 4294901760
      %v1216 = vsub.f32 %v258, %v1215
      %v1217 = vand.u32 %v1216, 4294901760
      %1218 = vmatmul.f32.gmra.mxu0 %v1217
      %v1219 = vpop.f32.mrf.mxu0
      %v1220 = vadd.f32 %v996, %v1219
      %v1221 = vand.u32 %v259, 4294901760
      %v1222 = vsub.f32 %v259, %v1221
      %v1223 = vand.u32 %v1222, 4294901760
      %1224 = vmatmul.f32.gmra.mxu0 %v1223
      %v1225 = vpop.f32.mrf.mxu0
      %v1226 = vadd.f32 %v1001, %v1225
      %1227 = vdwg.mxu0
      %v1228 = vand.u32 %v275, 4294901760
      %v1229 = vsub.f32 %v275, %v1228
      %v1230 = vand.u32 %v1229, 4294901760
      %1231 = vmatpush.msra.mxu0 %v1230
      %v1232 = vand.u32 %v274, 4294901760
      %v1233 = vsub.f32 %v274, %v1232
      %v1234 = vand.u32 %v1233, 4294901760
      %1235 = vmatpush.msra.mxu0 %v1234
      %v1236 = vand.u32 %v273, 4294901760
      %v1237 = vsub.f32 %v273, %v1236
      %v1238 = vand.u32 %v1237, 4294901760
      %1239 = vmatpush.msra.mxu0 %v1238
      %v1240 = vand.u32 %v272, 4294901760
      %v1241 = vsub.f32 %v272, %v1240
      %v1242 = vand.u32 %v1241, 4294901760
      %1243 = vmatpush.msra.mxu0 %v1242
      %v1244 = vand.u32 %v271, 4294901760
      %v1245 = vsub.f32 %v271, %v1244
      %v1246 = vand.u32 %v1245, 4294901760
      %1247 = vmatpush.msra.mxu0 %v1246
      %v1248 = vand.u32 %v270, 4294901760
      %v1249 = vsub.f32 %v270, %v1248
      %v1250 = vand.u32 %v1249, 4294901760
      %1251 = vmatpush.msra.mxu0 %v1250
      %v1252 = vand.u32 %v269, 4294901760
      %v1253 = vsub.f32 %v269, %v1252
      %v1254 = vand.u32 %v1253, 4294901760
      %1255 = vmatpush.msra.mxu0 %v1254
      %v1256 = vand.u32 %v268, 4294901760
      %v1257 = vsub.f32 %v268, %v1256
      %v1258 = vand.u32 %v1257, 4294901760
      %1259 = vmatpush.msra.mxu0 %v1258
      %v1260 = vand.u32 %v267, 4294901760
      %v1261 = vsub.f32 %v267, %v1260
      %v1262 = vand.u32 %v1261, 4294901760
      %1263 = vmatpush.msra.mxu0 %v1262
      %v1264 = vand.u32 %v266, 4294901760
      %v1265 = vsub.f32 %v266, %v1264
      %v1266 = vand.u32 %v1265, 4294901760
      %1267 = vmatpush.msra.mxu0 %v1266
      %v1268 = vand.u32 %v265, 4294901760
      %v1269 = vsub.f32 %v265, %v1268
      %v1270 = vand.u32 %v1269, 4294901760
      %1271 = vmatpush.msra.mxu0 %v1270
      %v1272 = vand.u32 %v264, 4294901760
      %v1273 = vsub.f32 %v264, %v1272
      %v1274 = vand.u32 %v1273, 4294901760
      %1275 = vmatpush.msra.mxu0 %v1274
      %v1276 = vand.u32 %v263, 4294901760
      %v1277 = vsub.f32 %v263, %v1276
      %v1278 = vand.u32 %v1277, 4294901760
      %1279 = vmatpush.msra.mxu0 %v1278
      %v1280 = vand.u32 %v262, 4294901760
      %v1281 = vsub.f32 %v262, %v1280
      %v1282 = vand.u32 %v1281, 4294901760
      %1283 = vmatpush.msra.mxu0 %v1282
      %v1284 = vand.u32 %v261, 4294901760
      %v1285 = vsub.f32 %v261, %v1284
      %v1286 = vand.u32 %v1285, 4294901760
      %1287 = vmatpush.msra.mxu0 %v1286
      %v1288 = vand.u32 %v260, 4294901760
      %v1289 = vsub.f32 %v260, %v1288
      %v1290 = vand.u32 %v1289, 4294901760
      %1291 = vmatpush.msra.mxu0 %v1290
      %v1292 = vand.u32 %v228, 4294901760
      %1293 = vmatmul.f32.gmra.mxu0 %v1292
      %v1294 = vpop.f32.mrf.mxu0
      %v1295 = vadd.f32 %v1040, %v1294
      %v1296 = vand.u32 %v229, 4294901760
      %1297 = vmatmul.f32.gmra.mxu0 %v1296
      %v1298 = vpop.f32.mrf.mxu0
      %v1299 = vadd.f32 %v1046, %v1298
      %v1300 = vand.u32 %v230, 4294901760
      %1301 = vmatmul.f32.gmra.mxu0 %v1300
      %v1302 = vpop.f32.mrf.mxu0
      %v1303 = vadd.f32 %v1052, %v1302
      %v1304 = vand.u32 %v231, 4294901760
      %1305 = vmatmul.f32.gmra.mxu0 %v1304
      %v1306 = vpop.f32.mrf.mxu0
      %v1307 = vadd.f32 %v1058, %v1306
      %v1308 = vand.u32 %v232, 4294901760
      %1309 = vmatmul.f32.gmra.mxu0 %v1308
      %v1310 = vpop.f32.mrf.mxu0
      %v1311 = vadd.f32 %v1064, %v1310
      %v1312 = vand.u32 %v233, 4294901760
      %1313 = vmatmul.f32.gmra.mxu0 %v1312
      %v1314 = vpop.f32.mrf.mxu0
      %v1315 = vadd.f32 %v1070, %v1314
      %v1316 = vand.u32 %v234, 4294901760
      %1317 = vmatmul.f32.gmra.mxu0 %v1316
      %v1318 = vpop.f32.mrf.mxu0
      %v1319 = vadd.f32 %v1076, %v1318
      %v1320 = vand.u32 %v235, 4294901760
      %1321 = vmatmul.f32.gmra.mxu0 %v1320
      %v1322 = vpop.f32.mrf.mxu0
      %v1323 = vadd.f32 %v1082, %v1322
      %v1324 = vand.u32 %v236, 4294901760
      %1325 = vmatmul.f32.gmra.mxu0 %v1324
      %v1326 = vpop.f32.mrf.mxu0
      %v1327 = vadd.f32 %v1088, %v1326
      %v1328 = vand.u32 %v237, 4294901760
      %1329 = vmatmul.f32.gmra.mxu0 %v1328
      %v1330 = vpop.f32.mrf.mxu0
      %v1331 = vadd.f32 %v1094, %v1330
      %v1332 = vand.u32 %v238, 4294901760
      %1333 = vmatmul.f32.gmra.mxu0 %v1332
      %v1334 = vpop.f32.mrf.mxu0
      %v1335 = vadd.f32 %v1100, %v1334
      %v1336 = vand.u32 %v239, 4294901760
      %1337 = vmatmul.f32.gmra.mxu0 %v1336
      %v1338 = vpop.f32.mrf.mxu0
      %v1339 = vadd.f32 %v1106, %v1338
      %v1340 = vand.u32 %v240, 4294901760
      %1341 = vmatmul.f32.gmra.mxu0 %v1340
      %v1342 = vpop.f32.mrf.mxu0
      %v1343 = vadd.f32 %v1112, %v1342
      %v1344 = vand.u32 %v241, 4294901760
      %1345 = vmatmul.f32.gmra.mxu0 %v1344
      %v1346 = vpop.f32.mrf.mxu0
      %v1347 = vadd.f32 %v1118, %v1346
      %v1348 = vand.u32 %v242, 4294901760
      %1349 = vmatmul.f32.gmra.mxu0 %v1348
      %v1350 = vpop.f32.mrf.mxu0
      %v1351 = vadd.f32 %v1124, %v1350
      %v1352 = vand.u32 %v243, 4294901760
      %1353 = vmatmul.f32.gmra.mxu0 %v1352
      %v1354 = vpop.f32.mrf.mxu0
      %v1355 = vadd.f32 %v1130, %v1354
      %v1356 = vand.u32 %v244, 4294901760
      %1357 = vmatmul.f32.gmra.mxu0 %v1356
      %v1358 = vpop.f32.mrf.mxu0
      %v1359 = vadd.f32 %v1136, %v1358
      %v1360 = vand.u32 %v245, 4294901760
      %1361 = vmatmul.f32.gmra.mxu0 %v1360
      %v1362 = vpop.f32.mrf.mxu0
      %v1363 = vadd.f32 %v1142, %v1362
      %v1364 = vand.u32 %v246, 4294901760
      %1365 = vmatmul.f32.gmra.mxu0 %v1364
      %v1366 = vpop.f32.mrf.mxu0
      %v1367 = vadd.f32 %v1148, %v1366
      %v1368 = vand.u32 %v247, 4294901760
      %1369 = vmatmul.f32.gmra.mxu0 %v1368
      %v1370 = vpop.f32.mrf.mxu0
      %v1371 = vadd.f32 %v1154, %v1370
      %v1372 = vand.u32 %v248, 4294901760
      %1373 = vmatmul.f32.gmra.mxu0 %v1372
      %v1374 = vpop.f32.mrf.mxu0
      %v1375 = vadd.f32 %v1160, %v1374
      %v1376 = vand.u32 %v249, 4294901760
      %1377 = vmatmul.f32.gmra.mxu0 %v1376
      %v1378 = vpop.f32.mrf.mxu0
      %v1379 = vadd.f32 %v1166, %v1378
      %v1380 = vand.u32 %v250, 4294901760
      %1381 = vmatmul.f32.gmra.mxu0 %v1380
      %v1382 = vpop.f32.mrf.mxu0
      %v1383 = vadd.f32 %v1172, %v1382
      %v1384 = vand.u32 %v251, 4294901760
      %1385 = vmatmul.f32.gmra.mxu0 %v1384
      %v1386 = vpop.f32.mrf.mxu0
      %v1387 = vadd.f32 %v1178, %v1386
      %v1388 = vand.u32 %v252, 4294901760
      %1389 = vmatmul.f32.gmra.mxu0 %v1388
      %v1390 = vpop.f32.mrf.mxu0
      %v1391 = vadd.f32 %v1184, %v1390
      %v1392 = vand.u32 %v253, 4294901760
      %1393 = vmatmul.f32.gmra.mxu0 %v1392
      %v1394 = vpop.f32.mrf.mxu0
      %v1395 = vadd.f32 %v1190, %v1394
      %v1396 = vand.u32 %v254, 4294901760
      %1397 = vmatmul.f32.gmra.mxu0 %v1396
      %v1398 = vpop.f32.mrf.mxu0
      %v1399 = vadd.f32 %v1196, %v1398
      %v1400 = vand.u32 %v255, 4294901760
      %1401 = vmatmul.f32.gmra.mxu0 %v1400
      %v1402 = vpop.f32.mrf.mxu0
      %v1403 = vadd.f32 %v1202, %v1402
      %v1404 = vand.u32 %v256, 4294901760
      %1405 = vmatmul.f32.gmra.mxu0 %v1404
      %v1406 = vpop.f32.mrf.mxu0
      %v1407 = vadd.f32 %v1208, %v1406
      %v1408 = vand.u32 %v257, 4294901760
      %1409 = vmatmul.f32.gmra.mxu0 %v1408
      %v1410 = vpop.f32.mrf.mxu0
      %v1411 = vadd.f32 %v1214, %v1410
      %v1412 = vand.u32 %v258, 4294901760
      %1413 = vmatmul.f32.gmra.mxu0 %v1412
      %v1414 = vpop.f32.mrf.mxu0
      %v1415 = vadd.f32 %v1220, %v1414
      %v1416 = vand.u32 %v259, 4294901760
      %1417 = vmatmul.f32.gmra.mxu0 %v1416
      %v1418 = vpop.f32.mrf.mxu0
      %v1419 = vadd.f32 %v1226, %v1418
      %1420 = vdwg.mxu0
      %v1421 = vand.u32 %v275, 4294901760
      %1422 = vmatpush.msra.mxu0 %v1421
      %v1423 = vand.u32 %v274, 4294901760
      %1424 = vmatpush.msra.mxu0 %v1423
      %v1425 = vand.u32 %v273, 4294901760
      %1426 = vmatpush.msra.mxu0 %v1425
      %v1427 = vand.u32 %v272, 4294901760
      %1428 = vmatpush.msra.mxu0 %v1427
      %v1429 = vand.u32 %v271, 4294901760
      %1430 = vmatpush.msra.mxu0 %v1429
      %v1431 = vand.u32 %v270, 4294901760
      %1432 = vmatpush.msra.mxu0 %v1431
      %v1433 = vand.u32 %v269, 4294901760
      %1434 = vmatpush.msra.mxu0 %v1433
      %v1435 = vand.u32 %v268, 4294901760
      %1436 = vmatpush.msra.mxu0 %v1435
      %v1437 = vand.u32 %v267, 4294901760
      %1438 = vmatpush.msra.mxu0 %v1437
      %v1439 = vand.u32 %v266, 4294901760
      %1440 = vmatpush.msra.mxu0 %v1439
      %v1441 = vand.u32 %v265, 4294901760
      %1442 = vmatpush.msra.mxu0 %v1441
      %v1443 = vand.u32 %v264, 4294901760
      %1444 = vmatpush.msra.mxu0 %v1443
      %v1445 = vand.u32 %v263, 4294901760
      %1446 = vmatpush.msra.mxu0 %v1445
      %v1447 = vand.u32 %v262, 4294901760
      %1448 = vmatpush.msra.mxu0 %v1447
      %v1449 = vand.u32 %v261, 4294901760
      %1450 = vmatpush.msra.mxu0 %v1449
      %v1451 = vand.u32 %v260, 4294901760
      %1452 = vmatpush.msra.mxu0 %v1451
      %v1453 = vand.u32 %v228, 4294901760
      %1454 = vmatmul.f32.gmra.mxu0 %v1453
      %v1455 = vpop.f32.mrf.mxu0
      %v1456 = vadd.f32 %v1295, %v1455
      %v1457 = vand.u32 %v229, 4294901760
      %1458 = vmatmul.f32.gmra.mxu0 %v1457
      %v1459 = vpop.f32.mrf.mxu0
      %v1460 = vadd.f32 %v1299, %v1459
      %v1461 = vand.u32 %v230, 4294901760
      %1462 = vmatmul.f32.gmra.mxu0 %v1461
      %v1463 = vpop.f32.mrf.mxu0
      %v1464 = vadd.f32 %v1303, %v1463
      %v1465 = vand.u32 %v231, 4294901760
      %1466 = vmatmul.f32.gmra.mxu0 %v1465
      %v1467 = vpop.f32.mrf.mxu0
      %v1468 = vadd.f32 %v1307, %v1467
      %v1469 = vand.u32 %v232, 4294901760
      %1470 = vmatmul.f32.gmra.mxu0 %v1469
      %v1471 = vpop.f32.mrf.mxu0
      %v1472 = vadd.f32 %v1311, %v1471
      %v1473 = vand.u32 %v233, 4294901760
      %1474 = vmatmul.f32.gmra.mxu0 %v1473
      %v1475 = vpop.f32.mrf.mxu0
      %v1476 = vadd.f32 %v1315, %v1475
      %v1477 = vand.u32 %v234, 4294901760
      %1478 = vmatmul.f32.gmra.mxu0 %v1477
      %v1479 = vpop.f32.mrf.mxu0
      %v1480 = vadd.f32 %v1319, %v1479
      %v1481 = vand.u32 %v235, 4294901760
      %1482 = vmatmul.f32.gmra.mxu0 %v1481
      %v1483 = vpop.f32.mrf.mxu0
      %v1484 = vadd.f32 %v1323, %v1483
      %v1485 = vand.u32 %v236, 4294901760
      %1486 = vmatmul.f32.gmra.mxu0 %v1485
      %v1487 = vpop.f32.mrf.mxu0
      %v1488 = vadd.f32 %v1327, %v1487
      %v1489 = vand.u32 %v237, 4294901760
      %1490 = vmatmul.f32.gmra.mxu0 %v1489
      %v1491 = vpop.f32.mrf.mxu0
      %v1492 = vadd.f32 %v1331, %v1491
      %v1493 = vand.u32 %v238, 4294901760
      %1494 = vmatmul.f32.gmra.mxu0 %v1493
      %v1495 = vpop.f32.mrf.mxu0
      %v1496 = vadd.f32 %v1335, %v1495
      %v1497 = vand.u32 %v239, 4294901760
      %1498 = vmatmul.f32.gmra.mxu0 %v1497
      %v1499 = vpop.f32.mrf.mxu0
      %v1500 = vadd.f32 %v1339, %v1499
      %v1501 = vand.u32 %v240, 4294901760
      %1502 = vmatmul.f32.gmra.mxu0 %v1501
      %v1503 = vpop.f32.mrf.mxu0
      %v1504 = vadd.f32 %v1343, %v1503
      %v1505 = vand.u32 %v241, 4294901760
      %1506 = vmatmul.f32.gmra.mxu0 %v1505
      %v1507 = vpop.f32.mrf.mxu0
      %v1508 = vadd.f32 %v1347, %v1507
      %v1509 = vand.u32 %v242, 4294901760
      %1510 = vmatmul.f32.gmra.mxu0 %v1509
      %v1511 = vpop.f32.mrf.mxu0
      %v1512 = vadd.f32 %v1351, %v1511
      %v1513 = vand.u32 %v243, 4294901760
      %1514 = vmatmul.f32.gmra.mxu0 %v1513
      %v1515 = vpop.f32.mrf.mxu0
      %v1516 = vadd.f32 %v1355, %v1515
      %v1517 = vand.u32 %v244, 4294901760
      %1518 = vmatmul.f32.gmra.mxu0 %v1517
      %v1519 = vpop.f32.mrf.mxu0
      %v1520 = vadd.f32 %v1359, %v1519
      %v1521 = vand.u32 %v245, 4294901760
      %1522 = vmatmul.f32.gmra.mxu0 %v1521
      %v1523 = vpop.f32.mrf.mxu0
      %v1524 = vadd.f32 %v1363, %v1523
      %v1525 = vand.u32 %v246, 4294901760
      %1526 = vmatmul.f32.gmra.mxu0 %v1525
      %v1527 = vpop.f32.mrf.mxu0
      %v1528 = vadd.f32 %v1367, %v1527
      %v1529 = vand.u32 %v247, 4294901760
      %1530 = vmatmul.f32.gmra.mxu0 %v1529
      %v1531 = vpop.f32.mrf.mxu0
      %v1532 = vadd.f32 %v1371, %v1531
      %v1533 = vand.u32 %v248, 4294901760
      %1534 = vmatmul.f32.gmra.mxu0 %v1533
      %v1535 = vpop.f32.mrf.mxu0
      %v1536 = vadd.f32 %v1375, %v1535
      %v1537 = vand.u32 %v249, 4294901760
      %1538 = vmatmul.f32.gmra.mxu0 %v1537
      %v1539 = vpop.f32.mrf.mxu0
      %v1540 = vadd.f32 %v1379, %v1539
      %v1541 = vand.u32 %v250, 4294901760
      %1542 = vmatmul.f32.gmra.mxu0 %v1541
      %v1543 = vpop.f32.mrf.mxu0
      %v1544 = vadd.f32 %v1383, %v1543
      %v1545 = vand.u32 %v251, 4294901760
      %1546 = vmatmul.f32.gmra.mxu0 %v1545
      %v1547 = vpop.f32.mrf.mxu0
      %v1548 = vadd.f32 %v1387, %v1547
      %v1549 = vand.u32 %v252, 4294901760
      %1550 = vmatmul.f32.gmra.mxu0 %v1549
      %v1551 = vpop.f32.mrf.mxu0
      %v1552 = vadd.f32 %v1391, %v1551
      %v1553 = vand.u32 %v253, 4294901760
      %1554 = vmatmul.f32.gmra.mxu0 %v1553
      %v1555 = vpop.f32.mrf.mxu0
      %v1556 = vadd.f32 %v1395, %v1555
      %v1557 = vand.u32 %v254, 4294901760
      %1558 = vmatmul.f32.gmra.mxu0 %v1557
      %v1559 = vpop.f32.mrf.mxu0
      %v1560 = vadd.f32 %v1399, %v1559
      %v1561 = vand.u32 %v255, 4294901760
      %1562 = vmatmul.f32.gmra.mxu0 %v1561
      %v1563 = vpop.f32.mrf.mxu0
      %v1564 = vadd.f32 %v1403, %v1563
      %v1565 = vand.u32 %v256, 4294901760
      %1566 = vmatmul.f32.gmra.mxu0 %v1565
      %v1567 = vpop.f32.mrf.mxu0
      %v1568 = vadd.f32 %v1407, %v1567
      %v1569 = vand.u32 %v257, 4294901760
      %1570 = vmatmul.f32.gmra.mxu0 %v1569
      %v1571 = vpop.f32.mrf.mxu0
      %v1572 = vadd.f32 %v1411, %v1571
      %v1573 = vand.u32 %v258, 4294901760
      %1574 = vmatmul.f32.gmra.mxu0 %v1573
      %v1575 = vpop.f32.mrf.mxu0
      %v1576 = vadd.f32 %v1415, %v1575
      %v1577 = vand.u32 %v259, 4294901760
      %1578 = vmatmul.f32.gmra.mxu0 %v1577
      %v1579 = vpop.f32.mrf.mxu0
      %v1580 = vadd.f32 %v1419, %v1579
      %1581 = vdwg.mxu0
      %v1582 = vmul.f32 %v1456, 0.5
      %v1583 = vmul.f32 %v1460, 0.5
      %v1584 = vmul.f32 %v1464, 0.5
      %v1585 = vmul.f32 %v1468, 0.5
      %v1586 = vmul.f32 %v1472, 0.5
      %v1587 = vmul.f32 %v1476, 0.5
      %v1588 = vmul.f32 %v1480, 0.5
      %v1589 = vmul.f32 %v1484, 0.5
      %v1590 = vmul.f32 %v1488, 0.5
      %v1591 = vmul.f32 %v1492, 0.5
      %v1592 = vmul.f32 %v1496, 0.5
      %v1593 = vmul.f32 %v1500, 0.5
      %v1594 = vmul.f32 %v1504, 0.5
      %v1595 = vmul.f32 %v1508, 0.5
      %v1596 = vmul.f32 %v1512, 0.5
      %v1597 = vmul.f32 %v1516, 0.5
      %v1598 = vmul.f32 %v1520, 0.5
      %v1599 = vmul.f32 %v1524, 0.5
      %v1600 = vmul.f32 %v1528, 0.5
      %v1601 = vmul.f32 %v1532, 0.5
      %v1602 = vmul.f32 %v1536, 0.5
      %v1603 = vmul.f32 %v1540, 0.5
      %v1604 = vmul.f32 %v1544, 0.5
      %v1605 = vmul.f32 %v1548, 0.5
      %v1606 = vmul.f32 %v1552, 0.5
      %v1607 = vmul.f32 %v1556, 0.5
      %v1608 = vmul.f32 %v1560, 0.5
      %v1609 = vmul.f32 %v1564, 0.5
      %v1610 = vmul.f32 %v1568, 0.5
      %v1611 = vmul.f32 %v1572, 0.5
      %v1612 = vmul.f32 %v1576, 0.5
      %v1613 = vmul.f32 %v1580, 0.5
      %v1614 = vmul.f32 %v1456, 0.70710677
      %v1615 = vmul.f32 %v1460, 0.70710677
      %v1616 = vmul.f32 %v1464, 0.70710677
      %v1617 = vmul.f32 %v1468, 0.70710677
      %v1618 = vmul.f32 %v1472, 0.70710677
      %v1619 = vmul.f32 %v1476, 0.70710677
      %v1620 = vmul.f32 %v1480, 0.70710677
      %v1621 = vmul.f32 %v1484, 0.70710677
      %v1622 = vmul.f32 %v1488, 0.70710677
      %v1623 = vmul.f32 %v1492, 0.70710677
      %v1624 = vmul.f32 %v1496, 0.70710677
      %v1625 = vmul.f32 %v1500, 0.70710677
      %v1626 = vmul.f32 %v1504, 0.70710677
      %v1627 = vmul.f32 %v1508, 0.70710677
      %v1628 = vmul.f32 %v1512, 0.70710677
      %v1629 = vmul.f32 %v1516, 0.70710677
      %v1630 = vmul.f32 %v1520, 0.70710677
      %v1631 = vmul.f32 %v1524, 0.70710677
      %v1632 = vmul.f32 %v1528, 0.70710677
      %v1633 = vmul.f32 %v1532, 0.70710677
      %v1634 = vmul.f32 %v1536, 0.70710677
      %v1635 = vmul.f32 %v1540, 0.70710677
      %v1636 = vmul.f32 %v1544, 0.70710677
      %v1637 = vmul.f32 %v1548, 0.70710677
      %v1638 = vmul.f32 %v1552, 0.70710677
      %v1639 = vmul.f32 %v1556, 0.70710677
      %v1640 = vmul.f32 %v1560, 0.70710677
      %v1641 = vmul.f32 %v1564, 0.70710677
      %v1642 = vmul.f32 %v1568, 0.70710677
      %v1643 = vmul.f32 %v1572, 0.70710677
      %v1644 = vmul.f32 %v1576, 0.70710677
      %v1645 = vmul.f32 %v1580, 0.70710677
      %v1646 = vmul.f32 %v1614, %v1614
      %v1647 = vmin.f32 16.0, %v1646
      %v1648 = vmul.f32 %v1647, 2.1237322e-06
      %v1649 = vadd.f32 %v1648, 0.00028619796
      %v1650 = vmul.f32 %v1647, %v1649
      %v1651 = vadd.f32 %v1650, 0.0036580483
      %v1652 = vmul.f32 %v1647, %v1651
      %v1653 = vadd.f32 %v1652, 0.05243302
      %v1654 = vmul.f32 %v1647, %v1653
      %v1655 = vadd.f32 %v1654, 0.18741608
      %v1656 = vmul.f32 %v1647, %v1655
      %v1657 = vadd.f32 %v1656, 1.1283791
      %v1658 = vmul.f32 %v1614, %v1657
      %v1659 = vmul.f32 %v1647, 3.8918573e-05
      %v1660 = vadd.f32 %v1659, 0.001143296
      %v1661 = vmul.f32 %v1647, %v1660
      %v1662 = vadd.f32 %v1661, 0.014752088
      %v1663 = vmul.f32 %v1647, %v1662
      %v1664 = vadd.f32 %v1663, 0.112945676
      %v1665 = vmul.f32 %v1647, %v1664
      %v1666 = vadd.f32 %v1665, 0.4994258
      %v1667 = vmul.f32 %v1647, %v1666
      %v1668 = vadd.f32 %v1667, 1.0
      %v1669 = vrcp.pop %v1668
      %v1670 = vmul.f32 %v1668, %v1669
      %v1671 = vsub.f32 1.0, %v1670
      %v1672 = vmul.f32 %v1669, %v1671
      %v1673 = vadd.f32 %v1669, %v1672
      %vm1674 = vweird.f32 %v1668
      %vm1675 = vweird.f32 %v1669
      %vm1676 = vmor %vm1674, %vm1675
      %v1677 = vsel %vm1676, %v1669, %v1673
      %v1678 = vand.u32 2147483647, %v1668
      %vm1679 = vcmp.eq.f32.partialorder %v1678, 8.507059e+37
      %v1680 = vand.u32 %v1668, 2147483648
      %v1681 = vor.u32 1.1754944e-38, %v1680
      %v1682 = vsel %vm1679, %v1681, %v1677
      %v1683 = vmul.f32 %v1658, %v1682
      %v1684 = vmin.f32 %v1683, 1.0
      %v1685 = vmax.f32 %v1684, -1.0
      %v1686 = vmul.f32 %v1615, %v1615
      %v1687 = vmin.f32 16.0, %v1686
      %v1688 = vmul.f32 %v1687, 2.1237322e-06
      %v1689 = vadd.f32 %v1688, 0.00028619796
      %v1690 = vmul.f32 %v1687, %v1689
      %v1691 = vadd.f32 %v1690, 0.0036580483
      %v1692 = vmul.f32 %v1687, %v1691
      %v1693 = vadd.f32 %v1692, 0.05243302
      %v1694 = vmul.f32 %v1687, %v1693
      %v1695 = vadd.f32 %v1694, 0.18741608
      %v1696 = vmul.f32 %v1687, %v1695
      %v1697 = vadd.f32 %v1696, 1.1283791
      %v1698 = vmul.f32 %v1615, %v1697
      %v1699 = vmul.f32 %v1687, 3.8918573e-05
      %v1700 = vadd.f32 %v1699, 0.001143296
      %v1701 = vmul.f32 %v1687, %v1700
      %v1702 = vadd.f32 %v1701, 0.014752088
      %v1703 = vmul.f32 %v1687, %v1702
      %v1704 = vadd.f32 %v1703, 0.112945676
      %v1705 = vmul.f32 %v1687, %v1704
      %v1706 = vadd.f32 %v1705, 0.4994258
      %v1707 = vmul.f32 %v1687, %v1706
      %v1708 = vadd.f32 %v1707, 1.0
      %v1709 = vrcp.pop %v1708
      %v1710 = vmul.f32 %v1708, %v1709
      %v1711 = vsub.f32 1.0, %v1710
      %v1712 = vmul.f32 %v1709, %v1711
      %v1713 = vadd.f32 %v1709, %v1712
      %vm1714 = vweird.f32 %v1708
      %vm1715 = vweird.f32 %v1709
      %vm1716 = vmor %vm1714, %vm1715
      %v1717 = vsel %vm1716, %v1709, %v1713
      %v1718 = vand.u32 2147483647, %v1708
      %vm1719 = vcmp.eq.f32.partialorder %v1718, 8.507059e+37
      %v1720 = vand.u32 %v1708, 2147483648
      %v1721 = vor.u32 1.1754944e-38, %v1720
      %v1722 = vsel %vm1719, %v1721, %v1717
      %v1723 = vmul.f32 %v1698, %v1722
      %v1724 = vmin.f32 %v1723, 1.0
      %v1725 = vmax.f32 %v1724, -1.0
      %v1726 = vmul.f32 %v1616, %v1616
      %v1727 = vmin.f32 16.0, %v1726
      %v1728 = vmul.f32 %v1727, 2.1237322e-06
      %v1729 = vadd.f32 %v1728, 0.00028619796
      %v1730 = vmul.f32 %v1727, %v1729
      %v1731 = vadd.f32 %v1730, 0.0036580483
      %v1732 = vmul.f32 %v1727, %v1731
      %v1733 = vadd.f32 %v1732, 0.05243302
      %v1734 = vmul.f32 %v1727, %v1733
      %v1735 = vadd.f32 %v1734, 0.18741608
      %v1736 = vmul.f32 %v1727, %v1735
      %v1737 = vadd.f32 %v1736, 1.1283791
      %v1738 = vmul.f32 %v1616, %v1737
      %v1739 = vmul.f32 %v1727, 3.8918573e-05
      %v1740 = vadd.f32 %v1739, 0.001143296
      %v1741 = vmul.f32 %v1727, %v1740
      %v1742 = vadd.f32 %v1741, 0.014752088
      %v1743 = vmul.f32 %v1727, %v1742
      %v1744 = vadd.f32 %v1743, 0.112945676
      %v1745 = vmul.f32 %v1727, %v1744
      %v1746 = vadd.f32 %v1745, 0.4994258
      %v1747 = vmul.f32 %v1727, %v1746
      %v1748 = vadd.f32 %v1747, 1.0
      %v1749 = vrcp.pop %v1748
      %v1750 = vmul.f32 %v1748, %v1749
      %v1751 = vsub.f32 1.0, %v1750
      %v1752 = vmul.f32 %v1749, %v1751
      %v1753 = vadd.f32 %v1749, %v1752
      %vm1754 = vweird.f32 %v1748
      %vm1755 = vweird.f32 %v1749
      %vm1756 = vmor %vm1754, %vm1755
      %v1757 = vsel %vm1756, %v1749, %v1753
      %v1758 = vand.u32 2147483647, %v1748
      %vm1759 = vcmp.eq.f32.partialorder %v1758, 8.507059e+37
      %v1760 = vand.u32 %v1748, 2147483648
      %v1761 = vor.u32 1.1754944e-38, %v1760
      %v1762 = vsel %vm1759, %v1761, %v1757
      %v1763 = vmul.f32 %v1738, %v1762
      %v1764 = vmin.f32 %v1763, 1.0
      %v1765 = vmax.f32 %v1764, -1.0
      %v1766 = vmul.f32 %v1617, %v1617
      %v1767 = vmin.f32 16.0, %v1766
      %v1768 = vmul.f32 %v1767, 2.1237322e-06
      %v1769 = vadd.f32 %v1768, 0.00028619796
      %v1770 = vmul.f32 %v1767, %v1769
      %v1771 = vadd.f32 %v1770, 0.0036580483
      %v1772 = vmul.f32 %v1767, %v1771
      %v1773 = vadd.f32 %v1772, 0.05243302
      %v1774 = vmul.f32 %v1767, %v1773
      %v1775 = vadd.f32 %v1774, 0.18741608
      %v1776 = vmul.f32 %v1767, %v1775
      %v1777 = vadd.f32 %v1776, 1.1283791
      %v1778 = vmul.f32 %v1617, %v1777
      %v1779 = vmul.f32 %v1767, 3.8918573e-05
      %v1780 = vadd.f32 %v1779, 0.001143296
      %v1781 = vmul.f32 %v1767, %v1780
      %v1782 = vadd.f32 %v1781, 0.014752088
      %v1783 = vmul.f32 %v1767, %v1782
      %v1784 = vadd.f32 %v1783, 0.112945676
      %v1785 = vmul.f32 %v1767, %v1784
      %v1786 = vadd.f32 %v1785, 0.4994258
      %v1787 = vmul.f32 %v1767, %v1786
      %v1788 = vadd.f32 %v1787, 1.0
      %v1789 = vrcp.pop %v1788
      %v1790 = vmul.f32 %v1788, %v1789
      %v1791 = vsub.f32 1.0, %v1790
      %v1792 = vmul.f32 %v1789, %v1791
      %v1793 = vadd.f32 %v1789, %v1792
      %vm1794 = vweird.f32 %v1788
      %vm1795 = vweird.f32 %v1789
      %vm1796 = vmor %vm1794, %vm1795
      %v1797 = vsel %vm1796, %v1789, %v1793
      %v1798 = vand.u32 2147483647, %v1788
      %vm1799 = vcmp.eq.f32.partialorder %v1798, 8.507059e+37
      %v1800 = vand.u32 %v1788, 2147483648
      %v1801 = vor.u32 1.1754944e-38, %v1800
      %v1802 = vsel %vm1799, %v1801, %v1797
      %v1803 = vmul.f32 %v1778, %v1802
      %v1804 = vmin.f32 %v1803, 1.0
      %v1805 = vmax.f32 %v1804, -1.0
      %v1806 = vmul.f32 %v1618, %v1618
      %v1807 = vmin.f32 16.0, %v1806
      %v1808 = vmul.f32 %v1807, 2.1237322e-06
      %v1809 = vadd.f32 %v1808, 0.00028619796
      %v1810 = vmul.f32 %v1807, %v1809
      %v1811 = vadd.f32 %v1810, 0.0036580483
      %v1812 = vmul.f32 %v1807, %v1811
      %v1813 = vadd.f32 %v1812, 0.05243302
      %v1814 = vmul.f32 %v1807, %v1813
      %v1815 = vadd.f32 %v1814, 0.18741608
      %v1816 = vmul.f32 %v1807, %v1815
      %v1817 = vadd.f32 %v1816, 1.1283791
      %v1818 = vmul.f32 %v1618, %v1817
      %v1819 = vmul.f32 %v1807, 3.8918573e-05
      %v1820 = vadd.f32 %v1819, 0.001143296
      %v1821 = vmul.f32 %v1807, %v1820
      %v1822 = vadd.f32 %v1821, 0.014752088
      %v1823 = vmul.f32 %v1807, %v1822
      %v1824 = vadd.f32 %v1823, 0.112945676
      %v1825 = vmul.f32 %v1807, %v1824
      %v1826 = vadd.f32 %v1825, 0.4994258
      %v1827 = vmul.f32 %v1807, %v1826
      %v1828 = vadd.f32 %v1827, 1.0
      %v1829 = vrcp.pop %v1828
      %v1830 = vmul.f32 %v1828, %v1829
      %v1831 = vsub.f32 1.0, %v1830
      %v1832 = vmul.f32 %v1829, %v1831
      %v1833 = vadd.f32 %v1829, %v1832
      %vm1834 = vweird.f32 %v1828
      %vm1835 = vweird.f32 %v1829
      %vm1836 = vmor %vm1834, %vm1835
      %v1837 = vsel %vm1836, %v1829, %v1833
      %v1838 = vand.u32 2147483647, %v1828
      %vm1839 = vcmp.eq.f32.partialorder %v1838, 8.507059e+37
      %v1840 = vand.u32 %v1828, 2147483648
      %v1841 = vor.u32 1.1754944e-38, %v1840
      %v1842 = vsel %vm1839, %v1841, %v1837
      %v1843 = vmul.f32 %v1818, %v1842
      %v1844 = vmin.f32 %v1843, 1.0
      %v1845 = vmax.f32 %v1844, -1.0
      %v1846 = vmul.f32 %v1619, %v1619
      %v1847 = vmin.f32 16.0, %v1846
      %v1848 = vmul.f32 %v1847, 2.1237322e-06
      %v1849 = vadd.f32 %v1848, 0.00028619796
      %v1850 = vmul.f32 %v1847, %v1849
      %v1851 = vadd.f32 %v1850, 0.0036580483
      %v1852 = vmul.f32 %v1847, %v1851
      %v1853 = vadd.f32 %v1852, 0.05243302
      %v1854 = vmul.f32 %v1847, %v1853
      %v1855 = vadd.f32 %v1854, 0.18741608
      %v1856 = vmul.f32 %v1847, %v1855
      %v1857 = vadd.f32 %v1856, 1.1283791
      %v1858 = vmul.f32 %v1619, %v1857
      %v1859 = vmul.f32 %v1847, 3.8918573e-05
      %v1860 = vadd.f32 %v1859, 0.001143296
      %v1861 = vmul.f32 %v1847, %v1860
      %v1862 = vadd.f32 %v1861, 0.014752088
      %v1863 = vmul.f32 %v1847, %v1862
      %v1864 = vadd.f32 %v1863, 0.112945676
      %v1865 = vmul.f32 %v1847, %v1864
      %v1866 = vadd.f32 %v1865, 0.4994258
      %v1867 = vmul.f32 %v1847, %v1866
      %v1868 = vadd.f32 %v1867, 1.0
      %v1869 = vrcp.pop %v1868
      %v1870 = vmul.f32 %v1868, %v1869
      %v1871 = vsub.f32 1.0, %v1870
      %v1872 = vmul.f32 %v1869, %v1871
      %v1873 = vadd.f32 %v1869, %v1872
      %vm1874 = vweird.f32 %v1868
      %vm1875 = vweird.f32 %v1869
      %vm1876 = vmor %vm1874, %vm1875
      %v1877 = vsel %vm1876, %v1869, %v1873
      %v1878 = vand.u32 2147483647, %v1868
      %vm1879 = vcmp.eq.f32.partialorder %v1878, 8.507059e+37
      %v1880 = vand.u32 %v1868, 2147483648
      %v1881 = vor.u32 1.1754944e-38, %v1880
      %v1882 = vsel %vm1879, %v1881, %v1877
      %v1883 = vmul.f32 %v1858, %v1882
      %v1884 = vmin.f32 %v1883, 1.0
      %v1885 = vmax.f32 %v1884, -1.0
      %v1886 = vmul.f32 %v1620, %v1620
      %v1887 = vmin.f32 16.0, %v1886
      %v1888 = vmul.f32 %v1887, 2.1237322e-06
      %v1889 = vadd.f32 %v1888, 0.00028619796
      %v1890 = vmul.f32 %v1887, %v1889
      %v1891 = vadd.f32 %v1890, 0.0036580483
      %v1892 = vmul.f32 %v1887, %v1891
      %v1893 = vadd.f32 %v1892, 0.05243302
      %v1894 = vmul.f32 %v1887, %v1893
      %v1895 = vadd.f32 %v1894, 0.18741608
      %v1896 = vmul.f32 %v1887, %v1895
      %v1897 = vadd.f32 %v1896, 1.1283791
      %v1898 = vmul.f32 %v1620, %v1897
      %v1899 = vmul.f32 %v1887, 3.8918573e-05
      %v1900 = vadd.f32 %v1899, 0.001143296
      %v1901 = vmul.f32 %v1887, %v1900
      %v1902 = vadd.f32 %v1901, 0.014752088
      %v1903 = vmul.f32 %v1887, %v1902
      %v1904 = vadd.f32 %v1903, 0.112945676
      %v1905 = vmul.f32 %v1887, %v1904
      %v1906 = vadd.f32 %v1905, 0.4994258
      %v1907 = vmul.f32 %v1887, %v1906
      %v1908 = vadd.f32 %v1907, 1.0
      %v1909 = vrcp.pop %v1908
      %v1910 = vmul.f32 %v1908, %v1909
      %v1911 = vsub.f32 1.0, %v1910
      %v1912 = vmul.f32 %v1909, %v1911
      %v1913 = vadd.f32 %v1909, %v1912
      %vm1914 = vweird.f32 %v1908
      %vm1915 = vweird.f32 %v1909
      %vm1916 = vmor %vm1914, %vm1915
      %v1917 = vsel %vm1916, %v1909, %v1913
      %v1918 = vand.u32 2147483647, %v1908
      %vm1919 = vcmp.eq.f32.partialorder %v1918, 8.507059e+37
      %v1920 = vand.u32 %v1908, 2147483648
      %v1921 = vor.u32 1.1754944e-38, %v1920
      %v1922 = vsel %vm1919, %v1921, %v1917
      %v1923 = vmul.f32 %v1898, %v1922
      %v1924 = vmin.f32 %v1923, 1.0
      %v1925 = vmax.f32 %v1924, -1.0
      %v1926 = vmul.f32 %v1621, %v1621
      %v1927 = vmin.f32 16.0, %v1926
      %v1928 = vmul.f32 %v1927, 2.1237322e-06
      %v1929 = vadd.f32 %v1928, 0.00028619796
      %v1930 = vmul.f32 %v1927, %v1929
      %v1931 = vadd.f32 %v1930, 0.0036580483
      %v1932 = vmul.f32 %v1927, %v1931
      %v1933 = vadd.f32 %v1932, 0.05243302
      %v1934 = vmul.f32 %v1927, %v1933
      %v1935 = vadd.f32 %v1934, 0.18741608
      %v1936 = vmul.f32 %v1927, %v1935
      %v1937 = vadd.f32 %v1936, 1.1283791
      %v1938 = vmul.f32 %v1621, %v1937
      %v1939 = vmul.f32 %v1927, 3.8918573e-05
      %v1940 = vadd.f32 %v1939, 0.001143296
      %v1941 = vmul.f32 %v1927, %v1940
      %v1942 = vadd.f32 %v1941, 0.014752088
      %v1943 = vmul.f32 %v1927, %v1942
      %v1944 = vadd.f32 %v1943, 0.112945676
      %v1945 = vmul.f32 %v1927, %v1944
      %v1946 = vadd.f32 %v1945, 0.4994258
      %v1947 = vmul.f32 %v1927, %v1946
      %v1948 = vadd.f32 %v1947, 1.0
      %v1949 = vrcp.pop %v1948
      %v1950 = vmul.f32 %v1948, %v1949
      %v1951 = vsub.f32 1.0, %v1950
      %v1952 = vmul.f32 %v1949, %v1951
      %v1953 = vadd.f32 %v1949, %v1952
      %vm1954 = vweird.f32 %v1948
      %vm1955 = vweird.f32 %v1949
      %vm1956 = vmor %vm1954, %vm1955
      %v1957 = vsel %vm1956, %v1949, %v1953
      %v1958 = vand.u32 2147483647, %v1948
      %vm1959 = vcmp.eq.f32.partialorder %v1958, 8.507059e+37
      %v1960 = vand.u32 %v1948, 2147483648
      %v1961 = vor.u32 1.1754944e-38, %v1960
      %v1962 = vsel %vm1959, %v1961, %v1957
      %v1963 = vmul.f32 %v1938, %v1962
      %v1964 = vmin.f32 %v1963, 1.0
      %v1965 = vmax.f32 %v1964, -1.0
      %v1966 = vmul.f32 %v1622, %v1622
      %v1967 = vmin.f32 16.0, %v1966
      %v1968 = vmul.f32 %v1967, 2.1237322e-06
      %v1969 = vadd.f32 %v1968, 0.00028619796
      %v1970 = vmul.f32 %v1967, %v1969
      %v1971 = vadd.f32 %v1970, 0.0036580483
      %v1972 = vmul.f32 %v1967, %v1971
      %v1973 = vadd.f32 %v1972, 0.05243302
      %v1974 = vmul.f32 %v1967, %v1973
      %v1975 = vadd.f32 %v1974, 0.18741608
      %v1976 = vmul.f32 %v1967, %v1975
      %v1977 = vadd.f32 %v1976, 1.1283791
      %v1978 = vmul.f32 %v1622, %v1977
      %v1979 = vmul.f32 %v1967, 3.8918573e-05
      %v1980 = vadd.f32 %v1979, 0.001143296
      %v1981 = vmul.f32 %v1967, %v1980
      %v1982 = vadd.f32 %v1981, 0.014752088
      %v1983 = vmul.f32 %v1967, %v1982
      %v1984 = vadd.f32 %v1983, 0.112945676
      %v1985 = vmul.f32 %v1967, %v1984
      %v1986 = vadd.f32 %v1985, 0.4994258
      %v1987 = vmul.f32 %v1967, %v1986
      %v1988 = vadd.f32 %v1987, 1.0
      %v1989 = vrcp.pop %v1988
      %v1990 = vmul.f32 %v1988, %v1989
      %v1991 = vsub.f32 1.0, %v1990
      %v1992 = vmul.f32 %v1989, %v1991
      %v1993 = vadd.f32 %v1989, %v1992
      %vm1994 = vweird.f32 %v1988
      %vm1995 = vweird.f32 %v1989
      %vm1996 = vmor %vm1994, %vm1995
      %v1997 = vsel %vm1996, %v1989, %v1993
      %v1998 = vand.u32 2147483647, %v1988
      %vm1999 = vcmp.eq.f32.partialorder %v1998, 8.507059e+37
      %v2000 = vand.u32 %v1988, 2147483648
      %v2001 = vor.u32 1.1754944e-38, %v2000
      %v2002 = vsel %vm1999, %v2001, %v1997
      %v2003 = vmul.f32 %v1978, %v2002
      %v2004 = vmin.f32 %v2003, 1.0
      %v2005 = vmax.f32 %v2004, -1.0
      %v2006 = vmul.f32 %v1623, %v1623
      %v2007 = vmin.f32 16.0, %v2006
      %v2008 = vmul.f32 %v2007, 2.1237322e-06
      %v2009 = vadd.f32 %v2008, 0.00028619796
      %v2010 = vmul.f32 %v2007, %v2009
      %v2011 = vadd.f32 %v2010, 0.0036580483
      %v2012 = vmul.f32 %v2007, %v2011
      %v2013 = vadd.f32 %v2012, 0.05243302
      %v2014 = vmul.f32 %v2007, %v2013
      %v2015 = vadd.f32 %v2014, 0.18741608
      %v2016 = vmul.f32 %v2007, %v2015
      %v2017 = vadd.f32 %v2016, 1.1283791
      %v2018 = vmul.f32 %v1623, %v2017
      %v2019 = vmul.f32 %v2007, 3.8918573e-05
      %v2020 = vadd.f32 %v2019, 0.001143296
      %v2021 = vmul.f32 %v2007, %v2020
      %v2022 = vadd.f32 %v2021, 0.014752088
      %v2023 = vmul.f32 %v2007, %v2022
      %v2024 = vadd.f32 %v2023, 0.112945676
      %v2025 = vmul.f32 %v2007, %v2024
      %v2026 = vadd.f32 %v2025, 0.4994258
      %v2027 = vmul.f32 %v2007, %v2026
      %v2028 = vadd.f32 %v2027, 1.0
      %v2029 = vrcp.pop %v2028
      %v2030 = vmul.f32 %v2028, %v2029
      %v2031 = vsub.f32 1.0, %v2030
      %v2032 = vmul.f32 %v2029, %v2031
      %v2033 = vadd.f32 %v2029, %v2032
      %vm2034 = vweird.f32 %v2028
      %vm2035 = vweird.f32 %v2029
      %vm2036 = vmor %vm2034, %vm2035
      %v2037 = vsel %vm2036, %v2029, %v2033
      %v2038 = vand.u32 2147483647, %v2028
      %vm2039 = vcmp.eq.f32.partialorder %v2038, 8.507059e+37
      %v2040 = vand.u32 %v2028, 2147483648
      %v2041 = vor.u32 1.1754944e-38, %v2040
      %v2042 = vsel %vm2039, %v2041, %v2037
      %v2043 = vmul.f32 %v2018, %v2042
      %v2044 = vmin.f32 %v2043, 1.0
      %v2045 = vmax.f32 %v2044, -1.0
      %v2046 = vmul.f32 %v1624, %v1624
      %v2047 = vmin.f32 16.0, %v2046
      %v2048 = vmul.f32 %v2047, 2.1237322e-06
      %v2049 = vadd.f32 %v2048, 0.00028619796
      %v2050 = vmul.f32 %v2047, %v2049
      %v2051 = vadd.f32 %v2050, 0.0036580483
      %v2052 = vmul.f32 %v2047, %v2051
      %v2053 = vadd.f32 %v2052, 0.05243302
      %v2054 = vmul.f32 %v2047, %v2053
      %v2055 = vadd.f32 %v2054, 0.18741608
      %v2056 = vmul.f32 %v2047, %v2055
      %v2057 = vadd.f32 %v2056, 1.1283791
      %v2058 = vmul.f32 %v1624, %v2057
      %v2059 = vmul.f32 %v2047, 3.8918573e-05
      %v2060 = vadd.f32 %v2059, 0.001143296
      %v2061 = vmul.f32 %v2047, %v2060
      %v2062 = vadd.f32 %v2061, 0.014752088
      %v2063 = vmul.f32 %v2047, %v2062
      %v2064 = vadd.f32 %v2063, 0.112945676
      %v2065 = vmul.f32 %v2047, %v2064
      %v2066 = vadd.f32 %v2065, 0.4994258
      %v2067 = vmul.f32 %v2047, %v2066
      %v2068 = vadd.f32 %v2067, 1.0
      %v2069 = vrcp.pop %v2068
      %v2070 = vmul.f32 %v2068, %v2069
      %v2071 = vsub.f32 1.0, %v2070
      %v2072 = vmul.f32 %v2069, %v2071
      %v2073 = vadd.f32 %v2069, %v2072
      %vm2074 = vweird.f32 %v2068
      %vm2075 = vweird.f32 %v2069
      %vm2076 = vmor %vm2074, %vm2075
      %v2077 = vsel %vm2076, %v2069, %v2073
      %v2078 = vand.u32 2147483647, %v2068
      %vm2079 = vcmp.eq.f32.partialorder %v2078, 8.507059e+37
      %v2080 = vand.u32 %v2068, 2147483648
      %v2081 = vor.u32 1.1754944e-38, %v2080
      %v2082 = vsel %vm2079, %v2081, %v2077
      %v2083 = vmul.f32 %v2058, %v2082
      %v2084 = vmin.f32 %v2083, 1.0
      %v2085 = vmax.f32 %v2084, -1.0
      %v2086 = vmul.f32 %v1625, %v1625
      %v2087 = vmin.f32 16.0, %v2086
      %v2088 = vmul.f32 %v2087, 2.1237322e-06
      %v2089 = vadd.f32 %v2088, 0.00028619796
      %v2090 = vmul.f32 %v2087, %v2089
      %v2091 = vadd.f32 %v2090, 0.0036580483
      %v2092 = vmul.f32 %v2087, %v2091
      %v2093 = vadd.f32 %v2092, 0.05243302
      %v2094 = vmul.f32 %v2087, %v2093
      %v2095 = vadd.f32 %v2094, 0.18741608
      %v2096 = vmul.f32 %v2087, %v2095
      %v2097 = vadd.f32 %v2096, 1.1283791
      %v2098 = vmul.f32 %v1625, %v2097
      %v2099 = vmul.f32 %v2087, 3.8918573e-05
      %v2100 = vadd.f32 %v2099, 0.001143296
      %v2101 = vmul.f32 %v2087, %v2100
      %v2102 = vadd.f32 %v2101, 0.014752088
      %v2103 = vmul.f32 %v2087, %v2102
      %v2104 = vadd.f32 %v2103, 0.112945676
      %v2105 = vmul.f32 %v2087, %v2104
      %v2106 = vadd.f32 %v2105, 0.4994258
      %v2107 = vmul.f32 %v2087, %v2106
      %v2108 = vadd.f32 %v2107, 1.0
      %v2109 = vrcp.pop %v2108
      %v2110 = vmul.f32 %v2108, %v2109
      %v2111 = vsub.f32 1.0, %v2110
      %v2112 = vmul.f32 %v2109, %v2111
      %v2113 = vadd.f32 %v2109, %v2112
      %vm2114 = vweird.f32 %v2108
      %vm2115 = vweird.f32 %v2109
      %vm2116 = vmor %vm2114, %vm2115
      %v2117 = vsel %vm2116, %v2109, %v2113
      %v2118 = vand.u32 2147483647, %v2108
      %vm2119 = vcmp.eq.f32.partialorder %v2118, 8.507059e+37
      %v2120 = vand.u32 %v2108, 2147483648
      %v2121 = vor.u32 1.1754944e-38, %v2120
      %v2122 = vsel %vm2119, %v2121, %v2117
      %v2123 = vmul.f32 %v2098, %v2122
      %v2124 = vmin.f32 %v2123, 1.0
      %v2125 = vmax.f32 %v2124, -1.0
      %v2126 = vmul.f32 %v1626, %v1626
      %v2127 = vmin.f32 16.0, %v2126
      %v2128 = vmul.f32 %v2127, 2.1237322e-06
      %v2129 = vadd.f32 %v2128, 0.00028619796
      %v2130 = vmul.f32 %v2127, %v2129
      %v2131 = vadd.f32 %v2130, 0.0036580483
      %v2132 = vmul.f32 %v2127, %v2131
      %v2133 = vadd.f32 %v2132, 0.05243302
      %v2134 = vmul.f32 %v2127, %v2133
      %v2135 = vadd.f32 %v2134, 0.18741608
      %v2136 = vmul.f32 %v2127, %v2135
      %v2137 = vadd.f32 %v2136, 1.1283791
      %v2138 = vmul.f32 %v1626, %v2137
      %v2139 = vmul.f32 %v2127, 3.8918573e-05
      %v2140 = vadd.f32 %v2139, 0.001143296
      %v2141 = vmul.f32 %v2127, %v2140
      %v2142 = vadd.f32 %v2141, 0.014752088
      %v2143 = vmul.f32 %v2127, %v2142
      %v2144 = vadd.f32 %v2143, 0.112945676
      %v2145 = vmul.f32 %v2127, %v2144
      %v2146 = vadd.f32 %v2145, 0.4994258
      %v2147 = vmul.f32 %v2127, %v2146
      %v2148 = vadd.f32 %v2147, 1.0
      %v2149 = vrcp.pop %v2148
      %v2150 = vmul.f32 %v2148, %v2149
      %v2151 = vsub.f32 1.0, %v2150
      %v2152 = vmul.f32 %v2149, %v2151
      %v2153 = vadd.f32 %v2149, %v2152
      %vm2154 = vweird.f32 %v2148
      %vm2155 = vweird.f32 %v2149
      %vm2156 = vmor %vm2154, %vm2155
      %v2157 = vsel %vm2156, %v2149, %v2153
      %v2158 = vand.u32 2147483647, %v2148
      %vm2159 = vcmp.eq.f32.partialorder %v2158, 8.507059e+37
      %v2160 = vand.u32 %v2148, 2147483648
      %v2161 = vor.u32 1.1754944e-38, %v2160
      %v2162 = vsel %vm2159, %v2161, %v2157
      %v2163 = vmul.f32 %v2138, %v2162
      %v2164 = vmin.f32 %v2163, 1.0
      %v2165 = vmax.f32 %v2164, -1.0
      %v2166 = vmul.f32 %v1627, %v1627
      %v2167 = vmin.f32 16.0, %v2166
      %v2168 = vmul.f32 %v2167, 2.1237322e-06
      %v2169 = vadd.f32 %v2168, 0.00028619796
      %v2170 = vmul.f32 %v2167, %v2169
      %v2171 = vadd.f32 %v2170, 0.0036580483
      %v2172 = vmul.f32 %v2167, %v2171
      %v2173 = vadd.f32 %v2172, 0.05243302
      %v2174 = vmul.f32 %v2167, %v2173
      %v2175 = vadd.f32 %v2174, 0.18741608
      %v2176 = vmul.f32 %v2167, %v2175
      %v2177 = vadd.f32 %v2176, 1.1283791
      %v2178 = vmul.f32 %v1627, %v2177
      %v2179 = vmul.f32 %v2167, 3.8918573e-05
      %v2180 = vadd.f32 %v2179, 0.001143296
      %v2181 = vmul.f32 %v2167, %v2180
      %v2182 = vadd.f32 %v2181, 0.014752088
      %v2183 = vmul.f32 %v2167, %v2182
      %v2184 = vadd.f32 %v2183, 0.112945676
      %v2185 = vmul.f32 %v2167, %v2184
      %v2186 = vadd.f32 %v2185, 0.4994258
      %v2187 = vmul.f32 %v2167, %v2186
      %v2188 = vadd.f32 %v2187, 1.0
      %v2189 = vrcp.pop %v2188
      %v2190 = vmul.f32 %v2188, %v2189
      %v2191 = vsub.f32 1.0, %v2190
      %v2192 = vmul.f32 %v2189, %v2191
      %v2193 = vadd.f32 %v2189, %v2192
      %vm2194 = vweird.f32 %v2188
      %vm2195 = vweird.f32 %v2189
      %vm2196 = vmor %vm2194, %vm2195
      %v2197 = vsel %vm2196, %v2189, %v2193
      %v2198 = vand.u32 2147483647, %v2188
      %vm2199 = vcmp.eq.f32.partialorder %v2198, 8.507059e+37
      %v2200 = vand.u32 %v2188, 2147483648
      %v2201 = vor.u32 1.1754944e-38, %v2200
      %v2202 = vsel %vm2199, %v2201, %v2197
      %v2203 = vmul.f32 %v2178, %v2202
      %v2204 = vmin.f32 %v2203, 1.0
      %v2205 = vmax.f32 %v2204, -1.0
      %v2206 = vmul.f32 %v1628, %v1628
      %v2207 = vmin.f32 16.0, %v2206
      %v2208 = vmul.f32 %v2207, 2.1237322e-06
      %v2209 = vadd.f32 %v2208, 0.00028619796
      %v2210 = vmul.f32 %v2207, %v2209
      %v2211 = vadd.f32 %v2210, 0.0036580483
      %v2212 = vmul.f32 %v2207, %v2211
      %v2213 = vadd.f32 %v2212, 0.05243302
      %v2214 = vmul.f32 %v2207, %v2213
      %v2215 = vadd.f32 %v2214, 0.18741608
      %v2216 = vmul.f32 %v2207, %v2215
      %v2217 = vadd.f32 %v2216, 1.1283791
      %v2218 = vmul.f32 %v1628, %v2217
      %v2219 = vmul.f32 %v2207, 3.8918573e-05
      %v2220 = vadd.f32 %v2219, 0.001143296
      %v2221 = vmul.f32 %v2207, %v2220
      %v2222 = vadd.f32 %v2221, 0.014752088
      %v2223 = vmul.f32 %v2207, %v2222
      %v2224 = vadd.f32 %v2223, 0.112945676
      %v2225 = vmul.f32 %v2207, %v2224
      %v2226 = vadd.f32 %v2225, 0.4994258
      %v2227 = vmul.f32 %v2207, %v2226
      %v2228 = vadd.f32 %v2227, 1.0
      %v2229 = vrcp.pop %v2228
      %v2230 = vmul.f32 %v2228, %v2229
      %v2231 = vsub.f32 1.0, %v2230
      %v2232 = vmul.f32 %v2229, %v2231
      %v2233 = vadd.f32 %v2229, %v2232
      %vm2234 = vweird.f32 %v2228
      %vm2235 = vweird.f32 %v2229
      %vm2236 = vmor %vm2234, %vm2235
      %v2237 = vsel %vm2236, %v2229, %v2233
      %v2238 = vand.u32 2147483647, %v2228
      %vm2239 = vcmp.eq.f32.partialorder %v2238, 8.507059e+37
      %v2240 = vand.u32 %v2228, 2147483648
      %v2241 = vor.u32 1.1754944e-38, %v2240
      %v2242 = vsel %vm2239, %v2241, %v2237
      %v2243 = vmul.f32 %v2218, %v2242
      %v2244 = vmin.f32 %v2243, 1.0
      %v2245 = vmax.f32 %v2244, -1.0
      %v2246 = vmul.f32 %v1629, %v1629
      %v2247 = vmin.f32 16.0, %v2246
      %v2248 = vmul.f32 %v2247, 2.1237322e-06
      %v2249 = vadd.f32 %v2248, 0.00028619796
      %v2250 = vmul.f32 %v2247, %v2249
      %v2251 = vadd.f32 %v2250, 0.0036580483
      %v2252 = vmul.f32 %v2247, %v2251
      %v2253 = vadd.f32 %v2252, 0.05243302
      %v2254 = vmul.f32 %v2247, %v2253
      %v2255 = vadd.f32 %v2254, 0.18741608
      %v2256 = vmul.f32 %v2247, %v2255
      %v2257 = vadd.f32 %v2256, 1.1283791
      %v2258 = vmul.f32 %v1629, %v2257
      %v2259 = vmul.f32 %v2247, 3.8918573e-05
      %v2260 = vadd.f32 %v2259, 0.001143296
      %v2261 = vmul.f32 %v2247, %v2260
      %v2262 = vadd.f32 %v2261, 0.014752088
      %v2263 = vmul.f32 %v2247, %v2262
      %v2264 = vadd.f32 %v2263, 0.112945676
      %v2265 = vmul.f32 %v2247, %v2264
      %v2266 = vadd.f32 %v2265, 0.4994258
      %v2267 = vmul.f32 %v2247, %v2266
      %v2268 = vadd.f32 %v2267, 1.0
      %v2269 = vrcp.pop %v2268
      %v2270 = vmul.f32 %v2268, %v2269
      %v2271 = vsub.f32 1.0, %v2270
      %v2272 = vmul.f32 %v2269, %v2271
      %v2273 = vadd.f32 %v2269, %v2272
      %vm2274 = vweird.f32 %v2268
      %vm2275 = vweird.f32 %v2269
      %vm2276 = vmor %vm2274, %vm2275
      %v2277 = vsel %vm2276, %v2269, %v2273
      %v2278 = vand.u32 2147483647, %v2268
      %vm2279 = vcmp.eq.f32.partialorder %v2278, 8.507059e+37
      %v2280 = vand.u32 %v2268, 2147483648
      %v2281 = vor.u32 1.1754944e-38, %v2280
      %v2282 = vsel %vm2279, %v2281, %v2277
      %v2283 = vmul.f32 %v2258, %v2282
      %v2284 = vmin.f32 %v2283, 1.0
      %v2285 = vmax.f32 %v2284, -1.0
      %v2286 = vmul.f32 %v1630, %v1630
      %v2287 = vmin.f32 16.0, %v2286
      %v2288 = vmul.f32 %v2287, 2.1237322e-06
      %v2289 = vadd.f32 %v2288, 0.00028619796
      %v2290 = vmul.f32 %v2287, %v2289
      %v2291 = vadd.f32 %v2290, 0.0036580483
      %v2292 = vmul.f32 %v2287, %v2291
      %v2293 = vadd.f32 %v2292, 0.05243302
      %v2294 = vmul.f32 %v2287, %v2293
      %v2295 = vadd.f32 %v2294, 0.18741608
      %v2296 = vmul.f32 %v2287, %v2295
      %v2297 = vadd.f32 %v2296, 1.1283791
      %v2298 = vmul.f32 %v1630, %v2297
      %v2299 = vmul.f32 %v2287, 3.8918573e-05
      %v2300 = vadd.f32 %v2299, 0.001143296
      %v2301 = vmul.f32 %v2287, %v2300
      %v2302 = vadd.f32 %v2301, 0.014752088
      %v2303 = vmul.f32 %v2287, %v2302
      %v2304 = vadd.f32 %v2303, 0.112945676
      %v2305 = vmul.f32 %v2287, %v2304
      %v2306 = vadd.f32 %v2305, 0.4994258
      %v2307 = vmul.f32 %v2287, %v2306
      %v2308 = vadd.f32 %v2307, 1.0
      %v2309 = vrcp.pop %v2308
      %v2310 = vmul.f32 %v2308, %v2309
      %v2311 = vsub.f32 1.0, %v2310
      %v2312 = vmul.f32 %v2309, %v2311
      %v2313 = vadd.f32 %v2309, %v2312
      %vm2314 = vweird.f32 %v2308
      %vm2315 = vweird.f32 %v2309
      %vm2316 = vmor %vm2314, %vm2315
      %v2317 = vsel %vm2316, %v2309, %v2313
      %v2318 = vand.u32 2147483647, %v2308
      %vm2319 = vcmp.eq.f32.partialorder %v2318, 8.507059e+37
      %v2320 = vand.u32 %v2308, 2147483648
      %v2321 = vor.u32 1.1754944e-38, %v2320
      %v2322 = vsel %vm2319, %v2321, %v2317
      %v2323 = vmul.f32 %v2298, %v2322
      %v2324 = vmin.f32 %v2323, 1.0
      %v2325 = vmax.f32 %v2324, -1.0
      %v2326 = vmul.f32 %v1631, %v1631
      %v2327 = vmin.f32 16.0, %v2326
      %v2328 = vmul.f32 %v2327, 2.1237322e-06
      %v2329 = vadd.f32 %v2328, 0.00028619796
      %v2330 = vmul.f32 %v2327, %v2329
      %v2331 = vadd.f32 %v2330, 0.0036580483
      %v2332 = vmul.f32 %v2327, %v2331
      %v2333 = vadd.f32 %v2332, 0.05243302
      %v2334 = vmul.f32 %v2327, %v2333
      %v2335 = vadd.f32 %v2334, 0.18741608
      %v2336 = vmul.f32 %v2327, %v2335
      %v2337 = vadd.f32 %v2336, 1.1283791
      %v2338 = vmul.f32 %v1631, %v2337
      %v2339 = vmul.f32 %v2327, 3.8918573e-05
      %v2340 = vadd.f32 %v2339, 0.001143296
      %v2341 = vmul.f32 %v2327, %v2340
      %v2342 = vadd.f32 %v2341, 0.014752088
      %v2343 = vmul.f32 %v2327, %v2342
      %v2344 = vadd.f32 %v2343, 0.112945676
      %v2345 = vmul.f32 %v2327, %v2344
      %v2346 = vadd.f32 %v2345, 0.4994258
      %v2347 = vmul.f32 %v2327, %v2346
      %v2348 = vadd.f32 %v2347, 1.0
      %v2349 = vrcp.pop %v2348
      %v2350 = vmul.f32 %v2348, %v2349
      %v2351 = vsub.f32 1.0, %v2350
      %v2352 = vmul.f32 %v2349, %v2351
      %v2353 = vadd.f32 %v2349, %v2352
      %vm2354 = vweird.f32 %v2348
      %vm2355 = vweird.f32 %v2349
      %vm2356 = vmor %vm2354, %vm2355
      %v2357 = vsel %vm2356, %v2349, %v2353
      %v2358 = vand.u32 2147483647, %v2348
      %vm2359 = vcmp.eq.f32.partialorder %v2358, 8.507059e+37
      %v2360 = vand.u32 %v2348, 2147483648
      %v2361 = vor.u32 1.1754944e-38, %v2360
      %v2362 = vsel %vm2359, %v2361, %v2357
      %v2363 = vmul.f32 %v2338, %v2362
      %v2364 = vmin.f32 %v2363, 1.0
      %v2365 = vmax.f32 %v2364, -1.0
      %v2366 = vmul.f32 %v1632, %v1632
      %v2367 = vmin.f32 16.0, %v2366
      %v2368 = vmul.f32 %v2367, 2.1237322e-06
      %v2369 = vadd.f32 %v2368, 0.00028619796
      %v2370 = vmul.f32 %v2367, %v2369
      %v2371 = vadd.f32 %v2370, 0.0036580483
      %v2372 = vmul.f32 %v2367, %v2371
      %v2373 = vadd.f32 %v2372, 0.05243302
      %v2374 = vmul.f32 %v2367, %v2373
      %v2375 = vadd.f32 %v2374, 0.18741608
      %v2376 = vmul.f32 %v2367, %v2375
      %v2377 = vadd.f32 %v2376, 1.1283791
      %v2378 = vmul.f32 %v1632, %v2377
      %v2379 = vmul.f32 %v2367, 3.8918573e-05
      %v2380 = vadd.f32 %v2379, 0.001143296
      %v2381 = vmul.f32 %v2367, %v2380
      %v2382 = vadd.f32 %v2381, 0.014752088
      %v2383 = vmul.f32 %v2367, %v2382
      %v2384 = vadd.f32 %v2383, 0.112945676
      %v2385 = vmul.f32 %v2367, %v2384
      %v2386 = vadd.f32 %v2385, 0.4994258
      %v2387 = vmul.f32 %v2367, %v2386
      %v2388 = vadd.f32 %v2387, 1.0
      %v2389 = vrcp.pop %v2388
      %v2390 = vmul.f32 %v2388, %v2389
      %v2391 = vsub.f32 1.0, %v2390
      %v2392 = vmul.f32 %v2389, %v2391
      %v2393 = vadd.f32 %v2389, %v2392
      %vm2394 = vweird.f32 %v2388
      %vm2395 = vweird.f32 %v2389
      %vm2396 = vmor %vm2394, %vm2395
      %v2397 = vsel %vm2396, %v2389, %v2393
      %v2398 = vand.u32 2147483647, %v2388
      %vm2399 = vcmp.eq.f32.partialorder %v2398, 8.507059e+37
      %v2400 = vand.u32 %v2388, 2147483648
      %v2401 = vor.u32 1.1754944e-38, %v2400
      %v2402 = vsel %vm2399, %v2401, %v2397
      %v2403 = vmul.f32 %v2378, %v2402
      %v2404 = vmin.f32 %v2403, 1.0
      %v2405 = vmax.f32 %v2404, -1.0
      %v2406 = vmul.f32 %v1633, %v1633
      %v2407 = vmin.f32 16.0, %v2406
      %v2408 = vmul.f32 %v2407, 2.1237322e-06
      %v2409 = vadd.f32 %v2408, 0.00028619796
      %v2410 = vmul.f32 %v2407, %v2409
      %v2411 = vadd.f32 %v2410, 0.0036580483
      %v2412 = vmul.f32 %v2407, %v2411
      %v2413 = vadd.f32 %v2412, 0.05243302
      %v2414 = vmul.f32 %v2407, %v2413
      %v2415 = vadd.f32 %v2414, 0.18741608
      %v2416 = vmul.f32 %v2407, %v2415
      %v2417 = vadd.f32 %v2416, 1.1283791
      %v2418 = vmul.f32 %v1633, %v2417
      %v2419 = vmul.f32 %v2407, 3.8918573e-05
      %v2420 = vadd.f32 %v2419, 0.001143296
      %v2421 = vmul.f32 %v2407, %v2420
      %v2422 = vadd.f32 %v2421, 0.014752088
      %v2423 = vmul.f32 %v2407, %v2422
      %v2424 = vadd.f32 %v2423, 0.112945676
      %v2425 = vmul.f32 %v2407, %v2424
      %v2426 = vadd.f32 %v2425, 0.4994258
      %v2427 = vmul.f32 %v2407, %v2426
      %v2428 = vadd.f32 %v2427, 1.0
      %v2429 = vrcp.pop %v2428
      %v2430 = vmul.f32 %v2428, %v2429
      %v2431 = vsub.f32 1.0, %v2430
      %v2432 = vmul.f32 %v2429, %v2431
      %v2433 = vadd.f32 %v2429, %v2432
      %vm2434 = vweird.f32 %v2428
      %vm2435 = vweird.f32 %v2429
      %vm2436 = vmor %vm2434, %vm2435
      %v2437 = vsel %vm2436, %v2429, %v2433
      %v2438 = vand.u32 2147483647, %v2428
      %vm2439 = vcmp.eq.f32.partialorder %v2438, 8.507059e+37
      %v2440 = vand.u32 %v2428, 2147483648
      %v2441 = vor.u32 1.1754944e-38, %v2440
      %v2442 = vsel %vm2439, %v2441, %v2437
      %v2443 = vmul.f32 %v2418, %v2442
      %v2444 = vmin.f32 %v2443, 1.0
      %v2445 = vmax.f32 %v2444, -1.0
      %v2446 = vmul.f32 %v1634, %v1634
      %v2447 = vmin.f32 16.0, %v2446
      %v2448 = vmul.f32 %v2447, 2.1237322e-06
      %v2449 = vadd.f32 %v2448, 0.00028619796
      %v2450 = vmul.f32 %v2447, %v2449
      %v2451 = vadd.f32 %v2450, 0.0036580483
      %v2452 = vmul.f32 %v2447, %v2451
      %v2453 = vadd.f32 %v2452, 0.05243302
      %v2454 = vmul.f32 %v2447, %v2453
      %v2455 = vadd.f32 %v2454, 0.18741608
      %v2456 = vmul.f32 %v2447, %v2455
      %v2457 = vadd.f32 %v2456, 1.1283791
      %v2458 = vmul.f32 %v1634, %v2457
      %v2459 = vmul.f32 %v2447, 3.8918573e-05
      %v2460 = vadd.f32 %v2459, 0.001143296
      %v2461 = vmul.f32 %v2447, %v2460
      %v2462 = vadd.f32 %v2461, 0.014752088
      %v2463 = vmul.f32 %v2447, %v2462
      %v2464 = vadd.f32 %v2463, 0.112945676
      %v2465 = vmul.f32 %v2447, %v2464
      %v2466 = vadd.f32 %v2465, 0.4994258
      %v2467 = vmul.f32 %v2447, %v2466
      %v2468 = vadd.f32 %v2467, 1.0
      %v2469 = vrcp.pop %v2468
      %v2470 = vmul.f32 %v2468, %v2469
      %v2471 = vsub.f32 1.0, %v2470
      %v2472 = vmul.f32 %v2469, %v2471
      %v2473 = vadd.f32 %v2469, %v2472
      %vm2474 = vweird.f32 %v2468
      %vm2475 = vweird.f32 %v2469
      %vm2476 = vmor %vm2474, %vm2475
      %v2477 = vsel %vm2476, %v2469, %v2473
      %v2478 = vand.u32 2147483647, %v2468
      %vm2479 = vcmp.eq.f32.partialorder %v2478, 8.507059e+37
      %v2480 = vand.u32 %v2468, 2147483648
      %v2481 = vor.u32 1.1754944e-38, %v2480
      %v2482 = vsel %vm2479, %v2481, %v2477
      %v2483 = vmul.f32 %v2458, %v2482
      %v2484 = vmin.f32 %v2483, 1.0
      %v2485 = vmax.f32 %v2484, -1.0
      %v2486 = vmul.f32 %v1635, %v1635
      %v2487 = vmin.f32 16.0, %v2486
      %v2488 = vmul.f32 %v2487, 2.1237322e-06
      %v2489 = vadd.f32 %v2488, 0.00028619796
      %v2490 = vmul.f32 %v2487, %v2489
      %v2491 = vadd.f32 %v2490, 0.0036580483
      %v2492 = vmul.f32 %v2487, %v2491
      %v2493 = vadd.f32 %v2492, 0.05243302
      %v2494 = vmul.f32 %v2487, %v2493
      %v2495 = vadd.f32 %v2494, 0.18741608
      %v2496 = vmul.f32 %v2487, %v2495
      %v2497 = vadd.f32 %v2496, 1.1283791
      %v2498 = vmul.f32 %v1635, %v2497
      %v2499 = vmul.f32 %v2487, 3.8918573e-05
      %v2500 = vadd.f32 %v2499, 0.001143296
      %v2501 = vmul.f32 %v2487, %v2500
      %v2502 = vadd.f32 %v2501, 0.014752088
      %v2503 = vmul.f32 %v2487, %v2502
      %v2504 = vadd.f32 %v2503, 0.112945676
      %v2505 = vmul.f32 %v2487, %v2504
      %v2506 = vadd.f32 %v2505, 0.4994258
      %v2507 = vmul.f32 %v2487, %v2506
      %v2508 = vadd.f32 %v2507, 1.0
      %v2509 = vrcp.pop %v2508
      %v2510 = vmul.f32 %v2508, %v2509
      %v2511 = vsub.f32 1.0, %v2510
      %v2512 = vmul.f32 %v2509, %v2511
      %v2513 = vadd.f32 %v2509, %v2512
      %vm2514 = vweird.f32 %v2508
      %vm2515 = vweird.f32 %v2509
      %vm2516 = vmor %vm2514, %vm2515
      %v2517 = vsel %vm2516, %v2509, %v2513
      %v2518 = vand.u32 2147483647, %v2508
      %vm2519 = vcmp.eq.f32.partialorder %v2518, 8.507059e+37
      %v2520 = vand.u32 %v2508, 2147483648
      %v2521 = vor.u32 1.1754944e-38, %v2520
      %v2522 = vsel %vm2519, %v2521, %v2517
      %v2523 = vmul.f32 %v2498, %v2522
      %v2524 = vmin.f32 %v2523, 1.0
      %v2525 = vmax.f32 %v2524, -1.0
      %v2526 = vmul.f32 %v1636, %v1636
      %v2527 = vmin.f32 16.0, %v2526
      %v2528 = vmul.f32 %v2527, 2.1237322e-06
      %v2529 = vadd.f32 %v2528, 0.00028619796
      %v2530 = vmul.f32 %v2527, %v2529
      %v2531 = vadd.f32 %v2530, 0.0036580483
      %v2532 = vmul.f32 %v2527, %v2531
      %v2533 = vadd.f32 %v2532, 0.05243302
      %v2534 = vmul.f32 %v2527, %v2533
      %v2535 = vadd.f32 %v2534, 0.18741608
      %v2536 = vmul.f32 %v2527, %v2535
      %v2537 = vadd.f32 %v2536, 1.1283791
      %v2538 = vmul.f32 %v1636, %v2537
      %v2539 = vmul.f32 %v2527, 3.8918573e-05
      %v2540 = vadd.f32 %v2539, 0.001143296
      %v2541 = vmul.f32 %v2527, %v2540
      %v2542 = vadd.f32 %v2541, 0.014752088
      %v2543 = vmul.f32 %v2527, %v2542
      %v2544 = vadd.f32 %v2543, 0.112945676
      %v2545 = vmul.f32 %v2527, %v2544
      %v2546 = vadd.f32 %v2545, 0.4994258
      %v2547 = vmul.f32 %v2527, %v2546
      %v2548 = vadd.f32 %v2547, 1.0
      %v2549 = vrcp.pop %v2548
      %v2550 = vmul.f32 %v2548, %v2549
      %v2551 = vsub.f32 1.0, %v2550
      %v2552 = vmul.f32 %v2549, %v2551
      %v2553 = vadd.f32 %v2549, %v2552
      %vm2554 = vweird.f32 %v2548
      %vm2555 = vweird.f32 %v2549
      %vm2556 = vmor %vm2554, %vm2555
      %v2557 = vsel %vm2556, %v2549, %v2553
      %v2558 = vand.u32 2147483647, %v2548
      %vm2559 = vcmp.eq.f32.partialorder %v2558, 8.507059e+37
      %v2560 = vand.u32 %v2548, 2147483648
      %v2561 = vor.u32 1.1754944e-38, %v2560
      %v2562 = vsel %vm2559, %v2561, %v2557
      %v2563 = vmul.f32 %v2538, %v2562
      %v2564 = vmin.f32 %v2563, 1.0
      %v2565 = vmax.f32 %v2564, -1.0
      %v2566 = vmul.f32 %v1637, %v1637
      %v2567 = vmin.f32 16.0, %v2566
      %v2568 = vmul.f32 %v2567, 2.1237322e-06
      %v2569 = vadd.f32 %v2568, 0.00028619796
      %v2570 = vmul.f32 %v2567, %v2569
      %v2571 = vadd.f32 %v2570, 0.0036580483
      %v2572 = vmul.f32 %v2567, %v2571
      %v2573 = vadd.f32 %v2572, 0.05243302
      %v2574 = vmul.f32 %v2567, %v2573
      %v2575 = vadd.f32 %v2574, 0.18741608
      %v2576 = vmul.f32 %v2567, %v2575
      %v2577 = vadd.f32 %v2576, 1.1283791
      %v2578 = vmul.f32 %v1637, %v2577
      %v2579 = vmul.f32 %v2567, 3.8918573e-05
      %v2580 = vadd.f32 %v2579, 0.001143296
      %v2581 = vmul.f32 %v2567, %v2580
      %v2582 = vadd.f32 %v2581, 0.014752088
      %v2583 = vmul.f32 %v2567, %v2582
      %v2584 = vadd.f32 %v2583, 0.112945676
      %v2585 = vmul.f32 %v2567, %v2584
      %v2586 = vadd.f32 %v2585, 0.4994258
      %v2587 = vmul.f32 %v2567, %v2586
      %v2588 = vadd.f32 %v2587, 1.0
      %v2589 = vrcp.pop %v2588
      %v2590 = vmul.f32 %v2588, %v2589
      %v2591 = vsub.f32 1.0, %v2590
      %v2592 = vmul.f32 %v2589, %v2591
      %v2593 = vadd.f32 %v2589, %v2592
      %vm2594 = vweird.f32 %v2588
      %vm2595 = vweird.f32 %v2589
      %vm2596 = vmor %vm2594, %vm2595
      %v2597 = vsel %vm2596, %v2589, %v2593
      %v2598 = vand.u32 2147483647, %v2588
      %vm2599 = vcmp.eq.f32.partialorder %v2598, 8.507059e+37
      %v2600 = vand.u32 %v2588, 2147483648
      %v2601 = vor.u32 1.1754944e-38, %v2600
      %v2602 = vsel %vm2599, %v2601, %v2597
      %v2603 = vmul.f32 %v2578, %v2602
      %v2604 = vmin.f32 %v2603, 1.0
      %v2605 = vmax.f32 %v2604, -1.0
      %v2606 = vmul.f32 %v1638, %v1638
      %v2607 = vmin.f32 16.0, %v2606
      %v2608 = vmul.f32 %v2607, 2.1237322e-06
      %v2609 = vadd.f32 %v2608, 0.00028619796
      %v2610 = vmul.f32 %v2607, %v2609
      %v2611 = vadd.f32 %v2610, 0.0036580483
      %v2612 = vmul.f32 %v2607, %v2611
      %v2613 = vadd.f32 %v2612, 0.05243302
      %v2614 = vmul.f32 %v2607, %v2613
      %v2615 = vadd.f32 %v2614, 0.18741608
      %v2616 = vmul.f32 %v2607, %v2615
      %v2617 = vadd.f32 %v2616, 1.1283791
      %v2618 = vmul.f32 %v1638, %v2617
      %v2619 = vmul.f32 %v2607, 3.8918573e-05
      %v2620 = vadd.f32 %v2619, 0.001143296
      %v2621 = vmul.f32 %v2607, %v2620
      %v2622 = vadd.f32 %v2621, 0.014752088
      %v2623 = vmul.f32 %v2607, %v2622
      %v2624 = vadd.f32 %v2623, 0.112945676
      %v2625 = vmul.f32 %v2607, %v2624
      %v2626 = vadd.f32 %v2625, 0.4994258
      %v2627 = vmul.f32 %v2607, %v2626
      %v2628 = vadd.f32 %v2627, 1.0
      %v2629 = vrcp.pop %v2628
      %v2630 = vmul.f32 %v2628, %v2629
      %v2631 = vsub.f32 1.0, %v2630
      %v2632 = vmul.f32 %v2629, %v2631
      %v2633 = vadd.f32 %v2629, %v2632
      %vm2634 = vweird.f32 %v2628
      %vm2635 = vweird.f32 %v2629
      %vm2636 = vmor %vm2634, %vm2635
      %v2637 = vsel %vm2636, %v2629, %v2633
      %v2638 = vand.u32 2147483647, %v2628
      %vm2639 = vcmp.eq.f32.partialorder %v2638, 8.507059e+37
      %v2640 = vand.u32 %v2628, 2147483648
      %v2641 = vor.u32 1.1754944e-38, %v2640
      %v2642 = vsel %vm2639, %v2641, %v2637
      %v2643 = vmul.f32 %v2618, %v2642
      %v2644 = vmin.f32 %v2643, 1.0
      %v2645 = vmax.f32 %v2644, -1.0
      %v2646 = vmul.f32 %v1639, %v1639
      %v2647 = vmin.f32 16.0, %v2646
      %v2648 = vmul.f32 %v2647, 2.1237322e-06
      %v2649 = vadd.f32 %v2648, 0.00028619796
      %v2650 = vmul.f32 %v2647, %v2649
      %v2651 = vadd.f32 %v2650, 0.0036580483
      %v2652 = vmul.f32 %v2647, %v2651
      %v2653 = vadd.f32 %v2652, 0.05243302
      %v2654 = vmul.f32 %v2647, %v2653
      %v2655 = vadd.f32 %v2654, 0.18741608
      %v2656 = vmul.f32 %v2647, %v2655
      %v2657 = vadd.f32 %v2656, 1.1283791
      %v2658 = vmul.f32 %v1639, %v2657
      %v2659 = vmul.f32 %v2647, 3.8918573e-05
      %v2660 = vadd.f32 %v2659, 0.001143296
      %v2661 = vmul.f32 %v2647, %v2660
      %v2662 = vadd.f32 %v2661, 0.014752088
      %v2663 = vmul.f32 %v2647, %v2662
      %v2664 = vadd.f32 %v2663, 0.112945676
      %v2665 = vmul.f32 %v2647, %v2664
      %v2666 = vadd.f32 %v2665, 0.4994258
      %v2667 = vmul.f32 %v2647, %v2666
      %v2668 = vadd.f32 %v2667, 1.0
      %v2669 = vrcp.pop %v2668
      %v2670 = vmul.f32 %v2668, %v2669
      %v2671 = vsub.f32 1.0, %v2670
      %v2672 = vmul.f32 %v2669, %v2671
      %v2673 = vadd.f32 %v2669, %v2672
      %vm2674 = vweird.f32 %v2668
      %vm2675 = vweird.f32 %v2669
      %vm2676 = vmor %vm2674, %vm2675
      %v2677 = vsel %vm2676, %v2669, %v2673
      %v2678 = vand.u32 2147483647, %v2668
      %vm2679 = vcmp.eq.f32.partialorder %v2678, 8.507059e+37
      %v2680 = vand.u32 %v2668, 2147483648
      %v2681 = vor.u32 1.1754944e-38, %v2680
      %v2682 = vsel %vm2679, %v2681, %v2677
      %v2683 = vmul.f32 %v2658, %v2682
      %v2684 = vmin.f32 %v2683, 1.0
      %v2685 = vmax.f32 %v2684, -1.0
      %v2686 = vmul.f32 %v1640, %v1640
      %v2687 = vmin.f32 16.0, %v2686
      %v2688 = vmul.f32 %v2687, 2.1237322e-06
      %v2689 = vadd.f32 %v2688, 0.00028619796
      %v2690 = vmul.f32 %v2687, %v2689
      %v2691 = vadd.f32 %v2690, 0.0036580483
      %v2692 = vmul.f32 %v2687, %v2691
      %v2693 = vadd.f32 %v2692, 0.05243302
      %v2694 = vmul.f32 %v2687, %v2693
      %v2695 = vadd.f32 %v2694, 0.18741608
      %v2696 = vmul.f32 %v2687, %v2695
      %v2697 = vadd.f32 %v2696, 1.1283791
      %v2698 = vmul.f32 %v1640, %v2697
      %v2699 = vmul.f32 %v2687, 3.8918573e-05
      %v2700 = vadd.f32 %v2699, 0.001143296
      %v2701 = vmul.f32 %v2687, %v2700
      %v2702 = vadd.f32 %v2701, 0.014752088
      %v2703 = vmul.f32 %v2687, %v2702
      %v2704 = vadd.f32 %v2703, 0.112945676
      %v2705 = vmul.f32 %v2687, %v2704
      %v2706 = vadd.f32 %v2705, 0.4994258
      %v2707 = vmul.f32 %v2687, %v2706
      %v2708 = vadd.f32 %v2707, 1.0
      %v2709 = vrcp.pop %v2708
      %v2710 = vmul.f32 %v2708, %v2709
      %v2711 = vsub.f32 1.0, %v2710
      %v2712 = vmul.f32 %v2709, %v2711
      %v2713 = vadd.f32 %v2709, %v2712
      %vm2714 = vweird.f32 %v2708
      %vm2715 = vweird.f32 %v2709
      %vm2716 = vmor %vm2714, %vm2715
      %v2717 = vsel %vm2716, %v2709, %v2713
      %v2718 = vand.u32 2147483647, %v2708
      %vm2719 = vcmp.eq.f32.partialorder %v2718, 8.507059e+37
      %v2720 = vand.u32 %v2708, 2147483648
      %v2721 = vor.u32 1.1754944e-38, %v2720
      %v2722 = vsel %vm2719, %v2721, %v2717
      %v2723 = vmul.f32 %v2698, %v2722
      %v2724 = vmin.f32 %v2723, 1.0
      %v2725 = vmax.f32 %v2724, -1.0
      %v2726 = vmul.f32 %v1641, %v1641
      %v2727 = vmin.f32 16.0, %v2726
      %v2728 = vmul.f32 %v2727, 2.1237322e-06
      %v2729 = vadd.f32 %v2728, 0.00028619796
      %v2730 = vmul.f32 %v2727, %v2729
      %v2731 = vadd.f32 %v2730, 0.0036580483
      %v2732 = vmul.f32 %v2727, %v2731
      %v2733 = vadd.f32 %v2732, 0.05243302
      %v2734 = vmul.f32 %v2727, %v2733
      %v2735 = vadd.f32 %v2734, 0.18741608
      %v2736 = vmul.f32 %v2727, %v2735
      %v2737 = vadd.f32 %v2736, 1.1283791
      %v2738 = vmul.f32 %v1641, %v2737
      %v2739 = vmul.f32 %v2727, 3.8918573e-05
      %v2740 = vadd.f32 %v2739, 0.001143296
      %v2741 = vmul.f32 %v2727, %v2740
      %v2742 = vadd.f32 %v2741, 0.014752088
      %v2743 = vmul.f32 %v2727, %v2742
      %v2744 = vadd.f32 %v2743, 0.112945676
      %v2745 = vmul.f32 %v2727, %v2744
      %v2746 = vadd.f32 %v2745, 0.4994258
      %v2747 = vmul.f32 %v2727, %v2746
      %v2748 = vadd.f32 %v2747, 1.0
      %v2749 = vrcp.pop %v2748
      %v2750 = vmul.f32 %v2748, %v2749
      %v2751 = vsub.f32 1.0, %v2750
      %v2752 = vmul.f32 %v2749, %v2751
      %v2753 = vadd.f32 %v2749, %v2752
      %vm2754 = vweird.f32 %v2748
      %vm2755 = vweird.f32 %v2749
      %vm2756 = vmor %vm2754, %vm2755
      %v2757 = vsel %vm2756, %v2749, %v2753
      %v2758 = vand.u32 2147483647, %v2748
      %vm2759 = vcmp.eq.f32.partialorder %v2758, 8.507059e+37
      %v2760 = vand.u32 %v2748, 2147483648
      %v2761 = vor.u32 1.1754944e-38, %v2760
      %v2762 = vsel %vm2759, %v2761, %v2757
      %v2763 = vmul.f32 %v2738, %v2762
      %v2764 = vmin.f32 %v2763, 1.0
      %v2765 = vmax.f32 %v2764, -1.0
      %v2766 = vmul.f32 %v1642, %v1642
      %v2767 = vmin.f32 16.0, %v2766
      %v2768 = vmul.f32 %v2767, 2.1237322e-06
      %v2769 = vadd.f32 %v2768, 0.00028619796
      %v2770 = vmul.f32 %v2767, %v2769
      %v2771 = vadd.f32 %v2770, 0.0036580483
      %v2772 = vmul.f32 %v2767, %v2771
      %v2773 = vadd.f32 %v2772, 0.05243302
      %v2774 = vmul.f32 %v2767, %v2773
      %v2775 = vadd.f32 %v2774, 0.18741608
      %v2776 = vmul.f32 %v2767, %v2775
      %v2777 = vadd.f32 %v2776, 1.1283791
      %v2778 = vmul.f32 %v1642, %v2777
      %v2779 = vmul.f32 %v2767, 3.8918573e-05
      %v2780 = vadd.f32 %v2779, 0.001143296
      %v2781 = vmul.f32 %v2767, %v2780
      %v2782 = vadd.f32 %v2781, 0.014752088
      %v2783 = vmul.f32 %v2767, %v2782
      %v2784 = vadd.f32 %v2783, 0.112945676
      %v2785 = vmul.f32 %v2767, %v2784
      %v2786 = vadd.f32 %v2785, 0.4994258
      %v2787 = vmul.f32 %v2767, %v2786
      %v2788 = vadd.f32 %v2787, 1.0
      %v2789 = vrcp.pop %v2788
      %v2790 = vmul.f32 %v2788, %v2789
      %v2791 = vsub.f32 1.0, %v2790
      %v2792 = vmul.f32 %v2789, %v2791
      %v2793 = vadd.f32 %v2789, %v2792
      %vm2794 = vweird.f32 %v2788
      %vm2795 = vweird.f32 %v2789
      %vm2796 = vmor %vm2794, %vm2795
      %v2797 = vsel %vm2796, %v2789, %v2793
      %v2798 = vand.u32 2147483647, %v2788
      %vm2799 = vcmp.eq.f32.partialorder %v2798, 8.507059e+37
      %v2800 = vand.u32 %v2788, 2147483648
      %v2801 = vor.u32 1.1754944e-38, %v2800
      %v2802 = vsel %vm2799, %v2801, %v2797
      %v2803 = vmul.f32 %v2778, %v2802
      %v2804 = vmin.f32 %v2803, 1.0
      %v2805 = vmax.f32 %v2804, -1.0
      %v2806 = vmul.f32 %v1643, %v1643
      %v2807 = vmin.f32 16.0, %v2806
      %v2808 = vmul.f32 %v2807, 2.1237322e-06
      %v2809 = vadd.f32 %v2808, 0.00028619796
      %v2810 = vmul.f32 %v2807, %v2809
      %v2811 = vadd.f32 %v2810, 0.0036580483
      %v2812 = vmul.f32 %v2807, %v2811
      %v2813 = vadd.f32 %v2812, 0.05243302
      %v2814 = vmul.f32 %v2807, %v2813
      %v2815 = vadd.f32 %v2814, 0.18741608
      %v2816 = vmul.f32 %v2807, %v2815
      %v2817 = vadd.f32 %v2816, 1.1283791
      %v2818 = vmul.f32 %v1643, %v2817
      %v2819 = vmul.f32 %v2807, 3.8918573e-05
      %v2820 = vadd.f32 %v2819, 0.001143296
      %v2821 = vmul.f32 %v2807, %v2820
      %v2822 = vadd.f32 %v2821, 0.014752088
      %v2823 = vmul.f32 %v2807, %v2822
      %v2824 = vadd.f32 %v2823, 0.112945676
      %v2825 = vmul.f32 %v2807, %v2824
      %v2826 = vadd.f32 %v2825, 0.4994258
      %v2827 = vmul.f32 %v2807, %v2826
      %v2828 = vadd.f32 %v2827, 1.0
      %v2829 = vrcp.pop %v2828
      %v2830 = vmul.f32 %v2828, %v2829
      %v2831 = vsub.f32 1.0, %v2830
      %v2832 = vmul.f32 %v2829, %v2831
      %v2833 = vadd.f32 %v2829, %v2832
      %vm2834 = vweird.f32 %v2828
      %vm2835 = vweird.f32 %v2829
      %vm2836 = vmor %vm2834, %vm2835
      %v2837 = vsel %vm2836, %v2829, %v2833
      %v2838 = vand.u32 2147483647, %v2828
      %vm2839 = vcmp.eq.f32.partialorder %v2838, 8.507059e+37
      %v2840 = vand.u32 %v2828, 2147483648
      %v2841 = vor.u32 1.1754944e-38, %v2840
      %v2842 = vsel %vm2839, %v2841, %v2837
      %v2843 = vmul.f32 %v2818, %v2842
      %v2844 = vmin.f32 %v2843, 1.0
      %v2845 = vmax.f32 %v2844, -1.0
      %v2846 = vmul.f32 %v1644, %v1644
      %v2847 = vmin.f32 16.0, %v2846
      %v2848 = vmul.f32 %v2847, 2.1237322e-06
      %v2849 = vadd.f32 %v2848, 0.00028619796
      %v2850 = vmul.f32 %v2847, %v2849
      %v2851 = vadd.f32 %v2850, 0.0036580483
      %v2852 = vmul.f32 %v2847, %v2851
      %v2853 = vadd.f32 %v2852, 0.05243302
      %v2854 = vmul.f32 %v2847, %v2853
      %v2855 = vadd.f32 %v2854, 0.18741608
      %v2856 = vmul.f32 %v2847, %v2855
      %v2857 = vadd.f32 %v2856, 1.1283791
      %v2858 = vmul.f32 %v1644, %v2857
      %v2859 = vmul.f32 %v2847, 3.8918573e-05
      %v2860 = vadd.f32 %v2859, 0.001143296
      %v2861 = vmul.f32 %v2847, %v2860
      %v2862 = vadd.f32 %v2861, 0.014752088
      %v2863 = vmul.f32 %v2847, %v2862
      %v2864 = vadd.f32 %v2863, 0.112945676
      %v2865 = vmul.f32 %v2847, %v2864
      %v2866 = vadd.f32 %v2865, 0.4994258
      %v2867 = vmul.f32 %v2847, %v2866
      %v2868 = vadd.f32 %v2867, 1.0
      %v2869 = vrcp.pop %v2868
      %v2870 = vmul.f32 %v2868, %v2869
      %v2871 = vsub.f32 1.0, %v2870
      %v2872 = vmul.f32 %v2869, %v2871
      %v2873 = vadd.f32 %v2869, %v2872
      %vm2874 = vweird.f32 %v2868
      %vm2875 = vweird.f32 %v2869
      %vm2876 = vmor %vm2874, %vm2875
      %v2877 = vsel %vm2876, %v2869, %v2873
      %v2878 = vand.u32 2147483647, %v2868
      %vm2879 = vcmp.eq.f32.partialorder %v2878, 8.507059e+37
      %v2880 = vand.u32 %v2868, 2147483648
      %v2881 = vor.u32 1.1754944e-38, %v2880
      %v2882 = vsel %vm2879, %v2881, %v2877
      %v2883 = vmul.f32 %v2858, %v2882
      %v2884 = vmin.f32 %v2883, 1.0
      %v2885 = vmax.f32 %v2884, -1.0
      %v2886 = vmul.f32 %v1645, %v1645
      %v2887 = vmin.f32 16.0, %v2886
      %v2888 = vmul.f32 %v2887, 2.1237322e-06
      %v2889 = vadd.f32 %v2888, 0.00028619796
      %v2890 = vmul.f32 %v2887, %v2889
      %v2891 = vadd.f32 %v2890, 0.0036580483
      %v2892 = vmul.f32 %v2887, %v2891
      %v2893 = vadd.f32 %v2892, 0.05243302
      %v2894 = vmul.f32 %v2887, %v2893
      %v2895 = vadd.f32 %v2894, 0.18741608
      %v2896 = vmul.f32 %v2887, %v2895
      %v2897 = vadd.f32 %v2896, 1.1283791
      %v2898 = vmul.f32 %v1645, %v2897
      %v2899 = vmul.f32 %v2887, 3.8918573e-05
      %v2900 = vadd.f32 %v2899, 0.001143296
      %v2901 = vmul.f32 %v2887, %v2900
      %v2902 = vadd.f32 %v2901, 0.014752088
      %v2903 = vmul.f32 %v2887, %v2902
      %v2904 = vadd.f32 %v2903, 0.112945676
      %v2905 = vmul.f32 %v2887, %v2904
      %v2906 = vadd.f32 %v2905, 0.4994258
      %v2907 = vmul.f32 %v2887, %v2906
      %v2908 = vadd.f32 %v2907, 1.0
      %v2909 = vrcp.pop %v2908
      %v2910 = vmul.f32 %v2908, %v2909
      %v2911 = vsub.f32 1.0, %v2910
      %v2912 = vmul.f32 %v2909, %v2911
      %v2913 = vadd.f32 %v2909, %v2912
      %vm2914 = vweird.f32 %v2908
      %vm2915 = vweird.f32 %v2909
      %vm2916 = vmor %vm2914, %vm2915
      %v2917 = vsel %vm2916, %v2909, %v2913
      %v2918 = vand.u32 2147483647, %v2908
      %vm2919 = vcmp.eq.f32.partialorder %v2918, 8.507059e+37
      %v2920 = vand.u32 %v2908, 2147483648
      %v2921 = vor.u32 1.1754944e-38, %v2920
      %v2922 = vsel %vm2919, %v2921, %v2917
      %v2923 = vmul.f32 %v2898, %v2922
      %v2924 = vmin.f32 %v2923, 1.0
      %v2925 = vmax.f32 %v2924, -1.0
      %v2926 = vadd.f32 %v1685, 1.0
      %v2927 = vadd.f32 %v1725, 1.0
      %v2928 = vadd.f32 %v1765, 1.0
      %v2929 = vadd.f32 %v1805, 1.0
      %v2930 = vadd.f32 %v1845, 1.0
      %v2931 = vadd.f32 %v1885, 1.0
      %v2932 = vadd.f32 %v1925, 1.0
      %v2933 = vadd.f32 %v1965, 1.0
      %v2934 = vadd.f32 %v2005, 1.0
      %v2935 = vadd.f32 %v2045, 1.0
      %v2936 = vadd.f32 %v2085, 1.0
      %v2937 = vadd.f32 %v2125, 1.0
      %v2938 = vadd.f32 %v2165, 1.0
      %v2939 = vadd.f32 %v2205, 1.0
      %v2940 = vadd.f32 %v2245, 1.0
      %v2941 = vadd.f32 %v2285, 1.0
      %v2942 = vadd.f32 %v2325, 1.0
      %v2943 = vadd.f32 %v2365, 1.0
      %v2944 = vadd.f32 %v2405, 1.0
      %v2945 = vadd.f32 %v2445, 1.0
      %v2946 = vadd.f32 %v2485, 1.0
      %v2947 = vadd.f32 %v2525, 1.0
      %v2948 = vadd.f32 %v2565, 1.0
      %v2949 = vadd.f32 %v2605, 1.0
      %v2950 = vadd.f32 %v2645, 1.0
      %v2951 = vadd.f32 %v2685, 1.0
      %v2952 = vadd.f32 %v2725, 1.0
      %v2953 = vadd.f32 %v2765, 1.0
      %v2954 = vadd.f32 %v2805, 1.0
      %v2955 = vadd.f32 %v2845, 1.0
      %v2956 = vadd.f32 %v2885, 1.0
      %v2957 = vadd.f32 %v2925, 1.0
      %v2958 = vmul.f32 %v1582, %v2926
      %v2959 = vmul.f32 %v1583, %v2927
      %v2960 = vmul.f32 %v1584, %v2928
      %v2961 = vmul.f32 %v1585, %v2929
      %v2962 = vmul.f32 %v1586, %v2930
      %v2963 = vmul.f32 %v1587, %v2931
      %v2964 = vmul.f32 %v1588, %v2932
      %v2965 = vmul.f32 %v1589, %v2933
      %v2966 = vmul.f32 %v1590, %v2934
      %v2967 = vmul.f32 %v1591, %v2935
      %v2968 = vmul.f32 %v1592, %v2936
      %v2969 = vmul.f32 %v1593, %v2937
      %v2970 = vmul.f32 %v1594, %v2938
      %v2971 = vmul.f32 %v1595, %v2939
      %v2972 = vmul.f32 %v1596, %v2940
      %v2973 = vmul.f32 %v1597, %v2941
      %v2974 = vmul.f32 %v1598, %v2942
      %v2975 = vmul.f32 %v1599, %v2943
      %v2976 = vmul.f32 %v1600, %v2944
      %v2977 = vmul.f32 %v1601, %v2945
      %v2978 = vmul.f32 %v1602, %v2946
      %v2979 = vmul.f32 %v1603, %v2947
      %v2980 = vmul.f32 %v1604, %v2948
      %v2981 = vmul.f32 %v1605, %v2949
      %v2982 = vmul.f32 %v1606, %v2950
      %v2983 = vmul.f32 %v1607, %v2951
      %v2984 = vmul.f32 %v1608, %v2952
      %v2985 = vmul.f32 %v1609, %v2953
      %v2986 = vmul.f32 %v1610, %v2954
      %v2987 = vmul.f32 %v1611, %v2955
      %v2988 = vmul.f32 %v1612, %v2956
      %v2989 = vmul.f32 %v1613, %v2957
      %v2990 = vld [vmem:[%s3] sm:$0xff]
      %v2991 = vld [vmem:[%s3 + $0x8] sm:$0xff]
      %v2992 = vld [vmem:[%s3 + $0x10] sm:$0xff]
      %v2993 = vld [vmem:[%s3 + $0x18] sm:$0xff]
      %v2994 = vld [vmem:[%s3 + $0x20] sm:$0xff]
      %v2995 = vld [vmem:[%s3 + $0x28] sm:$0xff]
      %v2996 = vld [vmem:[%s3 + $0x30] sm:$0xff]
      %v2997 = vld [vmem:[%s3 + $0x38] sm:$0xff]
      %v2998 = vld [vmem:[%s3 + $0x40] sm:$0xff]
      %v2999 = vld [vmem:[%s3 + $0x48] sm:$0xff]
      %v3000 = vld [vmem:[%s3 + $0x50] sm:$0xff]
      %v3001 = vld [vmem:[%s3 + $0x58] sm:$0xff]
      %v3002 = vld [vmem:[%s3 + $0x60] sm:$0xff]
      %v3003 = vld [vmem:[%s3 + $0x68] sm:$0xff]
      %v3004 = vld [vmem:[%s3 + $0x70] sm:$0xff]
      %v3005 = vld [vmem:[%s3 + $0x78] sm:$0xff]
      %v3006 = vld [vmem:[%s4] sm:$0x1]
      %v3008 = vperm.slane %v3006, 0
      %v3010 = vand.u32 %v3005, 4294901760
      %3011 = vmatpush.msra.mxu0 %v3010
      %v3012 = vand.u32 %v3004, 4294901760
      %3013 = vmatpush.msra.mxu0 %v3012
      %v3014 = vand.u32 %v3003, 4294901760
      %3015 = vmatpush.msra.mxu0 %v3014
      %v3016 = vand.u32 %v3002, 4294901760
      %3017 = vmatpush.msra.mxu0 %v3016
      %v3018 = vand.u32 %v3001, 4294901760
      %3019 = vmatpush.msra.mxu0 %v3018
      %v3020 = vand.u32 %v3000, 4294901760
      %3021 = vmatpush.msra.mxu0 %v3020
      %v3022 = vand.u32 %v2999, 4294901760
      %3023 = vmatpush.msra.mxu0 %v3022
      %v3024 = vand.u32 %v2998, 4294901760
      %3025 = vmatpush.msra.mxu0 %v3024
      %v3026 = vand.u32 %v2997, 4294901760
      %3027 = vmatpush.msra.mxu0 %v3026
      %v3028 = vand.u32 %v2996, 4294901760
      %3029 = vmatpush.msra.mxu0 %v3028
      %v3030 = vand.u32 %v2995, 4294901760
      %3031 = vmatpush.msra.mxu0 %v3030
      %v3032 = vand.u32 %v2994, 4294901760
      %3033 = vmatpush.msra.mxu0 %v3032
      %v3034 = vand.u32 %v2993, 4294901760
      %3035 = vmatpush.msra.mxu0 %v3034
      %v3036 = vand.u32 %v2992, 4294901760
      %3037 = vmatpush.msra.mxu0 %v3036
      %v3038 = vand.u32 %v2991, 4294901760
      %3039 = vmatpush.msra.mxu0 %v3038
      %v3040 = vand.u32 %v2990, 4294901760
      %3041 = vmatpush.msra.mxu0 %v3040
      %v3042 = vand.u32 %v2958, 4294901760
      %v3043 = vsub.f32 %v2958, %v3042
      %v3044 = vand.u32 %v3043, 4294901760
      %v3045 = vsub.f32 %v3043, %v3044
      %v3046 = vand.u32 %v3045, 4294901760
      %3047 = vmatmul.f32.gmra.mxu0 %v3046
      %v3048 = vpop.f32.mrf.mxu0
      %v3049 = vadd.f32 %v3008, %v3048
      %v3050 = vand.u32 %v2959, 4294901760
      %v3051 = vsub.f32 %v2959, %v3050
      %v3052 = vand.u32 %v3051, 4294901760
      %v3053 = vsub.f32 %v3051, %v3052
      %v3054 = vand.u32 %v3053, 4294901760
      %3055 = vmatmul.f32.gmra.mxu0 %v3054
      %v3056 = vpop.f32.mrf.mxu0
      %v3057 = vadd.f32 %v3008, %v3056
      %v3058 = vand.u32 %v2960, 4294901760
      %v3059 = vsub.f32 %v2960, %v3058
      %v3060 = vand.u32 %v3059, 4294901760
      %v3061 = vsub.f32 %v3059, %v3060
      %v3062 = vand.u32 %v3061, 4294901760
      %3063 = vmatmul.f32.gmra.mxu0 %v3062
      %v3064 = vpop.f32.mrf.mxu0
      %v3065 = vadd.f32 %v3008, %v3064
      %v3066 = vand.u32 %v2961, 4294901760
      %v3067 = vsub.f32 %v2961, %v3066
      %v3068 = vand.u32 %v3067, 4294901760
      %v3069 = vsub.f32 %v3067, %v3068
      %v3070 = vand.u32 %v3069, 4294901760
      %3071 = vmatmul.f32.gmra.mxu0 %v3070
      %v3072 = vpop.f32.mrf.mxu0
      %v3073 = vadd.f32 %v3008, %v3072
      %v3074 = vand.u32 %v2962, 4294901760
      %v3075 = vsub.f32 %v2962, %v3074
      %v3076 = vand.u32 %v3075, 4294901760
      %v3077 = vsub.f32 %v3075, %v3076
      %v3078 = vand.u32 %v3077, 4294901760
      %3079 = vmatmul.f32.gmra.mxu0 %v3078
      %v3080 = vpop.f32.mrf.mxu0
      %v3081 = vadd.f32 %v3008, %v3080
      %v3082 = vand.u32 %v2963, 4294901760
      %v3083 = vsub.f32 %v2963, %v3082
      %v3084 = vand.u32 %v3083, 4294901760
      %v3085 = vsub.f32 %v3083, %v3084
      %v3086 = vand.u32 %v3085, 4294901760
      %3087 = vmatmul.f32.gmra.mxu0 %v3086
      %v3088 = vpop.f32.mrf.mxu0
      %v3089 = vadd.f32 %v3008, %v3088
      %v3090 = vand.u32 %v2964, 4294901760
      %v3091 = vsub.f32 %v2964, %v3090
      %v3092 = vand.u32 %v3091, 4294901760
      %v3093 = vsub.f32 %v3091, %v3092
      %v3094 = vand.u32 %v3093, 4294901760
      %3095 = vmatmul.f32.gmra.mxu0 %v3094
      %v3096 = vpop.f32.mrf.mxu0
      %v3097 = vadd.f32 %v3008, %v3096
      %v3098 = vand.u32 %v2965, 4294901760
      %v3099 = vsub.f32 %v2965, %v3098
      %v3100 = vand.u32 %v3099, 4294901760
      %v3101 = vsub.f32 %v3099, %v3100
      %v3102 = vand.u32 %v3101, 4294901760
      %3103 = vmatmul.f32.gmra.mxu0 %v3102
      %v3104 = vpop.f32.mrf.mxu0
      %v3105 = vadd.f32 %v3008, %v3104
      %v3106 = vand.u32 %v2966, 4294901760
      %v3107 = vsub.f32 %v2966, %v3106
      %v3108 = vand.u32 %v3107, 4294901760
      %v3109 = vsub.f32 %v3107, %v3108
      %v3110 = vand.u32 %v3109, 4294901760
      %3111 = vmatmul.f32.gmra.mxu0 %v3110
      %v3112 = vpop.f32.mrf.mxu0
      %v3113 = vadd.f32 %v3008, %v3112
      %v3114 = vand.u32 %v2967, 4294901760
      %v3115 = vsub.f32 %v2967, %v3114
      %v3116 = vand.u32 %v3115, 4294901760
      %v3117 = vsub.f32 %v3115, %v3116
      %v3118 = vand.u32 %v3117, 4294901760
      %3119 = vmatmul.f32.gmra.mxu0 %v3118
      %v3120 = vpop.f32.mrf.mxu0
      %v3121 = vadd.f32 %v3008, %v3120
      %v3122 = vand.u32 %v2968, 4294901760
      %v3123 = vsub.f32 %v2968, %v3122
      %v3124 = vand.u32 %v3123, 4294901760
      %v3125 = vsub.f32 %v3123, %v3124
      %v3126 = vand.u32 %v3125, 4294901760
      %3127 = vmatmul.f32.gmra.mxu0 %v3126
      %v3128 = vpop.f32.mrf.mxu0
      %v3129 = vadd.f32 %v3008, %v3128
      %v3130 = vand.u32 %v2969, 4294901760
      %v3131 = vsub.f32 %v2969, %v3130
      %v3132 = vand.u32 %v3131, 4294901760
      %v3133 = vsub.f32 %v3131, %v3132
      %v3134 = vand.u32 %v3133, 4294901760
      %3135 = vmatmul.f32.gmra.mxu0 %v3134
      %v3136 = vpop.f32.mrf.mxu0
      %v3137 = vadd.f32 %v3008, %v3136
      %v3138 = vand.u32 %v2970, 4294901760
      %v3139 = vsub.f32 %v2970, %v3138
      %v3140 = vand.u32 %v3139, 4294901760
      %v3141 = vsub.f32 %v3139, %v3140
      %v3142 = vand.u32 %v3141, 4294901760
      %3143 = vmatmul.f32.gmra.mxu0 %v3142
      %v3144 = vpop.f32.mrf.mxu0
      %v3145 = vadd.f32 %v3008, %v3144
      %v3146 = vand.u32 %v2971, 4294901760
      %v3147 = vsub.f32 %v2971, %v3146
      %v3148 = vand.u32 %v3147, 4294901760
      %v3149 = vsub.f32 %v3147, %v3148
      %v3150 = vand.u32 %v3149, 4294901760
      %3151 = vmatmul.f32.gmra.mxu0 %v3150
      %v3152 = vpop.f32.mrf.mxu0
      %v3153 = vadd.f32 %v3008, %v3152
      %v3154 = vand.u32 %v2972, 4294901760
      %v3155 = vsub.f32 %v2972, %v3154
      %v3156 = vand.u32 %v3155, 4294901760
      %v3157 = vsub.f32 %v3155, %v3156
      %v3158 = vand.u32 %v3157, 4294901760
      %3159 = vmatmul.f32.gmra.mxu0 %v3158
      %v3160 = vpop.f32.mrf.mxu0
      %v3161 = vadd.f32 %v3008, %v3160
      %v3162 = vand.u32 %v2973, 4294901760
      %v3163 = vsub.f32 %v2973, %v3162
      %v3164 = vand.u32 %v3163, 4294901760
      %v3165 = vsub.f32 %v3163, %v3164
      %v3166 = vand.u32 %v3165, 4294901760
      %3167 = vmatmul.f32.gmra.mxu0 %v3166
      %v3168 = vpop.f32.mrf.mxu0
      %v3169 = vadd.f32 %v3008, %v3168
      %v3170 = vand.u32 %v2974, 4294901760
      %v3171 = vsub.f32 %v2974, %v3170
      %v3172 = vand.u32 %v3171, 4294901760
      %v3173 = vsub.f32 %v3171, %v3172
      %v3174 = vand.u32 %v3173, 4294901760
      %3175 = vmatmul.f32.gmra.mxu0 %v3174
      %v3176 = vpop.f32.mrf.mxu0
      %v3177 = vadd.f32 %v3008, %v3176
      %v3178 = vand.u32 %v2975, 4294901760
      %v3179 = vsub.f32 %v2975, %v3178
      %v3180 = vand.u32 %v3179, 4294901760
      %v3181 = vsub.f32 %v3179, %v3180
      %v3182 = vand.u32 %v3181, 4294901760
      %3183 = vmatmul.f32.gmra.mxu0 %v3182
      %v3184 = vpop.f32.mrf.mxu0
      %v3185 = vadd.f32 %v3008, %v3184
      %v3186 = vand.u32 %v2976, 4294901760
      %v3187 = vsub.f32 %v2976, %v3186
      %v3188 = vand.u32 %v3187, 4294901760
      %v3189 = vsub.f32 %v3187, %v3188
      %v3190 = vand.u32 %v3189, 4294901760
      %3191 = vmatmul.f32.gmra.mxu0 %v3190
      %v3192 = vpop.f32.mrf.mxu0
      %v3193 = vadd.f32 %v3008, %v3192
      %v3194 = vand.u32 %v2977, 4294901760
      %v3195 = vsub.f32 %v2977, %v3194
      %v3196 = vand.u32 %v3195, 4294901760
      %v3197 = vsub.f32 %v3195, %v3196
      %v3198 = vand.u32 %v3197, 4294901760
      %3199 = vmatmul.f32.gmra.mxu0 %v3198
      %v3200 = vpop.f32.mrf.mxu0
      %v3201 = vadd.f32 %v3008, %v3200
      %v3202 = vand.u32 %v2978, 4294901760
      %v3203 = vsub.f32 %v2978, %v3202
      %v3204 = vand.u32 %v3203, 4294901760
      %v3205 = vsub.f32 %v3203, %v3204
      %v3206 = vand.u32 %v3205, 4294901760
      %3207 = vmatmul.f32.gmra.mxu0 %v3206
      %v3208 = vpop.f32.mrf.mxu0
      %v3209 = vadd.f32 %v3008, %v3208
      %v3210 = vand.u32 %v2979, 4294901760
      %v3211 = vsub.f32 %v2979, %v3210
      %v3212 = vand.u32 %v3211, 4294901760
      %v3213 = vsub.f32 %v3211, %v3212
      %v3214 = vand.u32 %v3213, 4294901760
      %3215 = vmatmul.f32.gmra.mxu0 %v3214
      %v3216 = vpop.f32.mrf.mxu0
      %v3217 = vadd.f32 %v3008, %v3216
      %v3218 = vand.u32 %v2980, 4294901760
      %v3219 = vsub.f32 %v2980, %v3218
      %v3220 = vand.u32 %v3219, 4294901760
      %v3221 = vsub.f32 %v3219, %v3220
      %v3222 = vand.u32 %v3221, 4294901760
      %3223 = vmatmul.f32.gmra.mxu0 %v3222
      %v3224 = vpop.f32.mrf.mxu0
      %v3225 = vadd.f32 %v3008, %v3224
      %v3226 = vand.u32 %v2981, 4294901760
      %v3227 = vsub.f32 %v2981, %v3226
      %v3228 = vand.u32 %v3227, 4294901760
      %v3229 = vsub.f32 %v3227, %v3228
      %v3230 = vand.u32 %v3229, 4294901760
      %3231 = vmatmul.f32.gmra.mxu0 %v3230
      %v3232 = vpop.f32.mrf.mxu0
      %v3233 = vadd.f32 %v3008, %v3232
      %v3234 = vand.u32 %v2982, 4294901760
      %v3235 = vsub.f32 %v2982, %v3234
      %v3236 = vand.u32 %v3235, 4294901760
      %v3237 = vsub.f32 %v3235, %v3236
      %v3238 = vand.u32 %v3237, 4294901760
      %3239 = vmatmul.f32.gmra.mxu0 %v3238
      %v3240 = vpop.f32.mrf.mxu0
      %v3241 = vadd.f32 %v3008, %v3240
      %v3242 = vand.u32 %v2983, 4294901760
      %v3243 = vsub.f32 %v2983, %v3242
      %v3244 = vand.u32 %v3243, 4294901760
      %v3245 = vsub.f32 %v3243, %v3244
      %v3246 = vand.u32 %v3245, 4294901760
      %3247 = vmatmul.f32.gmra.mxu0 %v3246
      %v3248 = vpop.f32.mrf.mxu0
      %v3249 = vadd.f32 %v3008, %v3248
      %v3250 = vand.u32 %v2984, 4294901760
      %v3251 = vsub.f32 %v2984, %v3250
      %v3252 = vand.u32 %v3251, 4294901760
      %v3253 = vsub.f32 %v3251, %v3252
      %v3254 = vand.u32 %v3253, 4294901760
      %3255 = vmatmul.f32.gmra.mxu0 %v3254
      %v3256 = vpop.f32.mrf.mxu0
      %v3257 = vadd.f32 %v3008, %v3256
      %v3258 = vand.u32 %v2985, 4294901760
      %v3259 = vsub.f32 %v2985, %v3258
      %v3260 = vand.u32 %v3259, 4294901760
      %v3261 = vsub.f32 %v3259, %v3260
      %v3262 = vand.u32 %v3261, 4294901760
      %3263 = vmatmul.f32.gmra.mxu0 %v3262
      %v3264 = vpop.f32.mrf.mxu0
      %v3265 = vadd.f32 %v3008, %v3264
      %v3266 = vand.u32 %v2986, 4294901760
      %v3267 = vsub.f32 %v2986, %v3266
      %v3268 = vand.u32 %v3267, 4294901760
      %v3269 = vsub.f32 %v3267, %v3268
      %v3270 = vand.u32 %v3269, 4294901760
      %3271 = vmatmul.f32.gmra.mxu0 %v3270
      %v3272 = vpop.f32.mrf.mxu0
      %v3273 = vadd.f32 %v3008, %v3272
      %v3274 = vand.u32 %v2987, 4294901760
      %v3275 = vsub.f32 %v2987, %v3274
      %v3276 = vand.u32 %v3275, 4294901760
      %v3277 = vsub.f32 %v3275, %v3276
      %v3278 = vand.u32 %v3277, 4294901760
      %3279 = vmatmul.f32.gmra.mxu0 %v3278
      %v3280 = vpop.f32.mrf.mxu0
      %v3281 = vadd.f32 %v3008, %v3280
      %v3282 = vand.u32 %v2988, 4294901760
      %v3283 = vsub.f32 %v2988, %v3282
      %v3284 = vand.u32 %v3283, 4294901760
      %v3285 = vsub.f32 %v3283, %v3284
      %v3286 = vand.u32 %v3285, 4294901760
      %3287 = vmatmul.f32.gmra.mxu0 %v3286
      %v3288 = vpop.f32.mrf.mxu0
      %v3289 = vadd.f32 %v3008, %v3288
      %v3290 = vand.u32 %v2989, 4294901760
      %v3291 = vsub.f32 %v2989, %v3290
      %v3292 = vand.u32 %v3291, 4294901760
      %v3293 = vsub.f32 %v3291, %v3292
      %v3294 = vand.u32 %v3293, 4294901760
      %3295 = vmatmul.f32.gmra.mxu0 %v3294
      %v3296 = vpop.f32.mrf.mxu0
      %v3297 = vadd.f32 %v3008, %v3296
      %3298 = vdwg.mxu0
      %v3299 = vand.u32 %v3005, 4294901760
      %v3300 = vsub.f32 %v3005, %v3299
      %v3301 = vand.u32 %v3300, 4294901760
      %v3302 = vsub.f32 %v3300, %v3301
      %v3303 = vand.u32 %v3302, 4294901760
      %3304 = vmatpush.msra.mxu0 %v3303
      %v3305 = vand.u32 %v3004, 4294901760
      %v3306 = vsub.f32 %v3004, %v3305
      %v3307 = vand.u32 %v3306, 4294901760
      %v3308 = vsub.f32 %v3306, %v3307
      %v3309 = vand.u32 %v3308, 4294901760
      %3310 = vmatpush.msra.mxu0 %v3309
      %v3311 = vand.u32 %v3003, 4294901760
      %v3312 = vsub.f32 %v3003, %v3311
      %v3313 = vand.u32 %v3312, 4294901760
      %v3314 = vsub.f32 %v3312, %v3313
      %v3315 = vand.u32 %v3314, 4294901760
      %3316 = vmatpush.msra.mxu0 %v3315
      %v3317 = vand.u32 %v3002, 4294901760
      %v3318 = vsub.f32 %v3002, %v3317
      %v3319 = vand.u32 %v3318, 4294901760
      %v3320 = vsub.f32 %v3318, %v3319
      %v3321 = vand.u32 %v3320, 4294901760
      %3322 = vmatpush.msra.mxu0 %v3321
      %v3323 = vand.u32 %v3001, 4294901760
      %v3324 = vsub.f32 %v3001, %v3323
      %v3325 = vand.u32 %v3324, 4294901760
      %v3326 = vsub.f32 %v3324, %v3325
      %v3327 = vand.u32 %v3326, 4294901760
      %3328 = vmatpush.msra.mxu0 %v3327
      %v3329 = vand.u32 %v3000, 4294901760
      %v3330 = vsub.f32 %v3000, %v3329
      %v3331 = vand.u32 %v3330, 4294901760
      %v3332 = vsub.f32 %v3330, %v3331
      %v3333 = vand.u32 %v3332, 4294901760
      %3334 = vmatpush.msra.mxu0 %v3333
      %v3335 = vand.u32 %v2999, 4294901760
      %v3336 = vsub.f32 %v2999, %v3335
      %v3337 = vand.u32 %v3336, 4294901760
      %v3338 = vsub.f32 %v3336, %v3337
      %v3339 = vand.u32 %v3338, 4294901760
      %3340 = vmatpush.msra.mxu0 %v3339
      %v3341 = vand.u32 %v2998, 4294901760
      %v3342 = vsub.f32 %v2998, %v3341
      %v3343 = vand.u32 %v3342, 4294901760
      %v3344 = vsub.f32 %v3342, %v3343
      %v3345 = vand.u32 %v3344, 4294901760
      %3346 = vmatpush.msra.mxu0 %v3345
      %v3347 = vand.u32 %v2997, 4294901760
      %v3348 = vsub.f32 %v2997, %v3347
      %v3349 = vand.u32 %v3348, 4294901760
      %v3350 = vsub.f32 %v3348, %v3349
      %v3351 = vand.u32 %v3350, 4294901760
      %3352 = vmatpush.msra.mxu0 %v3351
      %v3353 = vand.u32 %v2996, 4294901760
      %v3354 = vsub.f32 %v2996, %v3353
      %v3355 = vand.u32 %v3354, 4294901760
      %v3356 = vsub.f32 %v3354, %v3355
      %v3357 = vand.u32 %v3356, 4294901760
      %3358 = vmatpush.msra.mxu0 %v3357
      %v3359 = vand.u32 %v2995, 4294901760
      %v3360 = vsub.f32 %v2995, %v3359
      %v3361 = vand.u32 %v3360, 4294901760
      %v3362 = vsub.f32 %v3360, %v3361
      %v3363 = vand.u32 %v3362, 4294901760
      %3364 = vmatpush.msra.mxu0 %v3363
      %v3365 = vand.u32 %v2994, 4294901760
      %v3366 = vsub.f32 %v2994, %v3365
      %v3367 = vand.u32 %v3366, 4294901760
      %v3368 = vsub.f32 %v3366, %v3367
      %v3369 = vand.u32 %v3368, 4294901760
      %3370 = vmatpush.msra.mxu0 %v3369
      %v3371 = vand.u32 %v2993, 4294901760
      %v3372 = vsub.f32 %v2993, %v3371
      %v3373 = vand.u32 %v3372, 4294901760
      %v3374 = vsub.f32 %v3372, %v3373
      %v3375 = vand.u32 %v3374, 4294901760
      %3376 = vmatpush.msra.mxu0 %v3375
      %v3377 = vand.u32 %v2992, 4294901760
      %v3378 = vsub.f32 %v2992, %v3377
      %v3379 = vand.u32 %v3378, 4294901760
      %v3380 = vsub.f32 %v3378, %v3379
      %v3381 = vand.u32 %v3380, 4294901760
      %3382 = vmatpush.msra.mxu0 %v3381
      %v3383 = vand.u32 %v2991, 4294901760
      %v3384 = vsub.f32 %v2991, %v3383
      %v3385 = vand.u32 %v3384, 4294901760
      %v3386 = vsub.f32 %v3384, %v3385
      %v3387 = vand.u32 %v3386, 4294901760
      %3388 = vmatpush.msra.mxu0 %v3387
      %v3389 = vand.u32 %v2990, 4294901760
      %v3390 = vsub.f32 %v2990, %v3389
      %v3391 = vand.u32 %v3390, 4294901760
      %v3392 = vsub.f32 %v3390, %v3391
      %v3393 = vand.u32 %v3392, 4294901760
      %3394 = vmatpush.msra.mxu0 %v3393
      %v3395 = vand.u32 %v2958, 4294901760
      %3396 = vmatmul.f32.gmra.mxu0 %v3395
      %v3397 = vpop.f32.mrf.mxu0
      %v3398 = vadd.f32 %v3049, %v3397
      %v3399 = vand.u32 %v2959, 4294901760
      %3400 = vmatmul.f32.gmra.mxu0 %v3399
      %v3401 = vpop.f32.mrf.mxu0
      %v3402 = vadd.f32 %v3057, %v3401
      %v3403 = vand.u32 %v2960, 4294901760
      %3404 = vmatmul.f32.gmra.mxu0 %v3403
      %v3405 = vpop.f32.mrf.mxu0
      %v3406 = vadd.f32 %v3065, %v3405
      %v3407 = vand.u32 %v2961, 4294901760
      %3408 = vmatmul.f32.gmra.mxu0 %v3407
      %v3409 = vpop.f32.mrf.mxu0
      %v3410 = vadd.f32 %v3073, %v3409
      %v3411 = vand.u32 %v2962, 4294901760
      %3412 = vmatmul.f32.gmra.mxu0 %v3411
      %v3413 = vpop.f32.mrf.mxu0
      %v3414 = vadd.f32 %v3081, %v3413
      %v3415 = vand.u32 %v2963, 4294901760
      %3416 = vmatmul.f32.gmra.mxu0 %v3415
      %v3417 = vpop.f32.mrf.mxu0
      %v3418 = vadd.f32 %v3089, %v3417
      %v3419 = vand.u32 %v2964, 4294901760
      %3420 = vmatmul.f32.gmra.mxu0 %v3419
      %v3421 = vpop.f32.mrf.mxu0
      %v3422 = vadd.f32 %v3097, %v3421
      %v3423 = vand.u32 %v2965, 4294901760
      %3424 = vmatmul.f32.gmra.mxu0 %v3423
      %v3425 = vpop.f32.mrf.mxu0
      %v3426 = vadd.f32 %v3105, %v3425
      %v3427 = vand.u32 %v2966, 4294901760
      %3428 = vmatmul.f32.gmra.mxu0 %v3427
      %v3429 = vpop.f32.mrf.mxu0
      %v3430 = vadd.f32 %v3113, %v3429
      %v3431 = vand.u32 %v2967, 4294901760
      %3432 = vmatmul.f32.gmra.mxu0 %v3431
      %v3433 = vpop.f32.mrf.mxu0
      %v3434 = vadd.f32 %v3121, %v3433
      %v3435 = vand.u32 %v2968, 4294901760
      %3436 = vmatmul.f32.gmra.mxu0 %v3435
      %v3437 = vpop.f32.mrf.mxu0
      %v3438 = vadd.f32 %v3129, %v3437
      %v3439 = vand.u32 %v2969, 4294901760
      %3440 = vmatmul.f32.gmra.mxu0 %v3439
      %v3441 = vpop.f32.mrf.mxu0
      %v3442 = vadd.f32 %v3137, %v3441
      %v3443 = vand.u32 %v2970, 4294901760
      %3444 = vmatmul.f32.gmra.mxu0 %v3443
      %v3445 = vpop.f32.mrf.mxu0
      %v3446 = vadd.f32 %v3145, %v3445
      %v3447 = vand.u32 %v2971, 4294901760
      %3448 = vmatmul.f32.gmra.mxu0 %v3447
      %v3449 = vpop.f32.mrf.mxu0
      %v3450 = vadd.f32 %v3153, %v3449
      %v3451 = vand.u32 %v2972, 4294901760
      %3452 = vmatmul.f32.gmra.mxu0 %v3451
      %v3453 = vpop.f32.mrf.mxu0
      %v3454 = vadd.f32 %v3161, %v3453
      %v3455 = vand.u32 %v2973, 4294901760
      %3456 = vmatmul.f32.gmra.mxu0 %v3455
      %v3457 = vpop.f32.mrf.mxu0
      %v3458 = vadd.f32 %v3169, %v3457
      %v3459 = vand.u32 %v2974, 4294901760
      %3460 = vmatmul.f32.gmra.mxu0 %v3459
      %v3461 = vpop.f32.mrf.mxu0
      %v3462 = vadd.f32 %v3177, %v3461
      %v3463 = vand.u32 %v2975, 4294901760
      %3464 = vmatmul.f32.gmra.mxu0 %v3463
      %v3465 = vpop.f32.mrf.mxu0
      %v3466 = vadd.f32 %v3185, %v3465
      %v3467 = vand.u32 %v2976, 4294901760
      %3468 = vmatmul.f32.gmra.mxu0 %v3467
      %v3469 = vpop.f32.mrf.mxu0
      %v3470 = vadd.f32 %v3193, %v3469
      %v3471 = vand.u32 %v2977, 4294901760
      %3472 = vmatmul.f32.gmra.mxu0 %v3471
      %v3473 = vpop.f32.mrf.mxu0
      %v3474 = vadd.f32 %v3201, %v3473
      %v3475 = vand.u32 %v2978, 4294901760
      %3476 = vmatmul.f32.gmra.mxu0 %v3475
      %v3477 = vpop.f32.mrf.mxu0
      %v3478 = vadd.f32 %v3209, %v3477
      %v3479 = vand.u32 %v2979, 4294901760
      %3480 = vmatmul.f32.gmra.mxu0 %v3479
      %v3481 = vpop.f32.mrf.mxu0
      %v3482 = vadd.f32 %v3217, %v3481
      %v3483 = vand.u32 %v2980, 4294901760
      %3484 = vmatmul.f32.gmra.mxu0 %v3483
      %v3485 = vpop.f32.mrf.mxu0
      %v3486 = vadd.f32 %v3225, %v3485
      %v3487 = vand.u32 %v2981, 4294901760
      %3488 = vmatmul.f32.gmra.mxu0 %v3487
      %v3489 = vpop.f32.mrf.mxu0
      %v3490 = vadd.f32 %v3233, %v3489
      %v3491 = vand.u32 %v2982, 4294901760
      %3492 = vmatmul.f32.gmra.mxu0 %v3491
      %v3493 = vpop.f32.mrf.mxu0
      %v3494 = vadd.f32 %v3241, %v3493
      %v3495 = vand.u32 %v2983, 4294901760
      %3496 = vmatmul.f32.gmra.mxu0 %v3495
      %v3497 = vpop.f32.mrf.mxu0
      %v3498 = vadd.f32 %v3249, %v3497
      %v3499 = vand.u32 %v2984, 4294901760
      %3500 = vmatmul.f32.gmra.mxu0 %v3499
      %v3501 = vpop.f32.mrf.mxu0
      %v3502 = vadd.f32 %v3257, %v3501
      %v3503 = vand.u32 %v2985, 4294901760
      %3504 = vmatmul.f32.gmra.mxu0 %v3503
      %v3505 = vpop.f32.mrf.mxu0
      %v3506 = vadd.f32 %v3265, %v3505
      %v3507 = vand.u32 %v2986, 4294901760
      %3508 = vmatmul.f32.gmra.mxu0 %v3507
      %v3509 = vpop.f32.mrf.mxu0
      %v3510 = vadd.f32 %v3273, %v3509
      %v3511 = vand.u32 %v2987, 4294901760
      %3512 = vmatmul.f32.gmra.mxu0 %v3511
      %v3513 = vpop.f32.mrf.mxu0
      %v3514 = vadd.f32 %v3281, %v3513
      %v3515 = vand.u32 %v2988, 4294901760
      %3516 = vmatmul.f32.gmra.mxu0 %v3515
      %v3517 = vpop.f32.mrf.mxu0
      %v3518 = vadd.f32 %v3289, %v3517
      %v3519 = vand.u32 %v2989, 4294901760
      %3520 = vmatmul.f32.gmra.mxu0 %v3519
      %v3521 = vpop.f32.mrf.mxu0
      %v3522 = vadd.f32 %v3297, %v3521
      %3523 = vdwg.mxu0
      %v3524 = vand.u32 %v3005, 4294901760
      %v3525 = vsub.f32 %v3005, %v3524
      %3526 = vmatpush.msra.mxu0 %v3525
      %v3527 = vand.u32 %v3004, 4294901760
      %v3528 = vsub.f32 %v3004, %v3527
      %3529 = vmatpush.msra.mxu0 %v3528
      %v3530 = vand.u32 %v3003, 4294901760
      %v3531 = vsub.f32 %v3003, %v3530
      %3532 = vmatpush.msra.mxu0 %v3531
      %v3533 = vand.u32 %v3002, 4294901760
      %v3534 = vsub.f32 %v3002, %v3533
      %3535 = vmatpush.msra.mxu0 %v3534
      %v3536 = vand.u32 %v3001, 4294901760
      %v3537 = vsub.f32 %v3001, %v3536
      %3538 = vmatpush.msra.mxu0 %v3537
      %v3539 = vand.u32 %v3000, 4294901760
      %v3540 = vsub.f32 %v3000, %v3539
      %3541 = vmatpush.msra.mxu0 %v3540
      %v3542 = vand.u32 %v2999, 4294901760
      %v3543 = vsub.f32 %v2999, %v3542
      %3544 = vmatpush.msra.mxu0 %v3543
      %v3545 = vand.u32 %v2998, 4294901760
      %v3546 = vsub.f32 %v2998, %v3545
      %3547 = vmatpush.msra.mxu0 %v3546
      %v3548 = vand.u32 %v2997, 4294901760
      %v3549 = vsub.f32 %v2997, %v3548
      %3550 = vmatpush.msra.mxu0 %v3549
      %v3551 = vand.u32 %v2996, 4294901760
      %v3552 = vsub.f32 %v2996, %v3551
      %3553 = vmatpush.msra.mxu0 %v3552
      %v3554 = vand.u32 %v2995, 4294901760
      %v3555 = vsub.f32 %v2995, %v3554
      %3556 = vmatpush.msra.mxu0 %v3555
      %v3557 = vand.u32 %v2994, 4294901760
      %v3558 = vsub.f32 %v2994, %v3557
      %3559 = vmatpush.msra.mxu0 %v3558
      %v3560 = vand.u32 %v2993, 4294901760
      %v3561 = vsub.f32 %v2993, %v3560
      %3562 = vmatpush.msra.mxu0 %v3561
      %v3563 = vand.u32 %v2992, 4294901760
      %v3564 = vsub.f32 %v2992, %v3563
      %3565 = vmatpush.msra.mxu0 %v3564
      %v3566 = vand.u32 %v2991, 4294901760
      %v3567 = vsub.f32 %v2991, %v3566
      %3568 = vmatpush.msra.mxu0 %v3567
      %v3569 = vand.u32 %v2990, 4294901760
      %v3570 = vsub.f32 %v2990, %v3569
      %3571 = vmatpush.msra.mxu0 %v3570
      %v3572 = vand.u32 %v2958, 4294901760
      %v3573 = vsub.f32 %v2958, %v3572
      %3574 = vmatmul.f32.gmra.mxu0 %v3573
      %v3575 = vpop.f32.mrf.mxu0
      %v3576 = vadd.f32 %v3398, %v3575
      %v3577 = vand.u32 %v2959, 4294901760
      %v3578 = vsub.f32 %v2959, %v3577
      %3579 = vmatmul.f32.gmra.mxu0 %v3578
      %v3580 = vpop.f32.mrf.mxu0
      %v3581 = vadd.f32 %v3402, %v3580
      %v3582 = vand.u32 %v2960, 4294901760
      %v3583 = vsub.f32 %v2960, %v3582
      %3584 = vmatmul.f32.gmra.mxu0 %v3583
      %v3585 = vpop.f32.mrf.mxu0
      %v3586 = vadd.f32 %v3406, %v3585
      %v3587 = vand.u32 %v2961, 4294901760
      %v3588 = vsub.f32 %v2961, %v3587
      %3589 = vmatmul.f32.gmra.mxu0 %v3588
      %v3590 = vpop.f32.mrf.mxu0
      %v3591 = vadd.f32 %v3410, %v3590
      %v3592 = vand.u32 %v2962, 4294901760
      %v3593 = vsub.f32 %v2962, %v3592
      %3594 = vmatmul.f32.gmra.mxu0 %v3593
      %v3595 = vpop.f32.mrf.mxu0
      %v3596 = vadd.f32 %v3414, %v3595
      %v3597 = vand.u32 %v2963, 4294901760
      %v3598 = vsub.f32 %v2963, %v3597
      %3599 = vmatmul.f32.gmra.mxu0 %v3598
      %v3600 = vpop.f32.mrf.mxu0
      %v3601 = vadd.f32 %v3418, %v3600
      %v3602 = vand.u32 %v2964, 4294901760
      %v3603 = vsub.f32 %v2964, %v3602
      %3604 = vmatmul.f32.gmra.mxu0 %v3603
      %v3605 = vpop.f32.mrf.mxu0
      %v3606 = vadd.f32 %v3422, %v3605
      %v3607 = vand.u32 %v2965, 4294901760
      %v3608 = vsub.f32 %v2965, %v3607
      %3609 = vmatmul.f32.gmra.mxu0 %v3608
      %v3610 = vpop.f32.mrf.mxu0
      %v3611 = vadd.f32 %v3426, %v3610
      %v3612 = vand.u32 %v2966, 4294901760
      %v3613 = vsub.f32 %v2966, %v3612
      %3614 = vmatmul.f32.gmra.mxu0 %v3613
      %v3615 = vpop.f32.mrf.mxu0
      %v3616 = vadd.f32 %v3430, %v3615
      %v3617 = vand.u32 %v2967, 4294901760
      %v3618 = vsub.f32 %v2967, %v3617
      %3619 = vmatmul.f32.gmra.mxu0 %v3618
      %v3620 = vpop.f32.mrf.mxu0
      %v3621 = vadd.f32 %v3434, %v3620
      %v3622 = vand.u32 %v2968, 4294901760
      %v3623 = vsub.f32 %v2968, %v3622
      %3624 = vmatmul.f32.gmra.mxu0 %v3623
      %v3625 = vpop.f32.mrf.mxu0
      %v3626 = vadd.f32 %v3438, %v3625
      %v3627 = vand.u32 %v2969, 4294901760
      %v3628 = vsub.f32 %v2969, %v3627
      %3629 = vmatmul.f32.gmra.mxu0 %v3628
      %v3630 = vpop.f32.mrf.mxu0
      %v3631 = vadd.f32 %v3442, %v3630
      %v3632 = vand.u32 %v2970, 4294901760
      %v3633 = vsub.f32 %v2970, %v3632
      %3634 = vmatmul.f32.gmra.mxu0 %v3633
      %v3635 = vpop.f32.mrf.mxu0
      %v3636 = vadd.f32 %v3446, %v3635
      %v3637 = vand.u32 %v2971, 4294901760
      %v3638 = vsub.f32 %v2971, %v3637
      %3639 = vmatmul.f32.gmra.mxu0 %v3638
      %v3640 = vpop.f32.mrf.mxu0
      %v3641 = vadd.f32 %v3450, %v3640
      %v3642 = vand.u32 %v2972, 4294901760
      %v3643 = vsub.f32 %v2972, %v3642
      %3644 = vmatmul.f32.gmra.mxu0 %v3643
      %v3645 = vpop.f32.mrf.mxu0
      %v3646 = vadd.f32 %v3454, %v3645
      %v3647 = vand.u32 %v2973, 4294901760
      %v3648 = vsub.f32 %v2973, %v3647
      %3649 = vmatmul.f32.gmra.mxu0 %v3648
      %v3650 = vpop.f32.mrf.mxu0
      %v3651 = vadd.f32 %v3458, %v3650
      %v3652 = vand.u32 %v2974, 4294901760
      %v3653 = vsub.f32 %v2974, %v3652
      %3654 = vmatmul.f32.gmra.mxu0 %v3653
      %v3655 = vpop.f32.mrf.mxu0
      %v3656 = vadd.f32 %v3462, %v3655
      %v3657 = vand.u32 %v2975, 4294901760
      %v3658 = vsub.f32 %v2975, %v3657
      %3659 = vmatmul.f32.gmra.mxu0 %v3658
      %v3660 = vpop.f32.mrf.mxu0
      %v3661 = vadd.f32 %v3466, %v3660
      %v3662 = vand.u32 %v2976, 4294901760
      %v3663 = vsub.f32 %v2976, %v3662
      %3664 = vmatmul.f32.gmra.mxu0 %v3663
      %v3665 = vpop.f32.mrf.mxu0
      %v3666 = vadd.f32 %v3470, %v3665
      %v3667 = vand.u32 %v2977, 4294901760
      %v3668 = vsub.f32 %v2977, %v3667
      %3669 = vmatmul.f32.gmra.mxu0 %v3668
      %v3670 = vpop.f32.mrf.mxu0
      %v3671 = vadd.f32 %v3474, %v3670
      %v3672 = vand.u32 %v2978, 4294901760
      %v3673 = vsub.f32 %v2978, %v3672
      %3674 = vmatmul.f32.gmra.mxu0 %v3673
      %v3675 = vpop.f32.mrf.mxu0
      %v3676 = vadd.f32 %v3478, %v3675
      %v3677 = vand.u32 %v2979, 4294901760
      %v3678 = vsub.f32 %v2979, %v3677
      %3679 = vmatmul.f32.gmra.mxu0 %v3678
      %v3680 = vpop.f32.mrf.mxu0
      %v3681 = vadd.f32 %v3482, %v3680
      %v3682 = vand.u32 %v2980, 4294901760
      %v3683 = vsub.f32 %v2980, %v3682
      %3684 = vmatmul.f32.gmra.mxu0 %v3683
      %v3685 = vpop.f32.mrf.mxu0
      %v3686 = vadd.f32 %v3486, %v3685
      %v3687 = vand.u32 %v2981, 4294901760
      %v3688 = vsub.f32 %v2981, %v3687
      %3689 = vmatmul.f32.gmra.mxu0 %v3688
      %v3690 = vpop.f32.mrf.mxu0
      %v3691 = vadd.f32 %v3490, %v3690
      %v3692 = vand.u32 %v2982, 4294901760
      %v3693 = vsub.f32 %v2982, %v3692
      %3694 = vmatmul.f32.gmra.mxu0 %v3693
      %v3695 = vpop.f32.mrf.mxu0
      %v3696 = vadd.f32 %v3494, %v3695
      %v3697 = vand.u32 %v2983, 4294901760
      %v3698 = vsub.f32 %v2983, %v3697
      %3699 = vmatmul.f32.gmra.mxu0 %v3698
      %v3700 = vpop.f32.mrf.mxu0
      %v3701 = vadd.f32 %v3498, %v3700
      %v3702 = vand.u32 %v2984, 4294901760
      %v3703 = vsub.f32 %v2984, %v3702
      %3704 = vmatmul.f32.gmra.mxu0 %v3703
      %v3705 = vpop.f32.mrf.mxu0
      %v3706 = vadd.f32 %v3502, %v3705
      %v3707 = vand.u32 %v2985, 4294901760
      %v3708 = vsub.f32 %v2985, %v3707
      %3709 = vmatmul.f32.gmra.mxu0 %v3708
      %v3710 = vpop.f32.mrf.mxu0
      %v3711 = vadd.f32 %v3506, %v3710
      %v3712 = vand.u32 %v2986, 4294901760
      %v3713 = vsub.f32 %v2986, %v3712
      %3714 = vmatmul.f32.gmra.mxu0 %v3713
      %v3715 = vpop.f32.mrf.mxu0
      %v3716 = vadd.f32 %v3510, %v3715
      %v3717 = vand.u32 %v2987, 4294901760
      %v3718 = vsub.f32 %v2987, %v3717
      %3719 = vmatmul.f32.gmra.mxu0 %v3718
      %v3720 = vpop.f32.mrf.mxu0
      %v3721 = vadd.f32 %v3514, %v3720
      %v3722 = vand.u32 %v2988, 4294901760
      %v3723 = vsub.f32 %v2988, %v3722
      %3724 = vmatmul.f32.gmra.mxu0 %v3723
      %v3725 = vpop.f32.mrf.mxu0
      %v3726 = vadd.f32 %v3518, %v3725
      %v3727 = vand.u32 %v2989, 4294901760
      %v3728 = vsub.f32 %v2989, %v3727
      %3729 = vmatmul.f32.gmra.mxu0 %v3728
      %v3730 = vpop.f32.mrf.mxu0
      %v3731 = vadd.f32 %v3522, %v3730
      %3732 = vdwg.mxu0
      %v3733 = vand.u32 %v3005, 4294901760
      %3734 = vmatpush.msra.mxu0 %v3733
      %v3735 = vand.u32 %v3004, 4294901760
      %3736 = vmatpush.msra.mxu0 %v3735
      %v3737 = vand.u32 %v3003, 4294901760
      %3738 = vmatpush.msra.mxu0 %v3737
      %v3739 = vand.u32 %v3002, 4294901760
      %3740 = vmatpush.msra.mxu0 %v3739
      %v3741 = vand.u32 %v3001, 4294901760
      %3742 = vmatpush.msra.mxu0 %v3741
      %v3743 = vand.u32 %v3000, 4294901760
      %3744 = vmatpush.msra.mxu0 %v3743
      %v3745 = vand.u32 %v2999, 4294901760
      %3746 = vmatpush.msra.mxu0 %v3745
      %v3747 = vand.u32 %v2998, 4294901760
      %3748 = vmatpush.msra.mxu0 %v3747
      %v3749 = vand.u32 %v2997, 4294901760
      %3750 = vmatpush.msra.mxu0 %v3749
      %v3751 = vand.u32 %v2996, 4294901760
      %3752 = vmatpush.msra.mxu0 %v3751
      %v3753 = vand.u32 %v2995, 4294901760
      %3754 = vmatpush.msra.mxu0 %v3753
      %v3755 = vand.u32 %v2994, 4294901760
      %3756 = vmatpush.msra.mxu0 %v3755
      %v3757 = vand.u32 %v2993, 4294901760
      %3758 = vmatpush.msra.mxu0 %v3757
      %v3759 = vand.u32 %v2992, 4294901760
      %3760 = vmatpush.msra.mxu0 %v3759
      %v3761 = vand.u32 %v2991, 4294901760
      %3762 = vmatpush.msra.mxu0 %v3761
      %v3763 = vand.u32 %v2990, 4294901760
      %3764 = vmatpush.msra.mxu0 %v3763
      %v3765 = vand.u32 %v2958, 4294901760
      %v3766 = vsub.f32 %v2958, %v3765
      %v3767 = vand.u32 %v3766, 4294901760
      %3768 = vmatmul.f32.gmra.mxu0 %v3767
      %v3769 = vpop.f32.mrf.mxu0
      %v3770 = vadd.f32 %v3576, %v3769
      %v3771 = vand.u32 %v2959, 4294901760
      %v3772 = vsub.f32 %v2959, %v3771
      %v3773 = vand.u32 %v3772, 4294901760
      %3774 = vmatmul.f32.gmra.mxu0 %v3773
      %v3775 = vpop.f32.mrf.mxu0
      %v3776 = vadd.f32 %v3581, %v3775
      %v3777 = vand.u32 %v2960, 4294901760
      %v3778 = vsub.f32 %v2960, %v3777
      %v3779 = vand.u32 %v3778, 4294901760
      %3780 = vmatmul.f32.gmra.mxu0 %v3779
      %v3781 = vpop.f32.mrf.mxu0
      %v3782 = vadd.f32 %v3586, %v3781
      %v3783 = vand.u32 %v2961, 4294901760
      %v3784 = vsub.f32 %v2961, %v3783
      %v3785 = vand.u32 %v3784, 4294901760
      %3786 = vmatmul.f32.gmra.mxu0 %v3785
      %v3787 = vpop.f32.mrf.mxu0
      %v3788 = vadd.f32 %v3591, %v3787
      %v3789 = vand.u32 %v2962, 4294901760
      %v3790 = vsub.f32 %v2962, %v3789
      %v3791 = vand.u32 %v3790, 4294901760
      %3792 = vmatmul.f32.gmra.mxu0 %v3791
      %v3793 = vpop.f32.mrf.mxu0
      %v3794 = vadd.f32 %v3596, %v3793
      %v3795 = vand.u32 %v2963, 4294901760
      %v3796 = vsub.f32 %v2963, %v3795
      %v3797 = vand.u32 %v3796, 4294901760
      %3798 = vmatmul.f32.gmra.mxu0 %v3797
      %v3799 = vpop.f32.mrf.mxu0
      %v3800 = vadd.f32 %v3601, %v3799
      %v3801 = vand.u32 %v2964, 4294901760
      %v3802 = vsub.f32 %v2964, %v3801
      %v3803 = vand.u32 %v3802, 4294901760
      %3804 = vmatmul.f32.gmra.mxu0 %v3803
      %v3805 = vpop.f32.mrf.mxu0
      %v3806 = vadd.f32 %v3606, %v3805
      %v3807 = vand.u32 %v2965, 4294901760
      %v3808 = vsub.f32 %v2965, %v3807
      %v3809 = vand.u32 %v3808, 4294901760
      %3810 = vmatmul.f32.gmra.mxu0 %v3809
      %v3811 = vpop.f32.mrf.mxu0
      %v3812 = vadd.f32 %v3611, %v3811
      %v3813 = vand.u32 %v2966, 4294901760
      %v3814 = vsub.f32 %v2966, %v3813
      %v3815 = vand.u32 %v3814, 4294901760
      %3816 = vmatmul.f32.gmra.mxu0 %v3815
      %v3817 = vpop.f32.mrf.mxu0
      %v3818 = vadd.f32 %v3616, %v3817
      %v3819 = vand.u32 %v2967, 4294901760
      %v3820 = vsub.f32 %v2967, %v3819
      %v3821 = vand.u32 %v3820, 4294901760
      %3822 = vmatmul.f32.gmra.mxu0 %v3821
      %v3823 = vpop.f32.mrf.mxu0
      %v3824 = vadd.f32 %v3621, %v3823
      %v3825 = vand.u32 %v2968, 4294901760
      %v3826 = vsub.f32 %v2968, %v3825
      %v3827 = vand.u32 %v3826, 4294901760
      %3828 = vmatmul.f32.gmra.mxu0 %v3827
      %v3829 = vpop.f32.mrf.mxu0
      %v3830 = vadd.f32 %v3626, %v3829
      %v3831 = vand.u32 %v2969, 4294901760
      %v3832 = vsub.f32 %v2969, %v3831
      %v3833 = vand.u32 %v3832, 4294901760
      %3834 = vmatmul.f32.gmra.mxu0 %v3833
      %v3835 = vpop.f32.mrf.mxu0
      %v3836 = vadd.f32 %v3631, %v3835
      %v3837 = vand.u32 %v2970, 4294901760
      %v3838 = vsub.f32 %v2970, %v3837
      %v3839 = vand.u32 %v3838, 4294901760
      %3840 = vmatmul.f32.gmra.mxu0 %v3839
      %v3841 = vpop.f32.mrf.mxu0
      %v3842 = vadd.f32 %v3636, %v3841
      %v3843 = vand.u32 %v2971, 4294901760
      %v3844 = vsub.f32 %v2971, %v3843
      %v3845 = vand.u32 %v3844, 4294901760
      %3846 = vmatmul.f32.gmra.mxu0 %v3845
      %v3847 = vpop.f32.mrf.mxu0
      %v3848 = vadd.f32 %v3641, %v3847
      %v3849 = vand.u32 %v2972, 4294901760
      %v3850 = vsub.f32 %v2972, %v3849
      %v3851 = vand.u32 %v3850, 4294901760
      %3852 = vmatmul.f32.gmra.mxu0 %v3851
      %v3853 = vpop.f32.mrf.mxu0
      %v3854 = vadd.f32 %v3646, %v3853
      %v3855 = vand.u32 %v2973, 4294901760
      %v3856 = vsub.f32 %v2973, %v3855
      %v3857 = vand.u32 %v3856, 4294901760
      %3858 = vmatmul.f32.gmra.mxu0 %v3857
      %v3859 = vpop.f32.mrf.mxu0
      %v3860 = vadd.f32 %v3651, %v3859
      %v3861 = vand.u32 %v2974, 4294901760
      %v3862 = vsub.f32 %v2974, %v3861
      %v3863 = vand.u32 %v3862, 4294901760
      %3864 = vmatmul.f32.gmra.mxu0 %v3863
      %v3865 = vpop.f32.mrf.mxu0
      %v3866 = vadd.f32 %v3656, %v3865
      %v3867 = vand.u32 %v2975, 4294901760
      %v3868 = vsub.f32 %v2975, %v3867
      %v3869 = vand.u32 %v3868, 4294901760
      %3870 = vmatmul.f32.gmra.mxu0 %v3869
      %v3871 = vpop.f32.mrf.mxu0
      %v3872 = vadd.f32 %v3661, %v3871
      %v3873 = vand.u32 %v2976, 4294901760
      %v3874 = vsub.f32 %v2976, %v3873
      %v3875 = vand.u32 %v3874, 4294901760
      %3876 = vmatmul.f32.gmra.mxu0 %v3875
      %v3877 = vpop.f32.mrf.mxu0
      %v3878 = vadd.f32 %v3666, %v3877
      %v3879 = vand.u32 %v2977, 4294901760
      %v3880 = vsub.f32 %v2977, %v3879
      %v3881 = vand.u32 %v3880, 4294901760
      %3882 = vmatmul.f32.gmra.mxu0 %v3881
      %v3883 = vpop.f32.mrf.mxu0
      %v3884 = vadd.f32 %v3671, %v3883
      %v3885 = vand.u32 %v2978, 4294901760
      %v3886 = vsub.f32 %v2978, %v3885
      %v3887 = vand.u32 %v3886, 4294901760
      %3888 = vmatmul.f32.gmra.mxu0 %v3887
      %v3889 = vpop.f32.mrf.mxu0
      %v3890 = vadd.f32 %v3676, %v3889
      %v3891 = vand.u32 %v2979, 4294901760
      %v3892 = vsub.f32 %v2979, %v3891
      %v3893 = vand.u32 %v3892, 4294901760
      %3894 = vmatmul.f32.gmra.mxu0 %v3893
      %v3895 = vpop.f32.mrf.mxu0
      %v3896 = vadd.f32 %v3681, %v3895
      %v3897 = vand.u32 %v2980, 4294901760
      %v3898 = vsub.f32 %v2980, %v3897
      %v3899 = vand.u32 %v3898, 4294901760
      %3900 = vmatmul.f32.gmra.mxu0 %v3899
      %v3901 = vpop.f32.mrf.mxu0
      %v3902 = vadd.f32 %v3686, %v3901
      %v3903 = vand.u32 %v2981, 4294901760
      %v3904 = vsub.f32 %v2981, %v3903
      %v3905 = vand.u32 %v3904, 4294901760
      %3906 = vmatmul.f32.gmra.mxu0 %v3905
      %v3907 = vpop.f32.mrf.mxu0
      %v3908 = vadd.f32 %v3691, %v3907
      %v3909 = vand.u32 %v2982, 4294901760
      %v3910 = vsub.f32 %v2982, %v3909
      %v3911 = vand.u32 %v3910, 4294901760
      %3912 = vmatmul.f32.gmra.mxu0 %v3911
      %v3913 = vpop.f32.mrf.mxu0
      %v3914 = vadd.f32 %v3696, %v3913
      %v3915 = vand.u32 %v2983, 4294901760
      %v3916 = vsub.f32 %v2983, %v3915
      %v3917 = vand.u32 %v3916, 4294901760
      %3918 = vmatmul.f32.gmra.mxu0 %v3917
      %v3919 = vpop.f32.mrf.mxu0
      %v3920 = vadd.f32 %v3701, %v3919
      %v3921 = vand.u32 %v2984, 4294901760
      %v3922 = vsub.f32 %v2984, %v3921
      %v3923 = vand.u32 %v3922, 4294901760
      %3924 = vmatmul.f32.gmra.mxu0 %v3923
      %v3925 = vpop.f32.mrf.mxu0
      %v3926 = vadd.f32 %v3706, %v3925
      %v3927 = vand.u32 %v2985, 4294901760
      %v3928 = vsub.f32 %v2985, %v3927
      %v3929 = vand.u32 %v3928, 4294901760
      %3930 = vmatmul.f32.gmra.mxu0 %v3929
      %v3931 = vpop.f32.mrf.mxu0
      %v3932 = vadd.f32 %v3711, %v3931
      %v3933 = vand.u32 %v2986, 4294901760
      %v3934 = vsub.f32 %v2986, %v3933
      %v3935 = vand.u32 %v3934, 4294901760
      %3936 = vmatmul.f32.gmra.mxu0 %v3935
      %v3937 = vpop.f32.mrf.mxu0
      %v3938 = vadd.f32 %v3716, %v3937
      %v3939 = vand.u32 %v2987, 4294901760
      %v3940 = vsub.f32 %v2987, %v3939
      %v3941 = vand.u32 %v3940, 4294901760
      %3942 = vmatmul.f32.gmra.mxu0 %v3941
      %v3943 = vpop.f32.mrf.mxu0
      %v3944 = vadd.f32 %v3721, %v3943
      %v3945 = vand.u32 %v2988, 4294901760
      %v3946 = vsub.f32 %v2988, %v3945
      %v3947 = vand.u32 %v3946, 4294901760
      %3948 = vmatmul.f32.gmra.mxu0 %v3947
      %v3949 = vpop.f32.mrf.mxu0
      %v3950 = vadd.f32 %v3726, %v3949
      %v3951 = vand.u32 %v2989, 4294901760
      %v3952 = vsub.f32 %v2989, %v3951
      %v3953 = vand.u32 %v3952, 4294901760
      %3954 = vmatmul.f32.gmra.mxu0 %v3953
      %v3955 = vpop.f32.mrf.mxu0
      %v3956 = vadd.f32 %v3731, %v3955
      %3957 = vdwg.mxu0
      %v3958 = vand.u32 %v3005, 4294901760
      %v3959 = vsub.f32 %v3005, %v3958
      %v3960 = vand.u32 %v3959, 4294901760
      %3961 = vmatpush.msra.mxu0 %v3960
      %v3962 = vand.u32 %v3004, 4294901760
      %v3963 = vsub.f32 %v3004, %v3962
      %v3964 = vand.u32 %v3963, 4294901760
      %3965 = vmatpush.msra.mxu0 %v3964
      %v3966 = vand.u32 %v3003, 4294901760
      %v3967 = vsub.f32 %v3003, %v3966
      %v3968 = vand.u32 %v3967, 4294901760
      %3969 = vmatpush.msra.mxu0 %v3968
      %v3970 = vand.u32 %v3002, 4294901760
      %v3971 = vsub.f32 %v3002, %v3970
      %v3972 = vand.u32 %v3971, 4294901760
      %3973 = vmatpush.msra.mxu0 %v3972
      %v3974 = vand.u32 %v3001, 4294901760
      %v3975 = vsub.f32 %v3001, %v3974
      %v3976 = vand.u32 %v3975, 4294901760
      %3977 = vmatpush.msra.mxu0 %v3976
      %v3978 = vand.u32 %v3000, 4294901760
      %v3979 = vsub.f32 %v3000, %v3978
      %v3980 = vand.u32 %v3979, 4294901760
      %3981 = vmatpush.msra.mxu0 %v3980
      %v3982 = vand.u32 %v2999, 4294901760
      %v3983 = vsub.f32 %v2999, %v3982
      %v3984 = vand.u32 %v3983, 4294901760
      %3985 = vmatpush.msra.mxu0 %v3984
      %v3986 = vand.u32 %v2998, 4294901760
      %v3987 = vsub.f32 %v2998, %v3986
      %v3988 = vand.u32 %v3987, 4294901760
      %3989 = vmatpush.msra.mxu0 %v3988
      %v3990 = vand.u32 %v2997, 4294901760
      %v3991 = vsub.f32 %v2997, %v3990
      %v3992 = vand.u32 %v3991, 4294901760
      %3993 = vmatpush.msra.mxu0 %v3992
      %v3994 = vand.u32 %v2996, 4294901760
      %v3995 = vsub.f32 %v2996, %v3994
      %v3996 = vand.u32 %v3995, 4294901760
      %3997 = vmatpush.msra.mxu0 %v3996
      %v3998 = vand.u32 %v2995, 4294901760
      %v3999 = vsub.f32 %v2995, %v3998
      %v4000 = vand.u32 %v3999, 4294901760
      %4001 = vmatpush.msra.mxu0 %v4000
      %v4002 = vand.u32 %v2994, 4294901760
      %v4003 = vsub.f32 %v2994, %v4002
      %v4004 = vand.u32 %v4003, 4294901760
      %4005 = vmatpush.msra.mxu0 %v4004
      %v4006 = vand.u32 %v2993, 4294901760
      %v4007 = vsub.f32 %v2993, %v4006
      %v4008 = vand.u32 %v4007, 4294901760
      %4009 = vmatpush.msra.mxu0 %v4008
      %v4010 = vand.u32 %v2992, 4294901760
      %v4011 = vsub.f32 %v2992, %v4010
      %v4012 = vand.u32 %v4011, 4294901760
      %4013 = vmatpush.msra.mxu0 %v4012
      %v4014 = vand.u32 %v2991, 4294901760
      %v4015 = vsub.f32 %v2991, %v4014
      %v4016 = vand.u32 %v4015, 4294901760
      %4017 = vmatpush.msra.mxu0 %v4016
      %v4018 = vand.u32 %v2990, 4294901760
      %v4019 = vsub.f32 %v2990, %v4018
      %v4020 = vand.u32 %v4019, 4294901760
      %4021 = vmatpush.msra.mxu0 %v4020
      %v4022 = vand.u32 %v2958, 4294901760
      %4023 = vmatmul.f32.gmra.mxu0 %v4022
      %v4024 = vpop.f32.mrf.mxu0
      %v4025 = vadd.f32 %v3770, %v4024
      %v4026 = vand.u32 %v2959, 4294901760
      %4027 = vmatmul.f32.gmra.mxu0 %v4026
      %v4028 = vpop.f32.mrf.mxu0
      %v4029 = vadd.f32 %v3776, %v4028
      %v4030 = vand.u32 %v2960, 4294901760
      %4031 = vmatmul.f32.gmra.mxu0 %v4030
      %v4032 = vpop.f32.mrf.mxu0
      %v4033 = vadd.f32 %v3782, %v4032
      %v4034 = vand.u32 %v2961, 4294901760
      %4035 = vmatmul.f32.gmra.mxu0 %v4034
      %v4036 = vpop.f32.mrf.mxu0
      %v4037 = vadd.f32 %v3788, %v4036
      %v4038 = vand.u32 %v2962, 4294901760
      %4039 = vmatmul.f32.gmra.mxu0 %v4038
      %v4040 = vpop.f32.mrf.mxu0
      %v4041 = vadd.f32 %v3794, %v4040
      %v4042 = vand.u32 %v2963, 4294901760
      %4043 = vmatmul.f32.gmra.mxu0 %v4042
      %v4044 = vpop.f32.mrf.mxu0
      %v4045 = vadd.f32 %v3800, %v4044
      %v4046 = vand.u32 %v2964, 4294901760
      %4047 = vmatmul.f32.gmra.mxu0 %v4046
      %v4048 = vpop.f32.mrf.mxu0
      %v4049 = vadd.f32 %v3806, %v4048
      %v4050 = vand.u32 %v2965, 4294901760
      %4051 = vmatmul.f32.gmra.mxu0 %v4050
      %v4052 = vpop.f32.mrf.mxu0
      %v4053 = vadd.f32 %v3812, %v4052
      %v4054 = vand.u32 %v2966, 4294901760
      %4055 = vmatmul.f32.gmra.mxu0 %v4054
      %v4056 = vpop.f32.mrf.mxu0
      %v4057 = vadd.f32 %v3818, %v4056
      %v4058 = vand.u32 %v2967, 4294901760
      %4059 = vmatmul.f32.gmra.mxu0 %v4058
      %v4060 = vpop.f32.mrf.mxu0
      %v4061 = vadd.f32 %v3824, %v4060
      %v4062 = vand.u32 %v2968, 4294901760
      %4063 = vmatmul.f32.gmra.mxu0 %v4062
      %v4064 = vpop.f32.mrf.mxu0
      %v4065 = vadd.f32 %v3830, %v4064
      %v4066 = vand.u32 %v2969, 4294901760
      %4067 = vmatmul.f32.gmra.mxu0 %v4066
      %v4068 = vpop.f32.mrf.mxu0
      %v4069 = vadd.f32 %v3836, %v4068
      %v4070 = vand.u32 %v2970, 4294901760
      %4071 = vmatmul.f32.gmra.mxu0 %v4070
      %v4072 = vpop.f32.mrf.mxu0
      %v4073 = vadd.f32 %v3842, %v4072
      %v4074 = vand.u32 %v2971, 4294901760
      %4075 = vmatmul.f32.gmra.mxu0 %v4074
      %v4076 = vpop.f32.mrf.mxu0
      %v4077 = vadd.f32 %v3848, %v4076
      %v4078 = vand.u32 %v2972, 4294901760
      %4079 = vmatmul.f32.gmra.mxu0 %v4078
      %v4080 = vpop.f32.mrf.mxu0
      %v4081 = vadd.f32 %v3854, %v4080
      %v4082 = vand.u32 %v2973, 4294901760
      %4083 = vmatmul.f32.gmra.mxu0 %v4082
      %v4084 = vpop.f32.mrf.mxu0
      %v4085 = vadd.f32 %v3860, %v4084
      %v4086 = vand.u32 %v2974, 4294901760
      %4087 = vmatmul.f32.gmra.mxu0 %v4086
      %v4088 = vpop.f32.mrf.mxu0
      %v4089 = vadd.f32 %v3866, %v4088
      %v4090 = vand.u32 %v2975, 4294901760
      %4091 = vmatmul.f32.gmra.mxu0 %v4090
      %v4092 = vpop.f32.mrf.mxu0
      %v4093 = vadd.f32 %v3872, %v4092
      %v4094 = vand.u32 %v2976, 4294901760
      %4095 = vmatmul.f32.gmra.mxu0 %v4094
      %v4096 = vpop.f32.mrf.mxu0
      %v4097 = vadd.f32 %v3878, %v4096
      %v4098 = vand.u32 %v2977, 4294901760
      %4099 = vmatmul.f32.gmra.mxu0 %v4098
      %v4100 = vpop.f32.mrf.mxu0
      %v4101 = vadd.f32 %v3884, %v4100
      %v4102 = vand.u32 %v2978, 4294901760
      %4103 = vmatmul.f32.gmra.mxu0 %v4102
      %v4104 = vpop.f32.mrf.mxu0
      %v4105 = vadd.f32 %v3890, %v4104
      %v4106 = vand.u32 %v2979, 4294901760
      %4107 = vmatmul.f32.gmra.mxu0 %v4106
      %v4108 = vpop.f32.mrf.mxu0
      %v4109 = vadd.f32 %v3896, %v4108
      %v4110 = vand.u32 %v2980, 4294901760
      %4111 = vmatmul.f32.gmra.mxu0 %v4110
      %v4112 = vpop.f32.mrf.mxu0
      %v4113 = vadd.f32 %v3902, %v4112
      %v4114 = vand.u32 %v2981, 4294901760
      %4115 = vmatmul.f32.gmra.mxu0 %v4114
      %v4116 = vpop.f32.mrf.mxu0
      %v4117 = vadd.f32 %v3908, %v4116
      %v4118 = vand.u32 %v2982, 4294901760
      %4119 = vmatmul.f32.gmra.mxu0 %v4118
      %v4120 = vpop.f32.mrf.mxu0
      %v4121 = vadd.f32 %v3914, %v4120
      %v4122 = vand.u32 %v2983, 4294901760
      %4123 = vmatmul.f32.gmra.mxu0 %v4122
      %v4124 = vpop.f32.mrf.mxu0
      %v4125 = vadd.f32 %v3920, %v4124
      %v4126 = vand.u32 %v2984, 4294901760
      %4127 = vmatmul.f32.gmra.mxu0 %v4126
      %v4128 = vpop.f32.mrf.mxu0
      %v4129 = vadd.f32 %v3926, %v4128
      %v4130 = vand.u32 %v2985, 4294901760
      %4131 = vmatmul.f32.gmra.mxu0 %v4130
      %v4132 = vpop.f32.mrf.mxu0
      %v4133 = vadd.f32 %v3932, %v4132
      %v4134 = vand.u32 %v2986, 4294901760
      %4135 = vmatmul.f32.gmra.mxu0 %v4134
      %v4136 = vpop.f32.mrf.mxu0
      %v4137 = vadd.f32 %v3938, %v4136
      %v4138 = vand.u32 %v2987, 4294901760
      %4139 = vmatmul.f32.gmra.mxu0 %v4138
      %v4140 = vpop.f32.mrf.mxu0
      %v4141 = vadd.f32 %v3944, %v4140
      %v4142 = vand.u32 %v2988, 4294901760
      %4143 = vmatmul.f32.gmra.mxu0 %v4142
      %v4144 = vpop.f32.mrf.mxu0
      %v4145 = vadd.f32 %v3950, %v4144
      %v4146 = vand.u32 %v2989, 4294901760
      %4147 = vmatmul.f32.gmra.mxu0 %v4146
      %v4148 = vpop.f32.mrf.mxu0
      %v4149 = vadd.f32 %v3956, %v4148
      %4150 = vdwg.mxu0
      %v4151 = vand.u32 %v3005, 4294901760
      %4152 = vmatpush.msra.mxu0 %v4151
      %v4153 = vand.u32 %v3004, 4294901760
      %4154 = vmatpush.msra.mxu0 %v4153
      %v4155 = vand.u32 %v3003, 4294901760
      %4156 = vmatpush.msra.mxu0 %v4155
      %v4157 = vand.u32 %v3002, 4294901760
      %4158 = vmatpush.msra.mxu0 %v4157
      %v4159 = vand.u32 %v3001, 4294901760
      %4160 = vmatpush.msra.mxu0 %v4159
      %v4161 = vand.u32 %v3000, 4294901760
      %4162 = vmatpush.msra.mxu0 %v4161
      %v4163 = vand.u32 %v2999, 4294901760
      %4164 = vmatpush.msra.mxu0 %v4163
      %v4165 = vand.u32 %v2998, 4294901760
      %4166 = vmatpush.msra.mxu0 %v4165
      %v4167 = vand.u32 %v2997, 4294901760
      %4168 = vmatpush.msra.mxu0 %v4167
      %v4169 = vand.u32 %v2996, 4294901760
      %4170 = vmatpush.msra.mxu0 %v4169
      %v4171 = vand.u32 %v2995, 4294901760
      %4172 = vmatpush.msra.mxu0 %v4171
      %v4173 = vand.u32 %v2994, 4294901760
      %4174 = vmatpush.msra.mxu0 %v4173
      %v4175 = vand.u32 %v2993, 4294901760
      %4176 = vmatpush.msra.mxu0 %v4175
      %v4177 = vand.u32 %v2992, 4294901760
      %4178 = vmatpush.msra.mxu0 %v4177
      %v4179 = vand.u32 %v2991, 4294901760
      %4180 = vmatpush.msra.mxu0 %v4179
      %v4181 = vand.u32 %v2990, 4294901760
      %4182 = vmatpush.msra.mxu0 %v4181
      %v4183 = vand.u32 %v2958, 4294901760
      %4184 = vmatmul.f32.gmra.mxu0 %v4183
      %v4185 = vpop.f32.mrf.mxu0
      %v4186 = vadd.f32 %v4025, %v4185
      %v4187 = vand.u32 %v2959, 4294901760
      %4188 = vmatmul.f32.gmra.mxu0 %v4187
      %v4189 = vpop.f32.mrf.mxu0
      %v4190 = vadd.f32 %v4029, %v4189
      %v4191 = vand.u32 %v2960, 4294901760
      %4192 = vmatmul.f32.gmra.mxu0 %v4191
      %v4193 = vpop.f32.mrf.mxu0
      %v4194 = vadd.f32 %v4033, %v4193
      %v4195 = vand.u32 %v2961, 4294901760
      %4196 = vmatmul.f32.gmra.mxu0 %v4195
      %v4197 = vpop.f32.mrf.mxu0
      %v4198 = vadd.f32 %v4037, %v4197
      %v4199 = vand.u32 %v2962, 4294901760
      %4200 = vmatmul.f32.gmra.mxu0 %v4199
      %v4201 = vpop.f32.mrf.mxu0
      %v4202 = vadd.f32 %v4041, %v4201
      %v4203 = vand.u32 %v2963, 4294901760
      %4204 = vmatmul.f32.gmra.mxu0 %v4203
      %v4205 = vpop.f32.mrf.mxu0
      %v4206 = vadd.f32 %v4045, %v4205
      %v4207 = vand.u32 %v2964, 4294901760
      %4208 = vmatmul.f32.gmra.mxu0 %v4207
      %v4209 = vpop.f32.mrf.mxu0
      %v4210 = vadd.f32 %v4049, %v4209
      %v4211 = vand.u32 %v2965, 4294901760
      %4212 = vmatmul.f32.gmra.mxu0 %v4211
      %v4213 = vpop.f32.mrf.mxu0
      %v4214 = vadd.f32 %v4053, %v4213
      %v4215 = vand.u32 %v2966, 4294901760
      %4216 = vmatmul.f32.gmra.mxu0 %v4215
      %v4217 = vpop.f32.mrf.mxu0
      %v4218 = vadd.f32 %v4057, %v4217
      %v4219 = vand.u32 %v2967, 4294901760
      %4220 = vmatmul.f32.gmra.mxu0 %v4219
      %v4221 = vpop.f32.mrf.mxu0
      %v4222 = vadd.f32 %v4061, %v4221
      %v4223 = vand.u32 %v2968, 4294901760
      %4224 = vmatmul.f32.gmra.mxu0 %v4223
      %v4225 = vpop.f32.mrf.mxu0
      %v4226 = vadd.f32 %v4065, %v4225
      %v4227 = vand.u32 %v2969, 4294901760
      %4228 = vmatmul.f32.gmra.mxu0 %v4227
      %v4229 = vpop.f32.mrf.mxu0
      %v4230 = vadd.f32 %v4069, %v4229
      %v4231 = vand.u32 %v2970, 4294901760
      %4232 = vmatmul.f32.gmra.mxu0 %v4231
      %v4233 = vpop.f32.mrf.mxu0
      %v4234 = vadd.f32 %v4073, %v4233
      %v4235 = vand.u32 %v2971, 4294901760
      %4236 = vmatmul.f32.gmra.mxu0 %v4235
      %v4237 = vpop.f32.mrf.mxu0
      %v4238 = vadd.f32 %v4077, %v4237
      %v4239 = vand.u32 %v2972, 4294901760
      %4240 = vmatmul.f32.gmra.mxu0 %v4239
      %v4241 = vpop.f32.mrf.mxu0
      %v4242 = vadd.f32 %v4081, %v4241
      %v4243 = vand.u32 %v2973, 4294901760
      %4244 = vmatmul.f32.gmra.mxu0 %v4243
      %v4245 = vpop.f32.mrf.mxu0
      %v4246 = vadd.f32 %v4085, %v4245
      %v4247 = vand.u32 %v2974, 4294901760
      %4248 = vmatmul.f32.gmra.mxu0 %v4247
      %v4249 = vpop.f32.mrf.mxu0
      %v4250 = vadd.f32 %v4089, %v4249
      %v4251 = vand.u32 %v2975, 4294901760
      %4252 = vmatmul.f32.gmra.mxu0 %v4251
      %v4253 = vpop.f32.mrf.mxu0
      %v4254 = vadd.f32 %v4093, %v4253
      %v4255 = vand.u32 %v2976, 4294901760
      %4256 = vmatmul.f32.gmra.mxu0 %v4255
      %v4257 = vpop.f32.mrf.mxu0
      %v4258 = vadd.f32 %v4097, %v4257
      %v4259 = vand.u32 %v2977, 4294901760
      %4260 = vmatmul.f32.gmra.mxu0 %v4259
      %v4261 = vpop.f32.mrf.mxu0
      %v4262 = vadd.f32 %v4101, %v4261
      %v4263 = vand.u32 %v2978, 4294901760
      %4264 = vmatmul.f32.gmra.mxu0 %v4263
      %v4265 = vpop.f32.mrf.mxu0
      %v4266 = vadd.f32 %v4105, %v4265
      %v4267 = vand.u32 %v2979, 4294901760
      %4268 = vmatmul.f32.gmra.mxu0 %v4267
      %v4269 = vpop.f32.mrf.mxu0
      %v4270 = vadd.f32 %v4109, %v4269
      %v4271 = vand.u32 %v2980, 4294901760
      %4272 = vmatmul.f32.gmra.mxu0 %v4271
      %v4273 = vpop.f32.mrf.mxu0
      %v4274 = vadd.f32 %v4113, %v4273
      %v4275 = vand.u32 %v2981, 4294901760
      %4276 = vmatmul.f32.gmra.mxu0 %v4275
      %v4277 = vpop.f32.mrf.mxu0
      %v4278 = vadd.f32 %v4117, %v4277
      %v4279 = vand.u32 %v2982, 4294901760
      %4280 = vmatmul.f32.gmra.mxu0 %v4279
      %v4281 = vpop.f32.mrf.mxu0
      %v4282 = vadd.f32 %v4121, %v4281
      %v4283 = vand.u32 %v2983, 4294901760
      %4284 = vmatmul.f32.gmra.mxu0 %v4283
      %v4285 = vpop.f32.mrf.mxu0
      %v4286 = vadd.f32 %v4125, %v4285
      %v4287 = vand.u32 %v2984, 4294901760
      %4288 = vmatmul.f32.gmra.mxu0 %v4287
      %v4289 = vpop.f32.mrf.mxu0
      %v4290 = vadd.f32 %v4129, %v4289
      %v4291 = vand.u32 %v2985, 4294901760
      %4292 = vmatmul.f32.gmra.mxu0 %v4291
      %v4293 = vpop.f32.mrf.mxu0
      %v4294 = vadd.f32 %v4133, %v4293
      %v4295 = vand.u32 %v2986, 4294901760
      %4296 = vmatmul.f32.gmra.mxu0 %v4295
      %v4297 = vpop.f32.mrf.mxu0
      %v4298 = vadd.f32 %v4137, %v4297
      %v4299 = vand.u32 %v2987, 4294901760
      %4300 = vmatmul.f32.gmra.mxu0 %v4299
      %v4301 = vpop.f32.mrf.mxu0
      %v4302 = vadd.f32 %v4141, %v4301
      %v4303 = vand.u32 %v2988, 4294901760
      %4304 = vmatmul.f32.gmra.mxu0 %v4303
      %v4305 = vpop.f32.mrf.mxu0
      %v4306 = vadd.f32 %v4145, %v4305
      %v4307 = vand.u32 %v2989, 4294901760
      %4308 = vmatmul.f32.gmra.mxu0 %v4307
      %v4309 = vpop.f32.mrf.mxu0
      %v4310 = vadd.f32 %v4149, %v4309
      %4311 = vdwg.mxu0
      %4312 = vst [vmem:[%s226] sm:$0xff] %v4186
      %4313 = vst [vmem:[%s226 + $0x8] sm:$0xff] %v4190
      %4314 = vst [vmem:[%s226 + $0x10] sm:$0xff] %v4194
      %4315 = vst [vmem:[%s226 + $0x18] sm:$0xff] %v4198
      %4316 = vst [vmem:[%s226 + $0x20] sm:$0xff] %v4202
      %4317 = vst [vmem:[%s226 + $0x28] sm:$0xff] %v4206
      %4318 = vst [vmem:[%s226 + $0x30] sm:$0xff] %v4210
      %4319 = vst [vmem:[%s226 + $0x38] sm:$0xff] %v4214
      %4320 = vst [vmem:[%s226 + $0x40] sm:$0xff] %v4218
      %4321 = vst [vmem:[%s226 + $0x48] sm:$0xff] %v4222
      %4322 = vst [vmem:[%s226 + $0x50] sm:$0xff] %v4226
      %4323 = vst [vmem:[%s226 + $0x58] sm:$0xff] %v4230
      %4324 = vst [vmem:[%s226 + $0x60] sm:$0xff] %v4234
      %4325 = vst [vmem:[%s226 + $0x68] sm:$0xff] %v4238
      %4326 = vst [vmem:[%s226 + $0x70] sm:$0xff] %v4242
      %4327 = vst [vmem:[%s226 + $0x78] sm:$0xff] %v4246
      %4328 = vst [vmem:[%s226 + $0x80] sm:$0xff] %v4250
      %4329 = vst [vmem:[%s226 + $0x88] sm:$0xff] %v4254
      %4330 = vst [vmem:[%s226 + $0x90] sm:$0xff] %v4258
      %4331 = vst [vmem:[%s226 + $0x98] sm:$0xff] %v4262
      %4332 = vst [vmem:[%s226 + $0xa0] sm:$0xff] %v4266
      %4333 = vst [vmem:[%s226 + $0xa8] sm:$0xff] %v4270
      %4334 = vst [vmem:[%s226 + $0xb0] sm:$0xff] %v4274
      %4335 = vst [vmem:[%s226 + $0xb8] sm:$0xff] %v4278
      %4336 = vst [vmem:[%s226 + $0xc0] sm:$0xff] %v4282
      %4337 = vst [vmem:[%s226 + $0xc8] sm:$0xff] %v4286
      %4338 = vst [vmem:[%s226 + $0xd0] sm:$0xff] %v4290
      %4339 = vst [vmem:[%s226 + $0xd8] sm:$0xff] %v4294
      %4340 = vst [vmem:[%s226 + $0xe0] sm:$0xff] %v4298
      %4341 = vst [vmem:[%s226 + $0xe8] sm:$0xff] %v4302
      %4342 = vst [vmem:[%s226 + $0xf0] sm:$0xff] %v4306
      %4343 = vst [vmem:[%s226 + $0xf8] sm:$0xff] %v4310
      %s4344 = smul.u32 32, %s16
      %p4345 = scmp.lt.s32.totalorder %s4344, 63
      %s4346 = scalar_select %p4345, %s4344, 63
      %s4347 = smul.addr %s4346, 8
      %s4348 = scalar_lea.vmem %s5, %s4347
      // Predicated region
      $region41: #{embed_fc_forward.1} parent=39 // pred_check
        %p4349 = pneg %p144
      $region42: #{embed_fc_forward.1} parent=39 // pred_check_branch
        %4351 = sbr.rel (%p4349) target = $region44
      $region43: #{embed_fc_forward.1} parent=39 // pred_region
        %s4352 = smul.u32 32, %s16
      $region44: #{embed_fc_forward.1} parent=39 // pred_fallthru
        _
    $region40: #{embed_fc_forward.1} parent=5 // pred_fallthru
      _
    %p4353 = scmp.le.s32.totalorder 2, %s11
    // Predicated region
    $region45: #{embed_fc_forward.1} parent=5 // pred_check
      %p4354 = pneg %p4353
    $region46: #{embed_fc_forward.1} parent=5 // pred_check_branch
      %4356 = sbr.rel (%p4354) target = $region48
    $region47: #{embed_fc_forward.1} parent=5 // pred_region
      %s4357 = ssub.s32 %s11, 2
      // Predicated region
      $region49: #{embed_fc_forward.1} parent=47 // pred_check
        %p4358 = pneg %p150
      $region50: #{embed_fc_forward.1} parent=47 // pred_check_branch
        %4360 = sbr.rel (%p4358) target = $region52
      $region51: #{embed_fc_forward.1} parent=47 // pred_region
        %s4361 = smul.u32 32, %s17
        %p4362 = scmp.lt.s32.totalorder %s4361, 63
        %s4363 = scalar_select %p4362, %s4361, 63
        %s4364 = smul.addr %s4363, 8
        %s4365 = scalar_lea.vmem %s5, %s4364
      $region52: #{embed_fc_forward.1} parent=47 // pred_fallthru
        _
    $region48: #{embed_fc_forward.1} parent=5 // pred_fallthru
      _
  $region6: #{embed_fc_forward.1} parent=0 // loop_footer
    %s15 = sadd.s32 1, %s11
  $region7: #{embed_fc_forward.1} parent=0 // loop_footer_branch
    %10 = sbr.rel target = $region3
  $region8: #{embed_fc_forward.1} parent=0 // loop_exit
    _

</llo_original>
